<compile_context>
chip_gen: v6e
topology: v6e:2x2x1
jax: 0.10.0
libtpu: 0.0.40
codegen_flags: <defaults>
</compile_context>

<pallas_src>
import functools
import math

import jax
import jax.numpy as jnp
from jax.experimental import pallas as pl
from jax.experimental.pallas import tpu as pltpu


# ----------------------------- in-kernel helpers -----------------------------

def _layernorm(x, gamma, beta, eps=1e-5):
    mu = jnp.mean(x, axis=-1, keepdims=True)
    var = jnp.mean(jnp.square(x - mu), axis=-1, keepdims=True)
    return (x - mu) * jax.lax.rsqrt(var + eps) * gamma + beta


# --------------------------------- the kernel ---------------------------------

def _prompt_decoder_kernel(
    task_ref,                       # (B*T, C)  flattened task tokens (f32)
    patches_ref,                    # (B, L, Kp) im2col'ed pixel patches (f32)
    wq_ref, bq_ref,                 # (C, C) bf16 (scale folded), (1, C) f32
    wk_ref, bk_ref,                 # (Kp, C) bf16 (conv folded), (1, C) f32
    wv_ref, bv_ref,                 # (Kp, C) bf16 (conv folded), (1, C) f32
    wo_ref, bo_ref,                 # (C, C) bf16, (1, C) f32
    g1_ref, be1_ref,                # (1, C) f32  cross_attn_norm_1
    w1_hbm_ref, b1_ref,             # (C, H) bf16 in HBM (manual DMA), (1, H) f32
    w2_hbm_ref, b2_ref,             # (H, C) bf16 in HBM (manual DMA), (1, C) f32
    g2_ref, be2_ref,                # (1, C) f32  ffn_norm_1
    out_ref,                        # (B*T, C)
    w1_vmem, w2_vmem,               # VMEM scratch for the FFN weights
    attn_acc,                       # (B*T, C) f32 scratch: attention output
    dma_sem,                        # DMA semaphores (2,)
    *, B, T, num_heads,
):
    f32 = jnp.float32
    bf16 = jnp.bfloat16

    # Kick off the FFN weight DMAs immediately; they land while attention runs.
    cp1 = pltpu.make_async_copy(w1_hbm_ref, w1_vmem, dma_sem.at[0])
    cp2 = pltpu.make_async_copy(w2_hbm_ref, w2_vmem, dma_sem.at[1])
    cp1.start()
    cp2.start()

    C = out_ref.shape[-1]
    hd = C // num_heads

    # ---- multi-head cross attention (per batch element, static loops) ----
    for b in range(B):
        task_b = task_ref[pl.ds(b * T, T), :].astype(bf16)       # (T, C)
        patches_b = patches_ref[b].astype(bf16)                  # (L, Kp)
        attn_b = None
        for h in range(num_heads):
            lo, hi = h * hd, (h + 1) * hd
            # Per-head projections against ref-sliced weight views: the MXU
            # emits (T,hd)/(L,hd) tiles directly; no live-vreg lane slicing.
            qh = jnp.dot(task_b, wq_ref[:, lo:hi],
                         preferred_element_type=f32) + bq_ref[:, lo:hi]
            kh = jnp.dot(patches_b, wk_ref[:, lo:hi],
                         preferred_element_type=f32) + bk_ref[:, lo:hi]
            vh = jnp.dot(patches_b, wv_ref[:, lo:hi],
                         preferred_element_type=f32) + bv_ref[:, lo:hi]
            # scores: contract last-vs-last (no k transpose / relayout)
            s = jax.lax.dot_general(qh.astype(bf16), kh.astype(bf16),
                                    (((1,), (1,)), ((), ())),
                                    preferred_element_type=f32)   # (T, L)
            s = s - jnp.max(s, axis=-1, keepdims=True)
            e = jnp.exp(s)
            p = e * pl.reciprocal(jnp.sum(e, axis=-1, keepdims=True), approx=True)
            oh = jnp.dot(p.astype(bf16), vh.astype(bf16),
                         preferred_element_type=f32)               # (T, hd)
            # out-projection folded into the head loop:
            #   concat_h(o_h) @ Wo == sum_h o_h @ Wo[h*hd:(h+1)*hd, :]
            contrib = jnp.dot(oh.astype(bf16), wo_ref[lo:hi, :],
                              preferred_element_type=f32)          # (T, C)
            attn_b = contrib if attn_b is None else attn_b + contrib
        attn_acc[pl.ds(b * T, T), :] = attn_b + bo_ref[...]

    # ---- residual + LayerNorm over the flattened (B*T, C) token matrix ----
    x = _layernorm(task_ref[...] + attn_acc[...], g1_ref[...], be1_ref[...])

    # ---- FFN: Linear -> ReLU -> Linear, residual, LayerNorm ----
    cp1.wait()                                                     # w1 is ready
    hmid = jnp.dot(x.astype(bf16), w1_vmem[...],
                   preferred_element_type=f32) + b1_ref[...]
    hmid = jnp.maximum(hmid, 0.0)
    cp2.wait()                                                     # w2 is ready
    y = x + jnp.dot(hmid.astype(bf16), w2_vmem[...],
                    preferred_element_type=f32) + b2_ref[...]
    out_ref[...] = _layernorm(y, g2_ref[...], be2_ref[...]).astype(out_ref.dtype)


# --------------------------------- wrapper -------------------------------------

def _extract_patches(pixel_feat, patch):
    # Conv2d(kernel=stride=patch, padding=0) im2col: pure layout plumbing.
    B, Cin, H, W = pixel_feat.shape
    Ho, Wo = H // patch, W // patch
    x = pixel_feat.reshape(B, Cin, Ho, patch, Wo, patch)
    x = x.transpose(0, 2, 4, 1, 3, 5)                    # (B, Ho, Wo, Cin, kh, kw)
    return x.reshape(B, Ho * Wo, Cin * patch * patch)    # (B, L, Kp)


def prompt_decoder_forward(pixel_feat, task_feat, params, *, patch, num_heads=4):
    B, Cin, H, W = pixel_feat.shape
    _, T, C = task_feat.shape
    Kp = Cin * patch * patch
    Hd = params["w1"].shape[1]
    hd = C // num_heads
    scale = 1.0 / math.sqrt(hd)

    f32 = jnp.float32
    bf16 = jnp.bfloat16
    row = lambda a: a.reshape(1, -1).astype(f32)

    patches = _extract_patches(pixel_feat, patch)         # (B, L, Kp)
    task_flat = task_feat.reshape(B * T, C)

    # Host-side algebraic folds (f32), then cast matmul weights to bf16.
    wq_f = (params["wq"] * scale).astype(bf16)
    bq_f = row(params["bq"] * scale)
    wk_f = (params["conv_w"] @ params["wk"]).astype(bf16)                 # (Kp, C)
    bk_f = row(params["conv_b"] @ params["wk"] + params["bk"])
    wv_f = (params["conv_w"] @ params["wv"]).astype(bf16)                 # (Kp, C)
    bv_f = row(params["conv_b"] @ params["wv"] + params["bv"])
    wo_b = params["wo"].astype(bf16)
    w1_b = params["w1"].astype(bf16)
    w2_b = params["w2"].astype(bf16)

    vmem = pl.BlockSpec(memory_space=pltpu.MemorySpace.VMEM)   # whole array in VMEM
    hbm = pl.BlockSpec(memory_space=pl.ANY)                    # raw HBM ref (manual DMA)

    kern = functools.partial(_prompt_decoder_kernel, B=B, T=T, num_heads=num_heads)

    out = pl.pallas_call(
        kern,
        out_shape=jax.ShapeDtypeStruct((B * T, C), task_feat.dtype),
        in_specs=[
            vmem, vmem,          # task (B*T, C), patches (B, L, Kp)
            vmem, vmem,          # wq (scaled), bq
            vmem, vmem,          # wk' (conv folded), bk'
            vmem, vmem,          # wv' (conv folded), bv'
            vmem, vmem,          # wo, bo
            vmem, vmem,          # LN1 gamma/beta
            hbm, vmem,           # w1 (HBM, manual overlap DMA), b1
            hbm, vmem,           # w2 (HBM, manual overlap DMA), b2
            vmem, vmem,          # LN2 gamma/beta
        ],
        out_specs=vmem,
        scratch_shapes=[
            pltpu.VMEM((C, Hd), bf16),          # w1 landing buffer
            pltpu.VMEM((Hd, C), bf16),          # w2 landing buffer
            pltpu.VMEM((B * T, C), f32),        # attention output accumulator
            pltpu.SemaphoreType.DMA((2,)),
        ],
    )(task_flat, patches,
      wq_f, bq_f, wk_f, bk_f, wv_f, bv_f, wo_b, row(params["bo"]),
      row(params["g1"]), row(params["be1"]),
      w1_b, row(params["b1"]),
      w2_b, row(params["b2"]),
      row(params["g2"]), row(params["be2"]))

    return out.reshape(B, T, C)


# ------------------------------ pure-JAX reference -----------------------------

def _reference_forward(pixel_feat, task_feat, params, *, patch, num_heads=4):
    HI = jax.lax.Precision.HIGHEST
    mm = lambda a, b: jnp.dot(a, b, precision=HI)
    B = pixel_feat.shape[0]
    _, T, C = task_feat.shape
    hd = C // num_heads

    patches = _extract_patches(pixel_feat, patch)
    pixel = mm(patches, params["conv_w"]) + params["conv_b"]          # (B, L, C)

    q = mm(task_feat, params["wq"]) + params["bq"]
    k = mm(pixel, params["wk"]) + params["bk"]
    v = mm(pixel, params["wv"]) + params["bv"]
    q = q.reshape(B, T, num_heads, hd).transpose(0, 2, 1, 3) * (hd ** -0.5)
    k = k.reshape(B, -1, num_heads, hd).transpose(0, 2, 1, 3)
    v = v.reshape(B, -1, num_heads, hd).transpose(0, 2, 1, 3)
    s = jnp.einsum("bhtd,bhsd->bhts", q, k, precision=HI)
    p = jax.nn.softmax(s, axis=-1)
    o = jnp.einsum("bhts,bhsd->bhtd", p, v, precision=HI)
    o = o.transpose(0, 2, 1, 3).reshape(B, T, C)
    o = mm(o, params["wo"]) + params["bo"]

    def ln(x, g, b, eps=1e-5):
        mu = jnp.mean(x, axis=-1, keepdims=True)
        var = jnp.mean(jnp.square(x - mu), axis=-1, keepdims=True)
        return (x - mu) * jax.lax.rsqrt(var + eps) * g + b

    x = ln(task_feat + o, params["g1"], params["be1"])
    h = jax.nn.relu(mm(x, params["w1"]) + params["b1"])
    y = x + mm(h, params["w2"]) + params["b2"]
    return ln(y, params["g2"], params["be2"])


# ---------------------------------- params -------------------------------------

def init_params(key, Cin, patch, C=128, num_heads=4, mlp_ratio=4):
    Hd = C * mlp_ratio
    Kp = Cin * patch * patch
    ks = iter(jax.random.split(key, 32))
    nrm = lambda shape, std=0.02: std * jax.random.normal(next(ks), shape, jnp.float32)
    return dict(
        conv_w=nrm((Kp, C), 0.1), conv_b=nrm((C,)),
        wq=nrm((C, C)), bq=nrm((C,)),
        wk=nrm((C, C)), bk=nrm((C,)),
        wv=nrm((C, C)), bv=nrm((C,)),
        wo=nrm((C, C)), bo=nrm((C,)),
        g1=1.0 + nrm((C,)), be1=nrm((C,)),
        w1=nrm((C, Hd)), b1=nrm((Hd,)),
        w2=nrm((Hd, C)), b2=nrm((C,)),
        g2=1.0 + nrm((C,)), be2=nrm((C,)),
    )


# ----------------------------------- main ---------------------------------------

if __name__ == "__main__":
    key = jax.random.PRNGKey(0)
    kp, kpix, ktask = jax.random.split(key, 3)

    # Module hyper-params: reduction_channel=128 is the PyTorch default; the
    # Rearrange('b c h w -> b (h w) c', h=7, w=7) forces a 7x7 conv output.
    input_channel = 8
    reduction_factor = 1
    patch = 2 ** reduction_factor            # conv kernel == stride
    C = 128                                  # reduction_channel
    num_heads = 4
    B, T = 2, 8                              # batch, number of task tokens
    Himg = Wimg = 7 * patch                  # -> 7x7 pixel tokens after the conv

    params = init_params(kp, input_channel, patch, C=C, num_heads=num_heads)
    pixel_feat = jax.random.normal(kpix, (B, input_channel, Himg, Wimg), jnp.float32)
    task_feat = jax.random.normal(ktask, (B, T, C), jnp.float32)

    fwd = jax.jit(functools.partial(prompt_decoder_forward,
                                    patch=patch, num_heads=num_heads))
    out = jax.block_until_ready(fwd(pixel_feat, task_feat, params))

    ref = jax.block_until_ready(
        _reference_forward(pixel_feat, task_feat, params,
                           patch=patch, num_heads=num_heads))

    assert out.shape == (B, T, C), out.shape
    assert bool(jnp.all(jnp.isfinite(out)))
    max_err = float(jnp.max(jnp.abs(out - ref)))
    assert max_err < 2e-2, f"max abs err vs reference: {max_err}"
    print("KERNEL_OK")
</pallas_src>

<mosaic_0001>
module attributes {stable_mosaic.version = 11 : i64} {
  func.func @_prompt_decoder_kernel(%arg0: memref<16x128xf32, #tpu.memory_space<vmem>>, %arg1: memref<2x49x32xf32, #tpu.memory_space<vmem>>, %arg2: memref<128x128xbf16, #tpu.memory_space<vmem>>, %arg3: memref<1x128xf32, #tpu.memory_space<vmem>>, %arg4: memref<32x128xbf16, #tpu.memory_space<vmem>>, %arg5: memref<1x128xf32, #tpu.memory_space<vmem>>, %arg6: memref<32x128xbf16, #tpu.memory_space<vmem>>, %arg7: memref<1x128xf32, #tpu.memory_space<vmem>>, %arg8: memref<128x128xbf16, #tpu.memory_space<vmem>>, %arg9: memref<1x128xf32, #tpu.memory_space<vmem>>, %arg10: memref<1x128xf32, #tpu.memory_space<vmem>>, %arg11: memref<1x128xf32, #tpu.memory_space<vmem>>, %arg12: memref<128x512xbf16, #tpu.memory_space<any>>, %arg13: memref<1x512xf32, #tpu.memory_space<vmem>>, %arg14: memref<512x128xbf16, #tpu.memory_space<any>>, %arg15: memref<1x128xf32, #tpu.memory_space<vmem>>, %arg16: memref<1x128xf32, #tpu.memory_space<vmem>>, %arg17: memref<1x128xf32, #tpu.memory_space<vmem>>, %arg18: memref<16x128xf32, #tpu.memory_space<vmem>>, %arg19: memref<128x512xbf16, #tpu.memory_space<vmem>>, %arg20: memref<512x128xbf16, #tpu.memory_space<vmem>>, %arg21: memref<16x128xf32, #tpu.memory_space<vmem>>, %arg22: memref<2x!tpu.dma_semaphore, #tpu.memory_space<semaphore_mem>>) attributes {dimension_semantics = [], scalar_prefetch = 0 : i64, scratch_operands = 4 : i64, tpu.core_type = #tpu.core_type<tc>} {
    %c0_i32 = arith.constant 0 : i32
    %0 = tpu.memref_slice %arg22[%c0_i32] : memref<2x!tpu.dma_semaphore, #tpu.memory_space<semaphore_mem>> -> memref<1x!tpu.dma_semaphore, #tpu.memory_space<semaphore_mem>>
    %1 = tpu.memref_squeeze %0 : memref<1x!tpu.dma_semaphore, #tpu.memory_space<semaphore_mem>> -> memref<!tpu.dma_semaphore, #tpu.memory_space<semaphore_mem>>
    tpu.enqueue_dma source(%arg12 : memref<128x512xbf16, #tpu.memory_space<any>>) target(%arg19 : memref<128x512xbf16, #tpu.memory_space<vmem>>) target_semaphore(%1 : memref<!tpu.dma_semaphore, #tpu.memory_space<semaphore_mem>>)
    %c1_i32 = arith.constant 1 : i32
    %2 = tpu.memref_slice %arg22[%c1_i32] : memref<2x!tpu.dma_semaphore, #tpu.memory_space<semaphore_mem>> -> memref<1x!tpu.dma_semaphore, #tpu.memory_space<semaphore_mem>>
    %3 = tpu.memref_squeeze %2 : memref<1x!tpu.dma_semaphore, #tpu.memory_space<semaphore_mem>> -> memref<!tpu.dma_semaphore, #tpu.memory_space<semaphore_mem>>
    tpu.enqueue_dma source(%arg14 : memref<512x128xbf16, #tpu.memory_space<any>>) target(%arg20 : memref<512x128xbf16, #tpu.memory_space<vmem>>) target_semaphore(%3 : memref<!tpu.dma_semaphore, #tpu.memory_space<semaphore_mem>>)
    %c0 = arith.constant 0 : index
    %c0_0 = arith.constant 0 : index
    %4 = vector.load %arg0[%c0, %c0_0] : memref<16x128xf32, #tpu.memory_space<vmem>>, vector<8x128xf32>
    %5 = arith.truncf %4 : vector<8x128xf32> to vector<8x128xbf16>
    %c0_1 = arith.constant 0 : index
    %c0_2 = arith.constant 0 : index
    %c0_3 = arith.constant 0 : index
    %6 = vector.load %arg1[%c0_1, %c0_2, %c0_3] : memref<2x49x32xf32, #tpu.memory_space<vmem>>, vector<1x49x32xf32>
    %7 = vector.shape_cast %6 : vector<1x49x32xf32> to vector<49x32xf32>
    %8 = arith.truncf %7 : vector<49x32xf32> to vector<49x32xbf16>
    %c0_4 = arith.constant 0 : index
    %c0_5 = arith.constant 0 : index
    %9 = vector.load %arg2[%c0_4, %c0_5] : memref<128x128xbf16, #tpu.memory_space<vmem>>, vector<128x32xbf16>
    %cst = arith.constant dense<0.000000e+00> : vector<8x32xf32>
    %10 = tpu.matmul %5, %9, %cst {dimension_numbers = #tpu.dot_dimension_numbers<[1], [0], [0], [1], [0, 0, 1, 1], [], []>} : vector<8x128xbf16>, vector<128x32xbf16>, vector<8x32xf32> -> vector<8x32xf32>
    %c0_6 = arith.constant 0 : index
    %c0_7 = arith.constant 0 : index
    %11 = vector.load %arg3[%c0_6, %c0_7] : memref<1x128xf32, #tpu.memory_space<vmem>>, vector<1x32xf32>
    %12 = vector.broadcast %11 : vector<1x32xf32> to vector<8x32xf32>
    %13 = arith.addf %10, %12 : vector<8x32xf32>
    %c0_8 = arith.constant 0 : index
    %c0_9 = arith.constant 0 : index
    %14 = vector.load %arg4[%c0_8, %c0_9] : memref<32x128xbf16, #tpu.memory_space<vmem>>, vector<32x32xbf16>
    %cst_10 = arith.constant dense<0.000000e+00> : vector<49x32xf32>
    %15 = tpu.matmul %8, %14, %cst_10 {dimension_numbers = #tpu.dot_dimension_numbers<[1], [0], [0], [1], [0, 0, 1, 1], [], []>} : vector<49x32xbf16>, vector<32x32xbf16>, vector<49x32xf32> -> vector<49x32xf32>
    %c0_11 = arith.constant 0 : index
    %c0_12 = arith.constant 0 : index
    %16 = vector.load %arg5[%c0_11, %c0_12] : memref<1x128xf32, #tpu.memory_space<vmem>>, vector<1x32xf32>
    %17 = vector.broadcast %16 : vector<1x32xf32> to vector<49x32xf32>
    %18 = arith.addf %15, %17 : vector<49x32xf32>
    %c0_13 = arith.constant 0 : index
    %c0_14 = arith.constant 0 : index
    %19 = vector.load %arg6[%c0_13, %c0_14] : memref<32x128xbf16, #tpu.memory_space<vmem>>, vector<32x32xbf16>
    %cst_15 = arith.constant dense<0.000000e+00> : vector<49x32xf32>
    %20 = tpu.matmul %8, %19, %cst_15 {dimension_numbers = #tpu.dot_dimension_numbers<[1], [0], [0], [1], [0, 0, 1, 1], [], []>} : vector<49x32xbf16>, vector<32x32xbf16>, vector<49x32xf32> -> vector<49x32xf32>
    %c0_16 = arith.constant 0 : index
    %c0_17 = arith.constant 0 : index
    %21 = vector.load %arg7[%c0_16, %c0_17] : memref<1x128xf32, #tpu.memory_space<vmem>>, vector<1x32xf32>
    %22 = vector.broadcast %21 : vector<1x32xf32> to vector<49x32xf32>
    %23 = arith.addf %20, %22 : vector<49x32xf32>
    %24 = arith.truncf %13 : vector<8x32xf32> to vector<8x32xbf16>
    %25 = arith.truncf %18 : vector<49x32xf32> to vector<49x32xbf16>
    %cst_18 = arith.constant dense<0.000000e+00> : vector<8x49xf32>
    %26 = tpu.matmul %24, %25, %cst_18 {dimension_numbers = #tpu.dot_dimension_numbers<[1], [1], [0], [0], [0, 0, 1, 0], [], []>} : vector<8x32xbf16>, vector<49x32xbf16>, vector<8x49xf32> -> vector<8x49xf32>
    %cst_19 = arith.constant dense<0xFF800000> : vector<8xf32>
    %27 = vector.multi_reduction <maximumf>, %26, %cst_19 [1] : vector<8x49xf32> to vector<8xf32>
    %28 = vector.shape_cast %27 : vector<8xf32> to vector<8x1xf32>
    %29 = vector.broadcast %28 : vector<8x1xf32> to vector<8x49xf32>
    %30 = arith.subf %26, %29 : vector<8x49xf32>
    %31 = math.exp %30 : vector<8x49xf32>
    %cst_20 = arith.constant dense<0.000000e+00> : vector<8xf32>
    %32 = vector.multi_reduction <add>, %31, %cst_20 [1] : vector<8x49xf32> to vector<8xf32>
    %33 = vector.shape_cast %32 : vector<8xf32> to vector<8x1xf32>
    %34 = tpu.reciprocal %33 {approx = true} : vector<8x1xf32> -> vector<8x1xf32>
    %35 = vector.broadcast %34 : vector<8x1xf32> to vector<8x49xf32>
    %36 = arith.mulf %31, %35 : vector<8x49xf32>
    %37 = arith.truncf %36 : vector<8x49xf32> to vector<8x49xbf16>
    %38 = arith.truncf %23 : vector<49x32xf32> to vector<49x32xbf16>
    %cst_21 = arith.constant dense<0.000000e+00> : vector<8x32xf32>
    %39 = tpu.matmul %37, %38, %cst_21 {dimension_numbers = #tpu.dot_dimension_numbers<[1], [0], [0], [1], [0, 0, 1, 1], [], []>} : vector<8x49xbf16>, vector<49x32xbf16>, vector<8x32xf32> -> vector<8x32xf32>
    %40 = arith.truncf %39 : vector<8x32xf32> to vector<8x32xbf16>
    %c0_22 = arith.constant 0 : index
    %c0_23 = arith.constant 0 : index
    %41 = vector.load %arg8[%c0_22, %c0_23] : memref<128x128xbf16, #tpu.memory_space<vmem>>, vector<32x128xbf16>
    %cst_24 = arith.constant dense<0.000000e+00> : vector<8x128xf32>
    %42 = tpu.matmul %40, %41, %cst_24 {dimension_numbers = #tpu.dot_dimension_numbers<[1], [0], [0], [1], [0, 0, 1, 1], [], []>} : vector<8x32xbf16>, vector<32x128xbf16>, vector<8x128xf32> -> vector<8x128xf32>
    %c0_25 = arith.constant 0 : index
    %c32 = arith.constant 32 : index
    %43 = vector.load %arg2[%c0_25, %c32] : memref<128x128xbf16, #tpu.memory_space<vmem>>, vector<128x32xbf16>
    %cst_26 = arith.constant dense<0.000000e+00> : vector<8x32xf32>
    %44 = tpu.matmul %5, %43, %cst_26 {dimension_numbers = #tpu.dot_dimension_numbers<[1], [0], [0], [1], [0, 0, 1, 1], [], []>} : vector<8x128xbf16>, vector<128x32xbf16>, vector<8x32xf32> -> vector<8x32xf32>
    %c0_27 = arith.constant 0 : index
    %c32_28 = arith.constant 32 : index
    %45 = vector.load %arg3[%c0_27, %c32_28] : memref<1x128xf32, #tpu.memory_space<vmem>>, vector<1x32xf32>
    %46 = vector.broadcast %45 : vector<1x32xf32> to vector<8x32xf32>
    %47 = arith.addf %44, %46 : vector<8x32xf32>
    %c0_29 = arith.constant 0 : index
    %c32_30 = arith.constant 32 : index
    %48 = vector.load %arg4[%c0_29, %c32_30] : memref<32x128xbf16, #tpu.memory_space<vmem>>, vector<32x32xbf16>
    %cst_31 = arith.constant dense<0.000000e+00> : vector<49x32xf32>
    %49 = tpu.matmul %8, %48, %cst_31 {dimension_numbers = #tpu.dot_dimension_numbers<[1], [0], [0], [1], [0, 0, 1, 1], [], []>} : vector<49x32xbf16>, vector<32x32xbf16>, vector<49x32xf32> -> vector<49x32xf32>
    %c0_32 = arith.constant 0 : index
    %c32_33 = arith.constant 32 : index
    %50 = vector.load %arg5[%c0_32, %c32_33] : memref<1x128xf32, #tpu.memory_space<vmem>>, vector<1x32xf32>
    %51 = vector.broadcast %50 : vector<1x32xf32> to vector<49x32xf32>
    %52 = arith.addf %49, %51 : vector<49x32xf32>
    %c0_34 = arith.constant 0 : index
    %c32_35 = arith.constant 32 : index
    %53 = vector.load %arg6[%c0_34, %c32_35] : memref<32x128xbf16, #tpu.memory_space<vmem>>, vector<32x32xbf16>
    %cst_36 = arith.constant dense<0.000000e+00> : vector<49x32xf32>
    %54 = tpu.matmul %8, %53, %cst_36 {dimension_numbers = #tpu.dot_dimension_numbers<[1], [0], [0], [1], [0, 0, 1, 1], [], []>} : vector<49x32xbf16>, vector<32x32xbf16>, vector<49x32xf32> -> vector<49x32xf32>
    %c0_37 = arith.constant 0 : index
    %c32_38 = arith.constant 32 : index
    %55 = vector.load %arg7[%c0_37, %c32_38] : memref<1x128xf32, #tpu.memory_space<vmem>>, vector<1x32xf32>
    %56 = vector.broadcast %55 : vector<1x32xf32> to vector<49x32xf32>
    %57 = arith.addf %54, %56 : vector<49x32xf32>
    %58 = arith.truncf %47 : vector<8x32xf32> to vector<8x32xbf16>
    %59 = arith.truncf %52 : vector<49x32xf32> to vector<49x32xbf16>
    %cst_39 = arith.constant dense<0.000000e+00> : vector<8x49xf32>
    %60 = tpu.matmul %58, %59, %cst_39 {dimension_numbers = #tpu.dot_dimension_numbers<[1], [1], [0], [0], [0, 0, 1, 0], [], []>} : vector<8x32xbf16>, vector<49x32xbf16>, vector<8x49xf32> -> vector<8x49xf32>
    %cst_40 = arith.constant dense<0xFF800000> : vector<8xf32>
    %61 = vector.multi_reduction <maximumf>, %60, %cst_40 [1] : vector<8x49xf32> to vector<8xf32>
    %62 = vector.shape_cast %61 : vector<8xf32> to vector<8x1xf32>
    %63 = vector.broadcast %62 : vector<8x1xf32> to vector<8x49xf32>
    %64 = arith.subf %60, %63 : vector<8x49xf32>
    %65 = math.exp %64 : vector<8x49xf32>
    %cst_41 = arith.constant dense<0.000000e+00> : vector<8xf32>
    %66 = vector.multi_reduction <add>, %65, %cst_41 [1] : vector<8x49xf32> to vector<8xf32>
    %67 = vector.shape_cast %66 : vector<8xf32> to vector<8x1xf32>
    %68 = tpu.reciprocal %67 {approx = true} : vector<8x1xf32> -> vector<8x1xf32>
    %69 = vector.broadcast %68 : vector<8x1xf32> to vector<8x49xf32>
    %70 = arith.mulf %65, %69 : vector<8x49xf32>
    %71 = arith.truncf %70 : vector<8x49xf32> to vector<8x49xbf16>
    %72 = arith.truncf %57 : vector<49x32xf32> to vector<49x32xbf16>
    %cst_42 = arith.constant dense<0.000000e+00> : vector<8x32xf32>
    %73 = tpu.matmul %71, %72, %cst_42 {dimension_numbers = #tpu.dot_dimension_numbers<[1], [0], [0], [1], [0, 0, 1, 1], [], []>} : vector<8x49xbf16>, vector<49x32xbf16>, vector<8x32xf32> -> vector<8x32xf32>
    %74 = arith.truncf %73 : vector<8x32xf32> to vector<8x32xbf16>
    %c32_43 = arith.constant 32 : index
    %c0_44 = arith.constant 0 : index
    %75 = vector.load %arg8[%c32_43, %c0_44] : memref<128x128xbf16, #tpu.memory_space<vmem>>, vector<32x128xbf16>
    %cst_45 = arith.constant dense<0.000000e+00> : vector<8x128xf32>
    %76 = tpu.matmul %74, %75, %cst_45 {dimension_numbers = #tpu.dot_dimension_numbers<[1], [0], [0], [1], [0, 0, 1, 1], [], []>} : vector<8x32xbf16>, vector<32x128xbf16>, vector<8x128xf32> -> vector<8x128xf32>
    %77 = arith.addf %42, %76 : vector<8x128xf32>
    %c0_46 = arith.constant 0 : index
    %c64 = arith.constant 64 : index
    %78 = vector.load %arg2[%c0_46, %c64] : memref<128x128xbf16, #tpu.memory_space<vmem>>, vector<128x32xbf16>
    %cst_47 = arith.constant dense<0.000000e+00> : vector<8x32xf32>
    %79 = tpu.matmul %5, %78, %cst_47 {dimension_numbers = #tpu.dot_dimension_numbers<[1], [0], [0], [1], [0, 0, 1, 1], [], []>} : vector<8x128xbf16>, vector<128x32xbf16>, vector<8x32xf32> -> vector<8x32xf32>
    %c0_48 = arith.constant 0 : index
    %c64_49 = arith.constant 64 : index
    %80 = vector.load %arg3[%c0_48, %c64_49] : memref<1x128xf32, #tpu.memory_space<vmem>>, vector<1x32xf32>
    %81 = vector.broadcast %80 : vector<1x32xf32> to vector<8x32xf32>
    %82 = arith.addf %79, %81 : vector<8x32xf32>
    %c0_50 = arith.constant 0 : index
    %c64_51 = arith.constant 64 : index
    %83 = vector.load %arg4[%c0_50, %c64_51] : memref<32x128xbf16, #tpu.memory_space<vmem>>, vector<32x32xbf16>
    %cst_52 = arith.constant dense<0.000000e+00> : vector<49x32xf32>
    %84 = tpu.matmul %8, %83, %cst_52 {dimension_numbers = #tpu.dot_dimension_numbers<[1], [0], [0], [1], [0, 0, 1, 1], [], []>} : vector<49x32xbf16>, vector<32x32xbf16>, vector<49x32xf32> -> vector<49x32xf32>
    %c0_53 = arith.constant 0 : index
    %c64_54 = arith.constant 64 : index
    %85 = vector.load %arg5[%c0_53, %c64_54] : memref<1x128xf32, #tpu.memory_space<vmem>>, vector<1x32xf32>
    %86 = vector.broadcast %85 : vector<1x32xf32> to vector<49x32xf32>
    %87 = arith.addf %84, %86 : vector<49x32xf32>
    %c0_55 = arith.constant 0 : index
    %c64_56 = arith.constant 64 : index
    %88 = vector.load %arg6[%c0_55, %c64_56] : memref<32x128xbf16, #tpu.memory_space<vmem>>, vector<32x32xbf16>
    %cst_57 = arith.constant dense<0.000000e+00> : vector<49x32xf32>
    %89 = tpu.matmul %8, %88, %cst_57 {dimension_numbers = #tpu.dot_dimension_numbers<[1], [0], [0], [1], [0, 0, 1, 1], [], []>} : vector<49x32xbf16>, vector<32x32xbf16>, vector<49x32xf32> -> vector<49x32xf32>
    %c0_58 = arith.constant 0 : index
    %c64_59 = arith.constant 64 : index
    %90 = vector.load %arg7[%c0_58, %c64_59] : memref<1x128xf32, #tpu.memory_space<vmem>>, vector<1x32xf32>
    %91 = vector.broadcast %90 : vector<1x32xf32> to vector<49x32xf32>
    %92 = arith.addf %89, %91 : vector<49x32xf32>
    %93 = arith.truncf %82 : vector<8x32xf32> to vector<8x32xbf16>
    %94 = arith.truncf %87 : vector<49x32xf32> to vector<49x32xbf16>
    %cst_60 = arith.constant dense<0.000000e+00> : vector<8x49xf32>
    %95 = tpu.matmul %93, %94, %cst_60 {dimension_numbers = #tpu.dot_dimension_numbers<[1], [1], [0], [0], [0, 0, 1, 0], [], []>} : vector<8x32xbf16>, vector<49x32xbf16>, vector<8x49xf32> -> vector<8x49xf32>
    %cst_61 = arith.constant dense<0xFF800000> : vector<8xf32>
    %96 = vector.multi_reduction <maximumf>, %95, %cst_61 [1] : vector<8x49xf32> to vector<8xf32>
    %97 = vector.shape_cast %96 : vector<8xf32> to vector<8x1xf32>
    %98 = vector.broadcast %97 : vector<8x1xf32> to vector<8x49xf32>
    %99 = arith.subf %95, %98 : vector<8x49xf32>
    %100 = math.exp %99 : vector<8x49xf32>
    %cst_62 = arith.constant dense<0.000000e+00> : vector<8xf32>
    %101 = vector.multi_reduction <add>, %100, %cst_62 [1] : vector<8x49xf32> to vector<8xf32>
    %102 = vector.shape_cast %101 : vector<8xf32> to vector<8x1xf32>
    %103 = tpu.reciprocal %102 {approx = true} : vector<8x1xf32> -> vector<8x1xf32>
    %104 = vector.broadcast %103 : vector<8x1xf32> to vector<8x49xf32>
    %105 = arith.mulf %100, %104 : vector<8x49xf32>
    %106 = arith.truncf %105 : vector<8x49xf32> to vector<8x49xbf16>
    %107 = arith.truncf %92 : vector<49x32xf32> to vector<49x32xbf16>
    %cst_63 = arith.constant dense<0.000000e+00> : vector<8x32xf32>
    %108 = tpu.matmul %106, %107, %cst_63 {dimension_numbers = #tpu.dot_dimension_numbers<[1], [0], [0], [1], [0, 0, 1, 1], [], []>} : vector<8x49xbf16>, vector<49x32xbf16>, vector<8x32xf32> -> vector<8x32xf32>
    %109 = arith.truncf %108 : vector<8x32xf32> to vector<8x32xbf16>
    %c64_64 = arith.constant 64 : index
    %c0_65 = arith.constant 0 : index
    %110 = vector.load %arg8[%c64_64, %c0_65] : memref<128x128xbf16, #tpu.memory_space<vmem>>, vector<32x128xbf16>
    %cst_66 = arith.constant dense<0.000000e+00> : vector<8x128xf32>
    %111 = tpu.matmul %109, %110, %cst_66 {dimension_numbers = #tpu.dot_dimension_numbers<[1], [0], [0], [1], [0, 0, 1, 1], [], []>} : vector<8x32xbf16>, vector<32x128xbf16>, vector<8x128xf32> -> vector<8x128xf32>
    %112 = arith.addf %77, %111 : vector<8x128xf32>
    %c0_67 = arith.constant 0 : index
    %c96 = arith.constant 96 : index
    %113 = vector.load %arg2[%c0_67, %c96] : memref<128x128xbf16, #tpu.memory_space<vmem>>, vector<128x32xbf16>
    %cst_68 = arith.constant dense<0.000000e+00> : vector<8x32xf32>
    %114 = tpu.matmul %5, %113, %cst_68 {dimension_numbers = #tpu.dot_dimension_numbers<[1], [0], [0], [1], [0, 0, 1, 1], [], []>} : vector<8x128xbf16>, vector<128x32xbf16>, vector<8x32xf32> -> vector<8x32xf32>
    %c0_69 = arith.constant 0 : index
    %c96_70 = arith.constant 96 : index
    %115 = vector.load %arg3[%c0_69, %c96_70] : memref<1x128xf32, #tpu.memory_space<vmem>>, vector<1x32xf32>
    %116 = vector.broadcast %115 : vector<1x32xf32> to vector<8x32xf32>
    %117 = arith.addf %114, %116 : vector<8x32xf32>
    %c0_71 = arith.constant 0 : index
    %c96_72 = arith.constant 96 : index
    %118 = vector.load %arg4[%c0_71, %c96_72] : memref<32x128xbf16, #tpu.memory_space<vmem>>, vector<32x32xbf16>
    %cst_73 = arith.constant dense<0.000000e+00> : vector<49x32xf32>
    %119 = tpu.matmul %8, %118, %cst_73 {dimension_numbers = #tpu.dot_dimension_numbers<[1], [0], [0], [1], [0, 0, 1, 1], [], []>} : vector<49x32xbf16>, vector<32x32xbf16>, vector<49x32xf32> -> vector<49x32xf32>
    %c0_74 = arith.constant 0 : index
    %c96_75 = arith.constant 96 : index
    %120 = vector.load %arg5[%c0_74, %c96_75] : memref<1x128xf32, #tpu.memory_space<vmem>>, vector<1x32xf32>
    %121 = vector.broadcast %120 : vector<1x32xf32> to vector<49x32xf32>
    %122 = arith.addf %119, %121 : vector<49x32xf32>
    %c0_76 = arith.constant 0 : index
    %c96_77 = arith.constant 96 : index
    %123 = vector.load %arg6[%c0_76, %c96_77] : memref<32x128xbf16, #tpu.memory_space<vmem>>, vector<32x32xbf16>
    %cst_78 = arith.constant dense<0.000000e+00> : vector<49x32xf32>
    %124 = tpu.matmul %8, %123, %cst_78 {dimension_numbers = #tpu.dot_dimension_numbers<[1], [0], [0], [1], [0, 0, 1, 1], [], []>} : vector<49x32xbf16>, vector<32x32xbf16>, vector<49x32xf32> -> vector<49x32xf32>
    %c0_79 = arith.constant 0 : index
    %c96_80 = arith.constant 96 : index
    %125 = vector.load %arg7[%c0_79, %c96_80] : memref<1x128xf32, #tpu.memory_space<vmem>>, vector<1x32xf32>
    %126 = vector.broadcast %125 : vector<1x32xf32> to vector<49x32xf32>
    %127 = arith.addf %124, %126 : vector<49x32xf32>
    %128 = arith.truncf %117 : vector<8x32xf32> to vector<8x32xbf16>
    %129 = arith.truncf %122 : vector<49x32xf32> to vector<49x32xbf16>
    %cst_81 = arith.constant dense<0.000000e+00> : vector<8x49xf32>
    %130 = tpu.matmul %128, %129, %cst_81 {dimension_numbers = #tpu.dot_dimension_numbers<[1], [1], [0], [0], [0, 0, 1, 0], [], []>} : vector<8x32xbf16>, vector<49x32xbf16>, vector<8x49xf32> -> vector<8x49xf32>
    %cst_82 = arith.constant dense<0xFF800000> : vector<8xf32>
    %131 = vector.multi_reduction <maximumf>, %130, %cst_82 [1] : vector<8x49xf32> to vector<8xf32>
    %132 = vector.shape_cast %131 : vector<8xf32> to vector<8x1xf32>
    %133 = vector.broadcast %132 : vector<8x1xf32> to vector<8x49xf32>
    %134 = arith.subf %130, %133 : vector<8x49xf32>
    %135 = math.exp %134 : vector<8x49xf32>
    %cst_83 = arith.constant dense<0.000000e+00> : vector<8xf32>
    %136 = vector.multi_reduction <add>, %135, %cst_83 [1] : vector<8x49xf32> to vector<8xf32>
    %137 = vector.shape_cast %136 : vector<8xf32> to vector<8x1xf32>
    %138 = tpu.reciprocal %137 {approx = true} : vector<8x1xf32> -> vector<8x1xf32>
    %139 = vector.broadcast %138 : vector<8x1xf32> to vector<8x49xf32>
    %140 = arith.mulf %135, %139 : vector<8x49xf32>
    %141 = arith.truncf %140 : vector<8x49xf32> to vector<8x49xbf16>
    %142 = arith.truncf %127 : vector<49x32xf32> to vector<49x32xbf16>
    %cst_84 = arith.constant dense<0.000000e+00> : vector<8x32xf32>
    %143 = tpu.matmul %141, %142, %cst_84 {dimension_numbers = #tpu.dot_dimension_numbers<[1], [0], [0], [1], [0, 0, 1, 1], [], []>} : vector<8x49xbf16>, vector<49x32xbf16>, vector<8x32xf32> -> vector<8x32xf32>
    %144 = arith.truncf %143 : vector<8x32xf32> to vector<8x32xbf16>
    %c96_85 = arith.constant 96 : index
    %c0_86 = arith.constant 0 : index
    %145 = vector.load %arg8[%c96_85, %c0_86] : memref<128x128xbf16, #tpu.memory_space<vmem>>, vector<32x128xbf16>
    %cst_87 = arith.constant dense<0.000000e+00> : vector<8x128xf32>
    %146 = tpu.matmul %144, %145, %cst_87 {dimension_numbers = #tpu.dot_dimension_numbers<[1], [0], [0], [1], [0, 0, 1, 1], [], []>} : vector<8x32xbf16>, vector<32x128xbf16>, vector<8x128xf32> -> vector<8x128xf32>
    %147 = arith.addf %112, %146 : vector<8x128xf32>
    %c0_88 = arith.constant 0 : index
    %c0_89 = arith.constant 0 : index
    %148 = vector.load %arg9[%c0_88, %c0_89] : memref<1x128xf32, #tpu.memory_space<vmem>>, vector<1x128xf32>
    %149 = vector.broadcast %148 : vector<1x128xf32> to vector<8x128xf32>
    %150 = arith.addf %147, %149 : vector<8x128xf32>
    %c0_90 = arith.constant 0 : index
    %c0_91 = arith.constant 0 : index
    %151 = vector.load %arg21[%c0_90, %c0_91] : memref<16x128xf32, #tpu.memory_space<vmem>>, vector<8x128xf32>
    tpu.vector_store %arg21[%c0_90, %c0_91], %150 {strides = array<i32>} : memref<16x128xf32, #tpu.memory_space<vmem>>, vector<8x128xf32>,
    %c8 = arith.constant 8 : index
    %c0_92 = arith.constant 0 : index
    %152 = vector.load %arg0[%c8, %c0_92] : memref<16x128xf32, #tpu.memory_space<vmem>>, vector<8x128xf32>
    %153 = arith.truncf %152 : vector<8x128xf32> to vector<8x128xbf16>
    %c1 = arith.constant 1 : index
    %c0_93 = arith.constant 0 : index
    %c0_94 = arith.constant 0 : index
    %154 = vector.load %arg1[%c1, %c0_93, %c0_94] : memref<2x49x32xf32, #tpu.memory_space<vmem>>, vector<1x49x32xf32>
    %155 = vector.shape_cast %154 : vector<1x49x32xf32> to vector<49x32xf32>
    %156 = arith.truncf %155 : vector<49x32xf32> to vector<49x32xbf16>
    %c0_95 = arith.constant 0 : index
    %c0_96 = arith.constant 0 : index
    %157 = vector.load %arg2[%c0_95, %c0_96] : memref<128x128xbf16, #tpu.memory_space<vmem>>, vector<128x32xbf16>
    %cst_97 = arith.constant dense<0.000000e+00> : vector<8x32xf32>
    %158 = tpu.matmul %153, %157, %cst_97 {dimension_numbers = #tpu.dot_dimension_numbers<[1], [0], [0], [1], [0, 0, 1, 1], [], []>} : vector<8x128xbf16>, vector<128x32xbf16>, vector<8x32xf32> -> vector<8x32xf32>
    %c0_98 = arith.constant 0 : index
    %c0_99 = arith.constant 0 : index
    %159 = vector.load %arg3[%c0_98, %c0_99] : memref<1x128xf32, #tpu.memory_space<vmem>>, vector<1x32xf32>
    %160 = vector.broadcast %159 : vector<1x32xf32> to vector<8x32xf32>
    %161 = arith.addf %158, %160 : vector<8x32xf32>
    %c0_100 = arith.constant 0 : index
    %c0_101 = arith.constant 0 : index
    %162 = vector.load %arg4[%c0_100, %c0_101] : memref<32x128xbf16, #tpu.memory_space<vmem>>, vector<32x32xbf16>
    %cst_102 = arith.constant dense<0.000000e+00> : vector<49x32xf32>
    %163 = tpu.matmul %156, %162, %cst_102 {dimension_numbers = #tpu.dot_dimension_numbers<[1], [0], [0], [1], [0, 0, 1, 1], [], []>} : vector<49x32xbf16>, vector<32x32xbf16>, vector<49x32xf32> -> vector<49x32xf32>
    %c0_103 = arith.constant 0 : index
    %c0_104 = arith.constant 0 : index
    %164 = vector.load %arg5[%c0_103, %c0_104] : memref<1x128xf32, #tpu.memory_space<vmem>>, vector<1x32xf32>
    %165 = vector.broadcast %164 : vector<1x32xf32> to vector<49x32xf32>
    %166 = arith.addf %163, %165 : vector<49x32xf32>
    %c0_105 = arith.constant 0 : index
    %c0_106 = arith.constant 0 : index
    %167 = vector.load %arg6[%c0_105, %c0_106] : memref<32x128xbf16, #tpu.memory_space<vmem>>, vector<32x32xbf16>
    %cst_107 = arith.constant dense<0.000000e+00> : vector<49x32xf32>
    %168 = tpu.matmul %156, %167, %cst_107 {dimension_numbers = #tpu.dot_dimension_numbers<[1], [0], [0], [1], [0, 0, 1, 1], [], []>} : vector<49x32xbf16>, vector<32x32xbf16>, vector<49x32xf32> -> vector<49x32xf32>
    %c0_108 = arith.constant 0 : index
    %c0_109 = arith.constant 0 : index
    %169 = vector.load %arg7[%c0_108, %c0_109] : memref<1x128xf32, #tpu.memory_space<vmem>>, vector<1x32xf32>
    %170 = vector.broadcast %169 : vector<1x32xf32> to vector<49x32xf32>
    %171 = arith.addf %168, %170 : vector<49x32xf32>
    %172 = arith.truncf %161 : vector<8x32xf32> to vector<8x32xbf16>
    %173 = arith.truncf %166 : vector<49x32xf32> to vector<49x32xbf16>
    %cst_110 = arith.constant dense<0.000000e+00> : vector<8x49xf32>
    %174 = tpu.matmul %172, %173, %cst_110 {dimension_numbers = #tpu.dot_dimension_numbers<[1], [1], [0], [0], [0, 0, 1, 0], [], []>} : vector<8x32xbf16>, vector<49x32xbf16>, vector<8x49xf32> -> vector<8x49xf32>
    %cst_111 = arith.constant dense<0xFF800000> : vector<8xf32>
    %175 = vector.multi_reduction <maximumf>, %174, %cst_111 [1] : vector<8x49xf32> to vector<8xf32>
    %176 = vector.shape_cast %175 : vector<8xf32> to vector<8x1xf32>
    %177 = vector.broadcast %176 : vector<8x1xf32> to vector<8x49xf32>
    %178 = arith.subf %174, %177 : vector<8x49xf32>
    %179 = math.exp %178 : vector<8x49xf32>
    %cst_112 = arith.constant dense<0.000000e+00> : vector<8xf32>
    %180 = vector.multi_reduction <add>, %179, %cst_112 [1] : vector<8x49xf32> to vector<8xf32>
    %181 = vector.shape_cast %180 : vector<8xf32> to vector<8x1xf32>
    %182 = tpu.reciprocal %181 {approx = true} : vector<8x1xf32> -> vector<8x1xf32>
    %183 = vector.broadcast %182 : vector<8x1xf32> to vector<8x49xf32>
    %184 = arith.mulf %179, %183 : vector<8x49xf32>
    %185 = arith.truncf %184 : vector<8x49xf32> to vector<8x49xbf16>
    %186 = arith.truncf %171 : vector<49x32xf32> to vector<49x32xbf16>
    %cst_113 = arith.constant dense<0.000000e+00> : vector<8x32xf32>
    %187 = tpu.matmul %185, %186, %cst_113 {dimension_numbers = #tpu.dot_dimension_numbers<[1], [0], [0], [1], [0, 0, 1, 1], [], []>} : vector<8x49xbf16>, vector<49x32xbf16>, vector<8x32xf32> -> vector<8x32xf32>
    %188 = arith.truncf %187 : vector<8x32xf32> to vector<8x32xbf16>
    %c0_114 = arith.constant 0 : index
    %c0_115 = arith.constant 0 : index
    %189 = vector.load %arg8[%c0_114, %c0_115] : memref<128x128xbf16, #tpu.memory_space<vmem>>, vector<32x128xbf16>
    %cst_116 = arith.constant dense<0.000000e+00> : vector<8x128xf32>
    %190 = tpu.matmul %188, %189, %cst_116 {dimension_numbers = #tpu.dot_dimension_numbers<[1], [0], [0], [1], [0, 0, 1, 1], [], []>} : vector<8x32xbf16>, vector<32x128xbf16>, vector<8x128xf32> -> vector<8x128xf32>
    %c0_117 = arith.constant 0 : index
    %c32_118 = arith.constant 32 : index
    %191 = vector.load %arg2[%c0_117, %c32_118] : memref<128x128xbf16, #tpu.memory_space<vmem>>, vector<128x32xbf16>
    %cst_119 = arith.constant dense<0.000000e+00> : vector<8x32xf32>
    %192 = tpu.matmul %153, %191, %cst_119 {dimension_numbers = #tpu.dot_dimension_numbers<[1], [0], [0], [1], [0, 0, 1, 1], [], []>} : vector<8x128xbf16>, vector<128x32xbf16>, vector<8x32xf32> -> vector<8x32xf32>
    %c0_120 = arith.constant 0 : index
    %c32_121 = arith.constant 32 : index
    %193 = vector.load %arg3[%c0_120, %c32_121] : memref<1x128xf32, #tpu.memory_space<vmem>>, vector<1x32xf32>
    %194 = vector.broadcast %193 : vector<1x32xf32> to vector<8x32xf32>
    %195 = arith.addf %192, %194 : vector<8x32xf32>
    %c0_122 = arith.constant 0 : index
    %c32_123 = arith.constant 32 : index
    %196 = vector.load %arg4[%c0_122, %c32_123] : memref<32x128xbf16, #tpu.memory_space<vmem>>, vector<32x32xbf16>
    %cst_124 = arith.constant dense<0.000000e+00> : vector<49x32xf32>
    %197 = tpu.matmul %156, %196, %cst_124 {dimension_numbers = #tpu.dot_dimension_numbers<[1], [0], [0], [1], [0, 0, 1, 1], [], []>} : vector<49x32xbf16>, vector<32x32xbf16>, vector<49x32xf32> -> vector<49x32xf32>
    %c0_125 = arith.constant 0 : index
    %c32_126 = arith.constant 32 : index
    %198 = vector.load %arg5[%c0_125, %c32_126] : memref<1x128xf32, #tpu.memory_space<vmem>>, vector<1x32xf32>
    %199 = vector.broadcast %198 : vector<1x32xf32> to vector<49x32xf32>
    %200 = arith.addf %197, %199 : vector<49x32xf32>
    %c0_127 = arith.constant 0 : index
    %c32_128 = arith.constant 32 : index
    %201 = vector.load %arg6[%c0_127, %c32_128] : memref<32x128xbf16, #tpu.memory_space<vmem>>, vector<32x32xbf16>
    %cst_129 = arith.constant dense<0.000000e+00> : vector<49x32xf32>
    %202 = tpu.matmul %156, %201, %cst_129 {dimension_numbers = #tpu.dot_dimension_numbers<[1], [0], [0], [1], [0, 0, 1, 1], [], []>} : vector<49x32xbf16>, vector<32x32xbf16>, vector<49x32xf32> -> vector<49x32xf32>
    %c0_130 = arith.constant 0 : index
    %c32_131 = arith.constant 32 : index
    %203 = vector.load %arg7[%c0_130, %c32_131] : memref<1x128xf32, #tpu.memory_space<vmem>>, vector<1x32xf32>
    %204 = vector.broadcast %203 : vector<1x32xf32> to vector<49x32xf32>
    %205 = arith.addf %202, %204 : vector<49x32xf32>
    %206 = arith.truncf %195 : vector<8x32xf32> to vector<8x32xbf16>
    %207 = arith.truncf %200 : vector<49x32xf32> to vector<49x32xbf16>
    %cst_132 = arith.constant dense<0.000000e+00> : vector<8x49xf32>
    %208 = tpu.matmul %206, %207, %cst_132 {dimension_numbers = #tpu.dot_dimension_numbers<[1], [1], [0], [0], [0, 0, 1, 0], [], []>} : vector<8x32xbf16>, vector<49x32xbf16>, vector<8x49xf32> -> vector<8x49xf32>
    %cst_133 = arith.constant dense<0xFF800000> : vector<8xf32>
    %209 = vector.multi_reduction <maximumf>, %208, %cst_133 [1] : vector<8x49xf32> to vector<8xf32>
    %210 = vector.shape_cast %209 : vector<8xf32> to vector<8x1xf32>
    %211 = vector.broadcast %210 : vector<8x1xf32> to vector<8x49xf32>
    %212 = arith.subf %208, %211 : vector<8x49xf32>
    %213 = math.exp %212 : vector<8x49xf32>
    %cst_134 = arith.constant dense<0.000000e+00> : vector<8xf32>
    %214 = vector.multi_reduction <add>, %213, %cst_134 [1] : vector<8x49xf32> to vector<8xf32>
    %215 = vector.shape_cast %214 : vector<8xf32> to vector<8x1xf32>
    %216 = tpu.reciprocal %215 {approx = true} : vector<8x1xf32> -> vector<8x1xf32>
    %217 = vector.broadcast %216 : vector<8x1xf32> to vector<8x49xf32>
    %218 = arith.mulf %213, %217 : vector<8x49xf32>
    %219 = arith.truncf %218 : vector<8x49xf32> to vector<8x49xbf16>
    %220 = arith.truncf %205 : vector<49x32xf32> to vector<49x32xbf16>
    %cst_135 = arith.constant dense<0.000000e+00> : vector<8x32xf32>
    %221 = tpu.matmul %219, %220, %cst_135 {dimension_numbers = #tpu.dot_dimension_numbers<[1], [0], [0], [1], [0, 0, 1, 1], [], []>} : vector<8x49xbf16>, vector<49x32xbf16>, vector<8x32xf32> -> vector<8x32xf32>
    %222 = arith.truncf %221 : vector<8x32xf32> to vector<8x32xbf16>
    %c32_136 = arith.constant 32 : index
    %c0_137 = arith.constant 0 : index
    %223 = vector.load %arg8[%c32_136, %c0_137] : memref<128x128xbf16, #tpu.memory_space<vmem>>, vector<32x128xbf16>
    %cst_138 = arith.constant dense<0.000000e+00> : vector<8x128xf32>
    %224 = tpu.matmul %222, %223, %cst_138 {dimension_numbers = #tpu.dot_dimension_numbers<[1], [0], [0], [1], [0, 0, 1, 1], [], []>} : vector<8x32xbf16>, vector<32x128xbf16>, vector<8x128xf32> -> vector<8x128xf32>
    %225 = arith.addf %190, %224 : vector<8x128xf32>
    %c0_139 = arith.constant 0 : index
    %c64_140 = arith.constant 64 : index
    %226 = vector.load %arg2[%c0_139, %c64_140] : memref<128x128xbf16, #tpu.memory_space<vmem>>, vector<128x32xbf16>
    %cst_141 = arith.constant dense<0.000000e+00> : vector<8x32xf32>
    %227 = tpu.matmul %153, %226, %cst_141 {dimension_numbers = #tpu.dot_dimension_numbers<[1], [0], [0], [1], [0, 0, 1, 1], [], []>} : vector<8x128xbf16>, vector<128x32xbf16>, vector<8x32xf32> -> vector<8x32xf32>
    %c0_142 = arith.constant 0 : index
    %c64_143 = arith.constant 64 : index
    %228 = vector.load %arg3[%c0_142, %c64_143] : memref<1x128xf32, #tpu.memory_space<vmem>>, vector<1x32xf32>
    %229 = vector.broadcast %228 : vector<1x32xf32> to vector<8x32xf32>
    %230 = arith.addf %227, %229 : vector<8x32xf32>
    %c0_144 = arith.constant 0 : index
    %c64_145 = arith.constant 64 : index
    %231 = vector.load %arg4[%c0_144, %c64_145] : memref<32x128xbf16, #tpu.memory_space<vmem>>, vector<32x32xbf16>
    %cst_146 = arith.constant dense<0.000000e+00> : vector<49x32xf32>
    %232 = tpu.matmul %156, %231, %cst_146 {dimension_numbers = #tpu.dot_dimension_numbers<[1], [0], [0], [1], [0, 0, 1, 1], [], []>} : vector<49x32xbf16>, vector<32x32xbf16>, vector<49x32xf32> -> vector<49x32xf32>
    %c0_147 = arith.constant 0 : index
    %c64_148 = arith.constant 64 : index
    %233 = vector.load %arg5[%c0_147, %c64_148] : memref<1x128xf32, #tpu.memory_space<vmem>>, vector<1x32xf32>
    %234 = vector.broadcast %233 : vector<1x32xf32> to vector<49x32xf32>
    %235 = arith.addf %232, %234 : vector<49x32xf32>
    %c0_149 = arith.constant 0 : index
    %c64_150 = arith.constant 64 : index
    %236 = vector.load %arg6[%c0_149, %c64_150] : memref<32x128xbf16, #tpu.memory_space<vmem>>, vector<32x32xbf16>
    %cst_151 = arith.constant dense<0.000000e+00> : vector<49x32xf32>
    %237 = tpu.matmul %156, %236, %cst_151 {dimension_numbers = #tpu.dot_dimension_numbers<[1], [0], [0], [1], [0, 0, 1, 1], [], []>} : vector<49x32xbf16>, vector<32x32xbf16>, vector<49x32xf32> -> vector<49x32xf32>
    %c0_152 = arith.constant 0 : index
    %c64_153 = arith.constant 64 : index
    %238 = vector.load %arg7[%c0_152, %c64_153] : memref<1x128xf32, #tpu.memory_space<vmem>>, vector<1x32xf32>
    %239 = vector.broadcast %238 : vector<1x32xf32> to vector<49x32xf32>
    %240 = arith.addf %237, %239 : vector<49x32xf32>
    %241 = arith.truncf %230 : vector<8x32xf32> to vector<8x32xbf16>
    %242 = arith.truncf %235 : vector<49x32xf32> to vector<49x32xbf16>
    %cst_154 = arith.constant dense<0.000000e+00> : vector<8x49xf32>
    %243 = tpu.matmul %241, %242, %cst_154 {dimension_numbers = #tpu.dot_dimension_numbers<[1], [1], [0], [0], [0, 0, 1, 0], [], []>} : vector<8x32xbf16>, vector<49x32xbf16>, vector<8x49xf32> -> vector<8x49xf32>
    %cst_155 = arith.constant dense<0xFF800000> : vector<8xf32>
    %244 = vector.multi_reduction <maximumf>, %243, %cst_155 [1] : vector<8x49xf32> to vector<8xf32>
    %245 = vector.shape_cast %244 : vector<8xf32> to vector<8x1xf32>
    %246 = vector.broadcast %245 : vector<8x1xf32> to vector<8x49xf32>
    %247 = arith.subf %243, %246 : vector<8x49xf32>
    %248 = math.exp %247 : vector<8x49xf32>
    %cst_156 = arith.constant dense<0.000000e+00> : vector<8xf32>
    %249 = vector.multi_reduction <add>, %248, %cst_156 [1] : vector<8x49xf32> to vector<8xf32>
    %250 = vector.shape_cast %249 : vector<8xf32> to vector<8x1xf32>
    %251 = tpu.reciprocal %250 {approx = true} : vector<8x1xf32> -> vector<8x1xf32>
    %252 = vector.broadcast %251 : vector<8x1xf32> to vector<8x49xf32>
    %253 = arith.mulf %248, %252 : vector<8x49xf32>
    %254 = arith.truncf %253 : vector<8x49xf32> to vector<8x49xbf16>
    %255 = arith.truncf %240 : vector<49x32xf32> to vector<49x32xbf16>
    %cst_157 = arith.constant dense<0.000000e+00> : vector<8x32xf32>
    %256 = tpu.matmul %254, %255, %cst_157 {dimension_numbers = #tpu.dot_dimension_numbers<[1], [0], [0], [1], [0, 0, 1, 1], [], []>} : vector<8x49xbf16>, vector<49x32xbf16>, vector<8x32xf32> -> vector<8x32xf32>
    %257 = arith.truncf %256 : vector<8x32xf32> to vector<8x32xbf16>
    %c64_158 = arith.constant 64 : index
    %c0_159 = arith.constant 0 : index
    %258 = vector.load %arg8[%c64_158, %c0_159] : memref<128x128xbf16, #tpu.memory_space<vmem>>, vector<32x128xbf16>
    %cst_160 = arith.constant dense<0.000000e+00> : vector<8x128xf32>
    %259 = tpu.matmul %257, %258, %cst_160 {dimension_numbers = #tpu.dot_dimension_numbers<[1], [0], [0], [1], [0, 0, 1, 1], [], []>} : vector<8x32xbf16>, vector<32x128xbf16>, vector<8x128xf32> -> vector<8x128xf32>
    %260 = arith.addf %225, %259 : vector<8x128xf32>
    %c0_161 = arith.constant 0 : index
    %c96_162 = arith.constant 96 : index
    %261 = vector.load %arg2[%c0_161, %c96_162] : memref<128x128xbf16, #tpu.memory_space<vmem>>, vector<128x32xbf16>
    %cst_163 = arith.constant dense<0.000000e+00> : vector<8x32xf32>
    %262 = tpu.matmul %153, %261, %cst_163 {dimension_numbers = #tpu.dot_dimension_numbers<[1], [0], [0], [1], [0, 0, 1, 1], [], []>} : vector<8x128xbf16>, vector<128x32xbf16>, vector<8x32xf32> -> vector<8x32xf32>
    %c0_164 = arith.constant 0 : index
    %c96_165 = arith.constant 96 : index
    %263 = vector.load %arg3[%c0_164, %c96_165] : memref<1x128xf32, #tpu.memory_space<vmem>>, vector<1x32xf32>
    %264 = vector.broadcast %263 : vector<1x32xf32> to vector<8x32xf32>
    %265 = arith.addf %262, %264 : vector<8x32xf32>
    %c0_166 = arith.constant 0 : index
    %c96_167 = arith.constant 96 : index
    %266 = vector.load %arg4[%c0_166, %c96_167] : memref<32x128xbf16, #tpu.memory_space<vmem>>, vector<32x32xbf16>
    %cst_168 = arith.constant dense<0.000000e+00> : vector<49x32xf32>
    %267 = tpu.matmul %156, %266, %cst_168 {dimension_numbers = #tpu.dot_dimension_numbers<[1], [0], [0], [1], [0, 0, 1, 1], [], []>} : vector<49x32xbf16>, vector<32x32xbf16>, vector<49x32xf32> -> vector<49x32xf32>
    %c0_169 = arith.constant 0 : index
    %c96_170 = arith.constant 96 : index
    %268 = vector.load %arg5[%c0_169, %c96_170] : memref<1x128xf32, #tpu.memory_space<vmem>>, vector<1x32xf32>
    %269 = vector.broadcast %268 : vector<1x32xf32> to vector<49x32xf32>
    %270 = arith.addf %267, %269 : vector<49x32xf32>
    %c0_171 = arith.constant 0 : index
    %c96_172 = arith.constant 96 : index
    %271 = vector.load %arg6[%c0_171, %c96_172] : memref<32x128xbf16, #tpu.memory_space<vmem>>, vector<32x32xbf16>
    %cst_173 = arith.constant dense<0.000000e+00> : vector<49x32xf32>
    %272 = tpu.matmul %156, %271, %cst_173 {dimension_numbers = #tpu.dot_dimension_numbers<[1], [0], [0], [1], [0, 0, 1, 1], [], []>} : vector<49x32xbf16>, vector<32x32xbf16>, vector<49x32xf32> -> vector<49x32xf32>
    %c0_174 = arith.constant 0 : index
    %c96_175 = arith.constant 96 : index
    %273 = vector.load %arg7[%c0_174, %c96_175] : memref<1x128xf32, #tpu.memory_space<vmem>>, vector<1x32xf32>
    %274 = vector.broadcast %273 : vector<1x32xf32> to vector<49x32xf32>
    %275 = arith.addf %272, %274 : vector<49x32xf32>
    %276 = arith.truncf %265 : vector<8x32xf32> to vector<8x32xbf16>
    %277 = arith.truncf %270 : vector<49x32xf32> to vector<49x32xbf16>
    %cst_176 = arith.constant dense<0.000000e+00> : vector<8x49xf32>
    %278 = tpu.matmul %276, %277, %cst_176 {dimension_numbers = #tpu.dot_dimension_numbers<[1], [1], [0], [0], [0, 0, 1, 0], [], []>} : vector<8x32xbf16>, vector<49x32xbf16>, vector<8x49xf32> -> vector<8x49xf32>
    %cst_177 = arith.constant dense<0xFF800000> : vector<8xf32>
    %279 = vector.multi_reduction <maximumf>, %278, %cst_177 [1] : vector<8x49xf32> to vector<8xf32>
    %280 = vector.shape_cast %279 : vector<8xf32> to vector<8x1xf32>
    %281 = vector.broadcast %280 : vector<8x1xf32> to vector<8x49xf32>
    %282 = arith.subf %278, %281 : vector<8x49xf32>
    %283 = math.exp %282 : vector<8x49xf32>
    %cst_178 = arith.constant dense<0.000000e+00> : vector<8xf32>
    %284 = vector.multi_reduction <add>, %283, %cst_178 [1] : vector<8x49xf32> to vector<8xf32>
    %285 = vector.shape_cast %284 : vector<8xf32> to vector<8x1xf32>
    %286 = tpu.reciprocal %285 {approx = true} : vector<8x1xf32> -> vector<8x1xf32>
    %287 = vector.broadcast %286 : vector<8x1xf32> to vector<8x49xf32>
    %288 = arith.mulf %283, %287 : vector<8x49xf32>
    %289 = arith.truncf %288 : vector<8x49xf32> to vector<8x49xbf16>
    %290 = arith.truncf %275 : vector<49x32xf32> to vector<49x32xbf16>
    %cst_179 = arith.constant dense<0.000000e+00> : vector<8x32xf32>
    %291 = tpu.matmul %289, %290, %cst_179 {dimension_numbers = #tpu.dot_dimension_numbers<[1], [0], [0], [1], [0, 0, 1, 1], [], []>} : vector<8x49xbf16>, vector<49x32xbf16>, vector<8x32xf32> -> vector<8x32xf32>
    %292 = arith.truncf %291 : vector<8x32xf32> to vector<8x32xbf16>
    %c96_180 = arith.constant 96 : index
    %c0_181 = arith.constant 0 : index
    %293 = vector.load %arg8[%c96_180, %c0_181] : memref<128x128xbf16, #tpu.memory_space<vmem>>, vector<32x128xbf16>
    %cst_182 = arith.constant dense<0.000000e+00> : vector<8x128xf32>
    %294 = tpu.matmul %292, %293, %cst_182 {dimension_numbers = #tpu.dot_dimension_numbers<[1], [0], [0], [1], [0, 0, 1, 1], [], []>} : vector<8x32xbf16>, vector<32x128xbf16>, vector<8x128xf32> -> vector<8x128xf32>
    %295 = arith.addf %260, %294 : vector<8x128xf32>
    %c0_183 = arith.constant 0 : index
    %c0_184 = arith.constant 0 : index
    %296 = vector.load %arg9[%c0_183, %c0_184] : memref<1x128xf32, #tpu.memory_space<vmem>>, vector<1x128xf32>
    %297 = vector.broadcast %296 : vector<1x128xf32> to vector<8x128xf32>
    %298 = arith.addf %295, %297 : vector<8x128xf32>
    %c8_185 = arith.constant 8 : index
    %c0_186 = arith.constant 0 : index
    %299 = vector.load %arg21[%c8_185, %c0_186] : memref<16x128xf32, #tpu.memory_space<vmem>>, vector<8x128xf32>
    tpu.vector_store %arg21[%c8_185, %c0_186], %298 {strides = array<i32>} : memref<16x128xf32, #tpu.memory_space<vmem>>, vector<8x128xf32>,
    %c0_187 = arith.constant 0 : index
    %c0_188 = arith.constant 0 : index
    %300 = vector.load %arg0[%c0_187, %c0_188] : memref<16x128xf32, #tpu.memory_space<vmem>>, vector<16x128xf32>
    %c0_189 = arith.constant 0 : index
    %c0_190 = arith.constant 0 : index
    %301 = vector.load %arg21[%c0_189, %c0_190] : memref<16x128xf32, #tpu.memory_space<vmem>>, vector<16x128xf32>
    %302 = arith.addf %300, %301 : vector<16x128xf32>
    %c0_191 = arith.constant 0 : index
    %c0_192 = arith.constant 0 : index
    %303 = vector.load %arg10[%c0_191, %c0_192] : memref<1x128xf32, #tpu.memory_space<vmem>>, vector<1x128xf32>
    %c0_193 = arith.constant 0 : index
    %c0_194 = arith.constant 0 : index
    %304 = vector.load %arg11[%c0_193, %c0_194] : memref<1x128xf32, #tpu.memory_space<vmem>>, vector<1x128xf32>
    %cst_195 = arith.constant dense<0.000000e+00> : vector<16xf32>
    %305 = vector.multi_reduction <add>, %302, %cst_195 [1] : vector<16x128xf32> to vector<16xf32>
    %306 = vector.shape_cast %305 : vector<16xf32> to vector<16x1xf32>
    %cst_196 = arith.constant 1.280000e+02 : f32
    %307 = vector.broadcast %cst_196 : f32 to vector<16x1xf32>
    %308 = arith.divf %306, %307 : vector<16x1xf32>
    %309 = vector.broadcast %308 : vector<16x1xf32> to vector<16x128xf32>
    %310 = arith.subf %302, %309 : vector<16x128xf32>
    %311 = arith.mulf %310, %310 : vector<16x128xf32>
    %cst_197 = arith.constant dense<0.000000e+00> : vector<16xf32>
    %312 = vector.multi_reduction <add>, %311, %cst_197 [1] : vector<16x128xf32> to vector<16xf32>
    %313 = vector.shape_cast %312 : vector<16xf32> to vector<16x1xf32>
    %cst_198 = arith.constant 1.280000e+02 : f32
    %314 = vector.broadcast %cst_198 : f32 to vector<16x1xf32>
    %315 = arith.divf %313, %314 : vector<16x1xf32>
    %316 = vector.broadcast %308 : vector<16x1xf32> to vector<16x128xf32>
    %317 = arith.subf %302, %316 : vector<16x128xf32>
    %cst_199 = arith.constant 9.99999974E-6 : f32
    %318 = vector.broadcast %cst_199 : f32 to vector<16x1xf32>
    %319 = arith.addf %315, %318 : vector<16x1xf32>
    %320 = math.rsqrt %319 : vector<16x1xf32>
    %321 = vector.broadcast %320 : vector<16x1xf32> to vector<16x128xf32>
    %322 = arith.mulf %317, %321 : vector<16x128xf32>
    %323 = vector.broadcast %303 : vector<1x128xf32> to vector<16x128xf32>
    %324 = arith.mulf %322, %323 : vector<16x128xf32>
    %325 = vector.broadcast %304 : vector<1x128xf32> to vector<16x128xf32>
    %326 = arith.addf %324, %325 : vector<16x128xf32>
    %c0_i32_200 = arith.constant 0 : i32
    %327 = tpu.memref_slice %arg22[%c0_i32_200] : memref<2x!tpu.dma_semaphore, #tpu.memory_space<semaphore_mem>> -> memref<1x!tpu.dma_semaphore, #tpu.memory_space<semaphore_mem>>
    %328 = tpu.memref_squeeze %327 : memref<1x!tpu.dma_semaphore, #tpu.memory_space<semaphore_mem>> -> memref<!tpu.dma_semaphore, #tpu.memory_space<semaphore_mem>>
    tpu.wait_dma2 semaphore(%328 : memref<!tpu.dma_semaphore, #tpu.memory_space<semaphore_mem>>) src(%arg12 : memref<128x512xbf16, #tpu.memory_space<any>>) dst(%arg19 : memref<128x512xbf16, #tpu.memory_space<vmem>>)
    %329 = arith.truncf %326 : vector<16x128xf32> to vector<16x128xbf16>
    %c0_201 = arith.constant 0 : index
    %c0_202 = arith.constant 0 : index
    %330 = vector.load %arg19[%c0_201, %c0_202] : memref<128x512xbf16, #tpu.memory_space<vmem>>, vector<128x512xbf16>
    %cst_203 = arith.constant dense<0.000000e+00> : vector<16x512xf32>
    %331 = tpu.matmul %329, %330, %cst_203 {dimension_numbers = #tpu.dot_dimension_numbers<[1], [0], [0], [1], [0, 0, 1, 1], [], []>} : vector<16x128xbf16>, vector<128x512xbf16>, vector<16x512xf32> -> vector<16x512xf32>
    %c0_204 = arith.constant 0 : index
    %c0_205 = arith.constant 0 : index
    %332 = vector.load %arg13[%c0_204, %c0_205] : memref<1x512xf32, #tpu.memory_space<vmem>>, vector<1x512xf32>
    %333 = vector.broadcast %332 : vector<1x512xf32> to vector<16x512xf32>
    %334 = arith.addf %331, %333 : vector<16x512xf32>
    %cst_206 = arith.constant 0.000000e+00 : f32
    %335 = vector.broadcast %cst_206 : f32 to vector<16x512xf32>
    %336 = arith.maximumf %334, %335 : vector<16x512xf32>
    %c1_i32_207 = arith.constant 1 : i32
    %337 = tpu.memref_slice %arg22[%c1_i32_207] : memref<2x!tpu.dma_semaphore, #tpu.memory_space<semaphore_mem>> -> memref<1x!tpu.dma_semaphore, #tpu.memory_space<semaphore_mem>>
    %338 = tpu.memref_squeeze %337 : memref<1x!tpu.dma_semaphore, #tpu.memory_space<semaphore_mem>> -> memref<!tpu.dma_semaphore, #tpu.memory_space<semaphore_mem>>
    tpu.wait_dma2 semaphore(%338 : memref<!tpu.dma_semaphore, #tpu.memory_space<semaphore_mem>>) src(%arg14 : memref<512x128xbf16, #tpu.memory_space<any>>) dst(%arg20 : memref<512x128xbf16, #tpu.memory_space<vmem>>)
    %339 = arith.truncf %336 : vector<16x512xf32> to vector<16x512xbf16>
    %c0_208 = arith.constant 0 : index
    %c0_209 = arith.constant 0 : index
    %340 = vector.load %arg20[%c0_208, %c0_209] : memref<512x128xbf16, #tpu.memory_space<vmem>>, vector<512x128xbf16>
    %cst_210 = arith.constant dense<0.000000e+00> : vector<16x128xf32>
    %341 = tpu.matmul %339, %340, %cst_210 {dimension_numbers = #tpu.dot_dimension_numbers<[1], [0], [0], [1], [0, 0, 1, 1], [], []>} : vector<16x512xbf16>, vector<512x128xbf16>, vector<16x128xf32> -> vector<16x128xf32>
    %342 = arith.addf %326, %341 : vector<16x128xf32>
    %c0_211 = arith.constant 0 : index
    %c0_212 = arith.constant 0 : index
    %343 = vector.load %arg15[%c0_211, %c0_212] : memref<1x128xf32, #tpu.memory_space<vmem>>, vector<1x128xf32>
    %344 = vector.broadcast %343 : vector<1x128xf32> to vector<16x128xf32>
    %345 = arith.addf %342, %344 : vector<16x128xf32>
    %c0_213 = arith.constant 0 : index
    %c0_214 = arith.constant 0 : index
    %346 = vector.load %arg16[%c0_213, %c0_214] : memref<1x128xf32, #tpu.memory_space<vmem>>, vector<1x128xf32>
    %c0_215 = arith.constant 0 : index
    %c0_216 = arith.constant 0 : index
    %347 = vector.load %arg17[%c0_215, %c0_216] : memref<1x128xf32, #tpu.memory_space<vmem>>, vector<1x128xf32>
    %cst_217 = arith.constant dense<0.000000e+00> : vector<16xf32>
    %348 = vector.multi_reduction <add>, %345, %cst_217 [1] : vector<16x128xf32> to vector<16xf32>
    %349 = vector.shape_cast %348 : vector<16xf32> to vector<16x1xf32>
    %cst_218 = arith.constant 1.280000e+02 : f32
    %350 = vector.broadcast %cst_218 : f32 to vector<16x1xf32>
    %351 = arith.divf %349, %350 : vector<16x1xf32>
    %352 = vector.broadcast %351 : vector<16x1xf32> to vector<16x128xf32>
    %353 = arith.subf %345, %352 : vector<16x128xf32>
    %354 = arith.mulf %353, %353 : vector<16x128xf32>
    %cst_219 = arith.constant dense<0.000000e+00> : vector<16xf32>
    %355 = vector.multi_reduction <add>, %354, %cst_219 [1] : vector<16x128xf32> to vector<16xf32>
    %356 = vector.shape_cast %355 : vector<16xf32> to vector<16x1xf32>
    %cst_220 = arith.constant 1.280000e+02 : f32
    %357 = vector.broadcast %cst_220 : f32 to vector<16x1xf32>
    %358 = arith.divf %356, %357 : vector<16x1xf32>
    %359 = vector.broadcast %351 : vector<16x1xf32> to vector<16x128xf32>
    %360 = arith.subf %345, %359 : vector<16x128xf32>
    %cst_221 = arith.constant 9.99999974E-6 : f32
    %361 = vector.broadcast %cst_221 : f32 to vector<16x1xf32>
    %362 = arith.addf %358, %361 : vector<16x1xf32>
    %363 = math.rsqrt %362 : vector<16x1xf32>
    %364 = vector.broadcast %363 : vector<16x1xf32> to vector<16x128xf32>
    %365 = arith.mulf %360, %364 : vector<16x128xf32>
    %366 = vector.broadcast %346 : vector<1x128xf32> to vector<16x128xf32>
    %367 = arith.mulf %365, %366 : vector<16x128xf32>
    %368 = vector.broadcast %347 : vector<1x128xf32> to vector<16x128xf32>
    %369 = arith.addf %367, %368 : vector<16x128xf32>
    %c0_222 = arith.constant 0 : index
    %c0_223 = arith.constant 0 : index
    %370 = vector.load %arg18[%c0_222, %c0_223] : memref<16x128xf32, #tpu.memory_space<vmem>>, vector<16x128xf32>
    tpu.vector_store %arg18[%c0_222, %c0_223], %369 {strides = array<i32>} : memref<16x128xf32, #tpu.memory_space<vmem>>, vector<16x128xf32>,
    return
  }
}

</mosaic_0001>

<llo_original>
// kernel: prompt_decoder_forward.1
$region0: #{prompt_decoder_forward.1}
  #allocation0 [shape = 'u32[]', space=smem, size = 0x4, offset = 0x4, fixed_abs, tag = 'smem constant byte address 0x4 - core index']
  #allocation1 [shape = 'u32[144,128]{1,0:T(1,128)}', space=vmem, size = 0x12000, scoped, tag = 'internal scratch']
  #allocation2 [shape = 'bf16[128,512]{1,0:T(8,128)(2,1)}', space=vmem, size = 0x20000, scoped, tag = 'scratch operand']
  #allocation3 [shape = 'bf16[512,128]{1,0:T(8,128)(2,1)}', space=vmem, size = 0x20000, scoped, tag = 'scratch operand']
  #allocation4 [shape = 'f32[16,128]{1,0:T(8,128)}', space=vmem, size = 0x2000, scoped, tag = 'scratch operand']
  #allocation5 [shape = 's32[2]{0}', space=sflag, size = 0x8, scoped, tag = 'scratch operand']
  #allocation8 [shape = 's32[]', space=sflag, size = 0x4, offset = 0, fixed_abs, tag = 'sflag constant byte address 0x0 - dummy sync flag']
  #allocation9 [shape = 's32[]', space=sflag, size = 0x4, offset = 0, fixed_abs, tag = 'sflag constant byte address 0x0 - dummy sync flag']
  %s0 = inlined_call_operand.vmem [shape: f32[16,128], index: 0, kind: input, shape index: {}]
  %s1 = inlined_call_operand.vmem [shape: f32[2,49,32], index: 1, kind: input, shape index: {}]
  %s2 = inlined_call_operand.vmem [shape: bf16[128,128], index: 2, kind: input, shape index: {}]
  %s3 = inlined_call_operand.vmem [shape: f32[1,128], index: 3, kind: input, shape index: {}]
  %s4 = inlined_call_operand.vmem [shape: bf16[32,128], index: 4, kind: input, shape index: {}]
  %s5 = inlined_call_operand.vmem [shape: f32[1,128], index: 5, kind: input, shape index: {}]
  %s6 = inlined_call_operand.vmem [shape: bf16[32,128], index: 6, kind: input, shape index: {}]
  %s7 = inlined_call_operand.vmem [shape: f32[1,128], index: 7, kind: input, shape index: {}]
  %s8 = inlined_call_operand.vmem [shape: bf16[128,128], index: 8, kind: input, shape index: {}]
  %s9 = inlined_call_operand.vmem [shape: f32[1,128], index: 9, kind: input, shape index: {}]
  %s10 = inlined_call_operand.vmem [shape: f32[1,128], index: 10, kind: input, shape index: {}]
  %s11 = inlined_call_operand.vmem [shape: f32[1,128], index: 11, kind: input, shape index: {}]
  %s12 = inlined_call_operand.vmem [shape: bf16[128,512], index: 12, kind: input, shape index: {}]
  %s13 = inlined_call_operand.vmem [shape: f32[1,512], index: 13, kind: input, shape index: {}]
  %s14 = inlined_call_operand.vmem [shape: bf16[512,128], index: 14, kind: input, shape index: {}]
  %s15 = inlined_call_operand.vmem [shape: f32[1,128], index: 15, kind: input, shape index: {}]
  %s16 = inlined_call_operand.vmem [shape: f32[1,128], index: 16, kind: input, shape index: {}]
  %s17 = inlined_call_operand.vmem [shape: f32[1,128], index: 17, kind: input, shape index: {}]
  %s18 = inlined_call_operand.hbm [shape: f32[16,128], index: 18, kind: output, shape index: {}]
  %s19 = sld [smem:[#allocation0]]
  $region142: #{prompt_decoder_forward.1} parent=0
    _
  %s21 = ssub.s32 1, %s19
  %s22 = scalar_select 0, %s21, %s19
  $region1: #{prompt_decoder_forward.1} parent=0
    #allocation6 [shape = 'u8[8192]{0}', space=vmem, size = 0x2000, scoped, tag = 'output window, operand 0, single buffered']
    #allocation7 [shape = 's32[1]{0}', space=sflag, size = 0x4, scoped, tag = 'scoped memory for prompt_decoder_forward.1']
    %23 = vsyncpa [#allocation7], 0
    // Predicated region
    $region2: #{prompt_decoder_forward.1} parent=1 // pred_check
      _
    $region3: #{prompt_decoder_forward.1} parent=1 // pred_check_branch
      %25 = sbr.rel (0) target = $region5
    $region4: #{prompt_decoder_forward.1} parent=1 // pred_region
      _
    $region5: #{prompt_decoder_forward.1} parent=1 // pred_fallthru
      _
    // Predicated region
    $region6: #{prompt_decoder_forward.1} parent=1 // pred_check
      _
    $region7: #{prompt_decoder_forward.1} parent=1 // pred_check_branch
      %27 = sbr.rel (0) target = $region9
    $region8: #{prompt_decoder_forward.1} parent=1 // pred_region
      _
    $region9: #{prompt_decoder_forward.1} parent=1 // pred_fallthru
      _
    // Predicated region
    $region10: #{prompt_decoder_forward.1} parent=1 // pred_check
      _
    $region11: #{prompt_decoder_forward.1} parent=1 // pred_check_branch
      %29 = sbr.rel (0) target = $region13
    $region12: #{prompt_decoder_forward.1} parent=1 // pred_region
      _
    $region13: #{prompt_decoder_forward.1} parent=1 // pred_fallthru
      _
    // Predicated region
    $region14: #{prompt_decoder_forward.1} parent=1 // pred_check
      _
    $region15: #{prompt_decoder_forward.1} parent=1 // pred_check_branch
      %31 = sbr.rel (0) target = $region17
    $region16: #{prompt_decoder_forward.1} parent=1 // pred_region
      _
    $region17: #{prompt_decoder_forward.1} parent=1 // pred_fallthru
      _
    // Predicated region
    $region18: #{prompt_decoder_forward.1} parent=1 // pred_check
      _
    $region19: #{prompt_decoder_forward.1} parent=1 // pred_check_branch
      %33 = sbr.rel (0) target = $region21
    $region20: #{prompt_decoder_forward.1} parent=1 // pred_region
      _
    $region21: #{prompt_decoder_forward.1} parent=1 // pred_fallthru
      _
    // Predicated region
    $region22: #{prompt_decoder_forward.1} parent=1 // pred_check
      _
    $region23: #{prompt_decoder_forward.1} parent=1 // pred_check_branch
      %35 = sbr.rel (0) target = $region25
    $region24: #{prompt_decoder_forward.1} parent=1 // pred_region
      _
    $region25: #{prompt_decoder_forward.1} parent=1 // pred_fallthru
      _
    // Predicated region
    $region26: #{prompt_decoder_forward.1} parent=1 // pred_check
      _
    $region27: #{prompt_decoder_forward.1} parent=1 // pred_check_branch
      %37 = sbr.rel (0) target = $region29
    $region28: #{prompt_decoder_forward.1} parent=1 // pred_region
      _
    $region29: #{prompt_decoder_forward.1} parent=1 // pred_fallthru
      _
    // Predicated region
    $region30: #{prompt_decoder_forward.1} parent=1 // pred_check
      _
    $region31: #{prompt_decoder_forward.1} parent=1 // pred_check_branch
      %39 = sbr.rel (0) target = $region33
    $region32: #{prompt_decoder_forward.1} parent=1 // pred_region
      _
    $region33: #{prompt_decoder_forward.1} parent=1 // pred_fallthru
      _
    // Predicated region
    $region34: #{prompt_decoder_forward.1} parent=1 // pred_check
      _
    $region35: #{prompt_decoder_forward.1} parent=1 // pred_check_branch
      %41 = sbr.rel (0) target = $region37
    $region36: #{prompt_decoder_forward.1} parent=1 // pred_region
      _
    $region37: #{prompt_decoder_forward.1} parent=1 // pred_fallthru
      _
    // Predicated region
    $region38: #{prompt_decoder_forward.1} parent=1 // pred_check
      _
    $region39: #{prompt_decoder_forward.1} parent=1 // pred_check_branch
      %43 = sbr.rel (0) target = $region41
    $region40: #{prompt_decoder_forward.1} parent=1 // pred_region
      _
    $region41: #{prompt_decoder_forward.1} parent=1 // pred_fallthru
      _
    // Predicated region
    $region42: #{prompt_decoder_forward.1} parent=1 // pred_check
      _
    $region43: #{prompt_decoder_forward.1} parent=1 // pred_check_branch
      %45 = sbr.rel (0) target = $region45
    $region44: #{prompt_decoder_forward.1} parent=1 // pred_region
      _
    $region45: #{prompt_decoder_forward.1} parent=1 // pred_fallthru
      _
    // Predicated region
    $region46: #{prompt_decoder_forward.1} parent=1 // pred_check
      _
    $region47: #{prompt_decoder_forward.1} parent=1 // pred_check_branch
      %47 = sbr.rel (0) target = $region49
    $region48: #{prompt_decoder_forward.1} parent=1 // pred_region
      _
    $region49: #{prompt_decoder_forward.1} parent=1 // pred_fallthru
      _
    // Predicated region
    $region50: #{prompt_decoder_forward.1} parent=1 // pred_check
      _
    $region51: #{prompt_decoder_forward.1} parent=1 // pred_check_branch
      %49 = sbr.rel (0) target = $region53
    $region52: #{prompt_decoder_forward.1} parent=1 // pred_region
      _
    $region53: #{prompt_decoder_forward.1} parent=1 // pred_fallthru
      _
    // Predicated region
    $region54: #{prompt_decoder_forward.1} parent=1 // pred_check
      _
    $region55: #{prompt_decoder_forward.1} parent=1 // pred_check_branch
      %51 = sbr.rel (0) target = $region57
    $region56: #{prompt_decoder_forward.1} parent=1 // pred_region
      _
    $region57: #{prompt_decoder_forward.1} parent=1 // pred_fallthru
      _
    // Predicated region
    $region58: #{prompt_decoder_forward.1} parent=1 // pred_check
      _
    $region59: #{prompt_decoder_forward.1} parent=1 // pred_check_branch
      %53 = sbr.rel (0) target = $region61
    $region60: #{prompt_decoder_forward.1} parent=1 // pred_region
      _
    $region61: #{prompt_decoder_forward.1} parent=1 // pred_fallthru
      _
    // Predicated region
    $region62: #{prompt_decoder_forward.1} parent=1 // pred_check
      _
    $region63: #{prompt_decoder_forward.1} parent=1 // pred_check_branch
      %55 = sbr.rel (0) target = $region65
    $region64: #{prompt_decoder_forward.1} parent=1 // pred_region
      _
    $region65: #{prompt_decoder_forward.1} parent=1 // pred_fallthru
      _
    %p58 = scmp.lt.u32.totalorder 256, 8
    %p59 = pneg %p58
    // Predicated region
    $region66: #{prompt_decoder_forward.1} parent=1 // pred_check
      _
    $region67: #{prompt_decoder_forward.1} parent=1 // pred_check_branch
      %61 = sbr.rel (%p58) target = $region69
    $region68: #{prompt_decoder_forward.1} parent=1 // pred_region
      %s77 = sand.u32 256, 7
      %p78 = scmp.eq.s32.totalorder %s77, 0
      // Predicated region
      $region81: #{prompt_decoder_forward.1} parent=68 // pred_check
        %p79 = pneg %p78
      $region82: #{prompt_decoder_forward.1} parent=68 // pred_check_branch
        %81 = sbr.rel (%p79) target = $region84
      $region83: #{prompt_decoder_forward.1} parent=68 // pred_region
        loop: start=0, step=1, limit=1
        $region85: #{prompt_decoder_forward.1} parent=83 // loop_pre_header
          _
        $region86: #{prompt_decoder_forward.1} parent=83 // loop_header
          %s83 = sphi 0, %s87
          %p84 = scmp.ge.s32.totalorder %s83, 1
          %s88 = sphi %s12, %s12
          %s89 = sphi [#allocation2], [#allocation2]
        $region87: #{prompt_decoder_forward.1} parent=83 // loop_header_branch
          %86 = sbr.rel (%p84) target = $region91
        $region88: #{prompt_decoder_forward.1} parent=83 // loop_body
          %v90 = vld [vmem:[%s88] sm:$0xff]
          %91 = vst [vmem:[%s89] sm:$0xff] %v90
          %v92 = vld [vmem:[%s88 + $0x8] sm:$0xff]
          %93 = vst [vmem:[%s89 + $0x8] sm:$0xff] %v92
          %v94 = vld [vmem:[%s88 + $0x10] sm:$0xff]
          %95 = vst [vmem:[%s89 + $0x10] sm:$0xff] %v94
          %v96 = vld [vmem:[%s88 + $0x18] sm:$0xff]
          %97 = vst [vmem:[%s89 + $0x18] sm:$0xff] %v96
          %v98 = vld [vmem:[%s88 + $0x20] sm:$0xff]
          %99 = vst [vmem:[%s89 + $0x20] sm:$0xff] %v98
          %v100 = vld [vmem:[%s88 + $0x28] sm:$0xff]
          %101 = vst [vmem:[%s89 + $0x28] sm:$0xff] %v100
          %v102 = vld [vmem:[%s88 + $0x30] sm:$0xff]
          %103 = vst [vmem:[%s89 + $0x30] sm:$0xff] %v102
          %v104 = vld [vmem:[%s88 + $0x38] sm:$0xff]
          %105 = vst [vmem:[%s89 + $0x38] sm:$0xff] %v104
          %v106 = vld [vmem:[%s88 + $0x40] sm:$0xff]
          %107 = vst [vmem:[%s89 + $0x40] sm:$0xff] %v106
          %v108 = vld [vmem:[%s88 + $0x48] sm:$0xff]
          %109 = vst [vmem:[%s89 + $0x48] sm:$0xff] %v108
          %v110 = vld [vmem:[%s88 + $0x50] sm:$0xff]
          %111 = vst [vmem:[%s89 + $0x50] sm:$0xff] %v110
          %v112 = vld [vmem:[%s88 + $0x58] sm:$0xff]
          %113 = vst [vmem:[%s89 + $0x58] sm:$0xff] %v112
          %v114 = vld [vmem:[%s88 + $0x60] sm:$0xff]
          %115 = vst [vmem:[%s89 + $0x60] sm:$0xff] %v114
          %v116 = vld [vmem:[%s88 + $0x68] sm:$0xff]
          %117 = vst [vmem:[%s89 + $0x68] sm:$0xff] %v116
          %v118 = vld [vmem:[%s88 + $0x70] sm:$0xff]
          %119 = vst [vmem:[%s89 + $0x70] sm:$0xff] %v118
          %v120 = vld [vmem:[%s88 + $0x78] sm:$0xff]
          %121 = vst [vmem:[%s89 + $0x78] sm:$0xff] %v120
          %v122 = vld [vmem:[%s88 + $0x80] sm:$0xff]
          %123 = vst [vmem:[%s89 + $0x80] sm:$0xff] %v122
          %v124 = vld [vmem:[%s88 + $0x88] sm:$0xff]
          %125 = vst [vmem:[%s89 + $0x88] sm:$0xff] %v124
          %v126 = vld [vmem:[%s88 + $0x90] sm:$0xff]
          %127 = vst [vmem:[%s89 + $0x90] sm:$0xff] %v126
          %v128 = vld [vmem:[%s88 + $0x98] sm:$0xff]
          %129 = vst [vmem:[%s89 + $0x98] sm:$0xff] %v128
          %v130 = vld [vmem:[%s88 + $0xa0] sm:$0xff]
          %131 = vst [vmem:[%s89 + $0xa0] sm:$0xff] %v130
          %v132 = vld [vmem:[%s88 + $0xa8] sm:$0xff]
          %133 = vst [vmem:[%s89 + $0xa8] sm:$0xff] %v132
          %v134 = vld [vmem:[%s88 + $0xb0] sm:$0xff]
          %135 = vst [vmem:[%s89 + $0xb0] sm:$0xff] %v134
          %v136 = vld [vmem:[%s88 + $0xb8] sm:$0xff]
          %137 = vst [vmem:[%s89 + $0xb8] sm:$0xff] %v136
          %v138 = vld [vmem:[%s88 + $0xc0] sm:$0xff]
          %139 = vst [vmem:[%s89 + $0xc0] sm:$0xff] %v138
          %v140 = vld [vmem:[%s88 + $0xc8] sm:$0xff]
          %141 = vst [vmem:[%s89 + $0xc8] sm:$0xff] %v140
          %v142 = vld [vmem:[%s88 + $0xd0] sm:$0xff]
          %143 = vst [vmem:[%s89 + $0xd0] sm:$0xff] %v142
          %v144 = vld [vmem:[%s88 + $0xd8] sm:$0xff]
          %145 = vst [vmem:[%s89 + $0xd8] sm:$0xff] %v144
          %v146 = vld [vmem:[%s88 + $0xe0] sm:$0xff]
          %147 = vst [vmem:[%s89 + $0xe0] sm:$0xff] %v146
          %v148 = vld [vmem:[%s88 + $0xe8] sm:$0xff]
          %149 = vst [vmem:[%s89 + $0xe8] sm:$0xff] %v148
          %v150 = vld [vmem:[%s88 + $0xf0] sm:$0xff]
          %151 = vst [vmem:[%s89 + $0xf0] sm:$0xff] %v150
          %v152 = vld [vmem:[%s88 + $0xf8] sm:$0xff]
          %153 = vst [vmem:[%s89 + $0xf8] sm:$0xff] %v152
        $region89: #{prompt_decoder_forward.1} parent=83 // loop_footer
          %s87 = sadd.s32 1, %s83
        $region90: #{prompt_decoder_forward.1} parent=83 // loop_footer_branch
          %82 = sbr.rel target = $region86
        $region91: #{prompt_decoder_forward.1} parent=83 // loop_exit
          _
      $region84: #{prompt_decoder_forward.1} parent=68 // pred_fallthru
        _
      %p154 = pneg %p78
      // Predicated region
      $region92: #{prompt_decoder_forward.1} parent=68 // pred_check
        _
      $region93: #{prompt_decoder_forward.1} parent=68 // pred_check_branch
        %156 = sbr.rel (%p78) target = $region95
      $region94: #{prompt_decoder_forward.1} parent=68 // pred_region
        %s157 = sand.u32 256, 7
      $region95: #{prompt_decoder_forward.1} parent=68 // pred_fallthru
        _
    $region69: #{prompt_decoder_forward.1} parent=1 // pred_fallthru
      _
    // Predicated region
    $region70: #{prompt_decoder_forward.1} parent=1 // pred_check
      %p62 = pneg %p58
    $region71: #{prompt_decoder_forward.1} parent=1 // pred_check_branch
      %64 = sbr.rel (%p62) target = $region73
    $region72: #{prompt_decoder_forward.1} parent=1 // pred_region
      %s65 = sshll.u32 1, 256
      %s66 = ssub.s32 %s65, 1
      loop: start=0, step=1, limit=1
      $region74: #{prompt_decoder_forward.1} parent=72 // loop_pre_header
        _
      $region75: #{prompt_decoder_forward.1} parent=72 // loop_header
        %s68 = sphi 0, %s72
        %p69 = scmp.ge.s32.totalorder %s68, 1
        %s73 = sphi %s12, %s12
        %s74 = sphi [#allocation2], [#allocation2]
      $region76: #{prompt_decoder_forward.1} parent=72 // loop_header_branch
        %71 = sbr.rel (%p69) target = $region80
      $region77: #{prompt_decoder_forward.1} parent=72 // loop_body
        %v75 = vld [vmem:[%s73] sm:%s66]
        %76 = vst [vmem:[%s74] sm:%s66] %v75
      $region78: #{prompt_decoder_forward.1} parent=72 // loop_footer
        %s72 = sadd.s32 1, %s68
      $region79: #{prompt_decoder_forward.1} parent=72 // loop_footer_branch
        %67 = sbr.rel target = $region75
      $region80: #{prompt_decoder_forward.1} parent=72 // loop_exit
        _
    $region73: #{prompt_decoder_forward.1} parent=1 // pred_fallthru
      _
    // Predicated region
    $region96: #{prompt_decoder_forward.1} parent=1 // pred_check
      _
    $region97: #{prompt_decoder_forward.1} parent=1 // pred_check_branch
      %160 = sbr.rel (0) target = $region99
    $region98: #{prompt_decoder_forward.1} parent=1 // pred_region
      %161 = vsyncadd [#allocation5], 4096
    $region99: #{prompt_decoder_forward.1} parent=1 // pred_fallthru
      _
    %s162 = scalar_lea.sflag [#allocation5], 1
    %p164 = scmp.lt.u32.totalorder 256, 8
    %p165 = pneg %p164
    // Predicated region
    $region100: #{prompt_decoder_forward.1} parent=1 // pred_check
      _
    $region101: #{prompt_decoder_forward.1} parent=1 // pred_check_branch
      %167 = sbr.rel (%p164) target = $region103
    $region102: #{prompt_decoder_forward.1} parent=1 // pred_region
      %s183 = sand.u32 256, 7
      %p184 = scmp.eq.s32.totalorder %s183, 0
      // Predicated region
      $region115: #{prompt_decoder_forward.1} parent=102 // pred_check
        %p185 = pneg %p184
      $region116: #{prompt_decoder_forward.1} parent=102 // pred_check_branch
        %187 = sbr.rel (%p185) target = $region118
      $region117: #{prompt_decoder_forward.1} parent=102 // pred_region
        loop: start=0, step=1, limit=1
        $region119: #{prompt_decoder_forward.1} parent=117 // loop_pre_header
          _
        $region120: #{prompt_decoder_forward.1} parent=117 // loop_header
          %s189 = sphi 0, %s193
          %p190 = scmp.ge.s32.totalorder %s189, 1
          %s194 = sphi %s14, %s14
          %s195 = sphi [#allocation3], [#allocation3]
        $region121: #{prompt_decoder_forward.1} parent=117 // loop_header_branch
          %192 = sbr.rel (%p190) target = $region125
        $region122: #{prompt_decoder_forward.1} parent=117 // loop_body
          %v196 = vld [vmem:[%s194] sm:$0xff]
          %197 = vst [vmem:[%s195] sm:$0xff] %v196
          %v198 = vld [vmem:[%s194 + $0x8] sm:$0xff]
          %199 = vst [vmem:[%s195 + $0x8] sm:$0xff] %v198
          %v200 = vld [vmem:[%s194 + $0x10] sm:$0xff]
          %201 = vst [vmem:[%s195 + $0x10] sm:$0xff] %v200
          %v202 = vld [vmem:[%s194 + $0x18] sm:$0xff]
          %203 = vst [vmem:[%s195 + $0x18] sm:$0xff] %v202
          %v204 = vld [vmem:[%s194 + $0x20] sm:$0xff]
          %205 = vst [vmem:[%s195 + $0x20] sm:$0xff] %v204
          %v206 = vld [vmem:[%s194 + $0x28] sm:$0xff]
          %207 = vst [vmem:[%s195 + $0x28] sm:$0xff] %v206
          %v208 = vld [vmem:[%s194 + $0x30] sm:$0xff]
          %209 = vst [vmem:[%s195 + $0x30] sm:$0xff] %v208
          %v210 = vld [vmem:[%s194 + $0x38] sm:$0xff]
          %211 = vst [vmem:[%s195 + $0x38] sm:$0xff] %v210
          %v212 = vld [vmem:[%s194 + $0x40] sm:$0xff]
          %213 = vst [vmem:[%s195 + $0x40] sm:$0xff] %v212
          %v214 = vld [vmem:[%s194 + $0x48] sm:$0xff]
          %215 = vst [vmem:[%s195 + $0x48] sm:$0xff] %v214
          %v216 = vld [vmem:[%s194 + $0x50] sm:$0xff]
          %217 = vst [vmem:[%s195 + $0x50] sm:$0xff] %v216
          %v218 = vld [vmem:[%s194 + $0x58] sm:$0xff]
          %219 = vst [vmem:[%s195 + $0x58] sm:$0xff] %v218
          %v220 = vld [vmem:[%s194 + $0x60] sm:$0xff]
          %221 = vst [vmem:[%s195 + $0x60] sm:$0xff] %v220
          %v222 = vld [vmem:[%s194 + $0x68] sm:$0xff]
          %223 = vst [vmem:[%s195 + $0x68] sm:$0xff] %v222
          %v224 = vld [vmem:[%s194 + $0x70] sm:$0xff]
          %225 = vst [vmem:[%s195 + $0x70] sm:$0xff] %v224
          %v226 = vld [vmem:[%s194 + $0x78] sm:$0xff]
          %227 = vst [vmem:[%s195 + $0x78] sm:$0xff] %v226
          %v228 = vld [vmem:[%s194 + $0x80] sm:$0xff]
          %229 = vst [vmem:[%s195 + $0x80] sm:$0xff] %v228
          %v230 = vld [vmem:[%s194 + $0x88] sm:$0xff]
          %231 = vst [vmem:[%s195 + $0x88] sm:$0xff] %v230
          %v232 = vld [vmem:[%s194 + $0x90] sm:$0xff]
          %233 = vst [vmem:[%s195 + $0x90] sm:$0xff] %v232
          %v234 = vld [vmem:[%s194 + $0x98] sm:$0xff]
          %235 = vst [vmem:[%s195 + $0x98] sm:$0xff] %v234
          %v236 = vld [vmem:[%s194 + $0xa0] sm:$0xff]
          %237 = vst [vmem:[%s195 + $0xa0] sm:$0xff] %v236
          %v238 = vld [vmem:[%s194 + $0xa8] sm:$0xff]
          %239 = vst [vmem:[%s195 + $0xa8] sm:$0xff] %v238
          %v240 = vld [vmem:[%s194 + $0xb0] sm:$0xff]
          %241 = vst [vmem:[%s195 + $0xb0] sm:$0xff] %v240
          %v242 = vld [vmem:[%s194 + $0xb8] sm:$0xff]
          %243 = vst [vmem:[%s195 + $0xb8] sm:$0xff] %v242
          %v244 = vld [vmem:[%s194 + $0xc0] sm:$0xff]
          %245 = vst [vmem:[%s195 + $0xc0] sm:$0xff] %v244
          %v246 = vld [vmem:[%s194 + $0xc8] sm:$0xff]
          %247 = vst [vmem:[%s195 + $0xc8] sm:$0xff] %v246
          %v248 = vld [vmem:[%s194 + $0xd0] sm:$0xff]
          %249 = vst [vmem:[%s195 + $0xd0] sm:$0xff] %v248
          %v250 = vld [vmem:[%s194 + $0xd8] sm:$0xff]
          %251 = vst [vmem:[%s195 + $0xd8] sm:$0xff] %v250
          %v252 = vld [vmem:[%s194 + $0xe0] sm:$0xff]
          %253 = vst [vmem:[%s195 + $0xe0] sm:$0xff] %v252
          %v254 = vld [vmem:[%s194 + $0xe8] sm:$0xff]
          %255 = vst [vmem:[%s195 + $0xe8] sm:$0xff] %v254
          %v256 = vld [vmem:[%s194 + $0xf0] sm:$0xff]
          %257 = vst [vmem:[%s195 + $0xf0] sm:$0xff] %v256
          %v258 = vld [vmem:[%s194 + $0xf8] sm:$0xff]
          %259 = vst [vmem:[%s195 + $0xf8] sm:$0xff] %v258
        $region123: #{prompt_decoder_forward.1} parent=117 // loop_footer
          %s193 = sadd.s32 1, %s189
        $region124: #{prompt_decoder_forward.1} parent=117 // loop_footer_branch
          %188 = sbr.rel target = $region120
        $region125: #{prompt_decoder_forward.1} parent=117 // loop_exit
          _
      $region118: #{prompt_decoder_forward.1} parent=102 // pred_fallthru
        _
      %p260 = pneg %p184
      // Predicated region
      $region126: #{prompt_decoder_forward.1} parent=102 // pred_check
        _
      $region127: #{prompt_decoder_forward.1} parent=102 // pred_check_branch
        %262 = sbr.rel (%p184) target = $region129
      $region128: #{prompt_decoder_forward.1} parent=102 // pred_region
        %s263 = sand.u32 256, 7
      $region129: #{prompt_decoder_forward.1} parent=102 // pred_fallthru
        _
    $region103: #{prompt_decoder_forward.1} parent=1 // pred_fallthru
      _
    // Predicated region
    $region104: #{prompt_decoder_forward.1} parent=1 // pred_check
      %p168 = pneg %p164
    $region105: #{prompt_decoder_forward.1} parent=1 // pred_check_branch
      %170 = sbr.rel (%p168) target = $region107
    $region106: #{prompt_decoder_forward.1} parent=1 // pred_region
      %s171 = sshll.u32 1, 256
      %s172 = ssub.s32 %s171, 1
      loop: start=0, step=1, limit=1
      $region108: #{prompt_decoder_forward.1} parent=106 // loop_pre_header
        _
      $region109: #{prompt_decoder_forward.1} parent=106 // loop_header
        %s174 = sphi 0, %s178
        %p175 = scmp.ge.s32.totalorder %s174, 1
        %s179 = sphi %s14, %s14
        %s180 = sphi [#allocation3], [#allocation3]
      $region110: #{prompt_decoder_forward.1} parent=106 // loop_header_branch
        %177 = sbr.rel (%p175) target = $region114
      $region111: #{prompt_decoder_forward.1} parent=106 // loop_body
        %v181 = vld [vmem:[%s179] sm:%s172]
        %182 = vst [vmem:[%s180] sm:%s172] %v181
      $region112: #{prompt_decoder_forward.1} parent=106 // loop_footer
        %s178 = sadd.s32 1, %s174
      $region113: #{prompt_decoder_forward.1} parent=106 // loop_footer_branch
        %173 = sbr.rel target = $region109
      $region114: #{prompt_decoder_forward.1} parent=106 // loop_exit
        _
    $region107: #{prompt_decoder_forward.1} parent=1 // pred_fallthru
      _
    // Predicated region
    $region130: #{prompt_decoder_forward.1} parent=1 // pred_check
      _
    $region131: #{prompt_decoder_forward.1} parent=1 // pred_check_branch
      %266 = sbr.rel (0) target = $region133
    $region132: #{prompt_decoder_forward.1} parent=1 // pred_region
      %267 = vsyncadd %s162, 4096
    $region133: #{prompt_decoder_forward.1} parent=1 // pred_fallthru
      _
    %v268 = vld [vmem:[%s0] sm:$0xff]
    %v269 = vpack.c.bf16 %v268, %v268
    %v270 = vld [vmem:[%s1] sm:$0xff]
    %v271 = vld [vmem:[%s1 + $0x8] sm:$0xff]
    %v272 = vld [vmem:[%s1 + $0x10] sm:$0xff]
    %v273 = vld [vmem:[%s1 + $0x18] sm:$0xff]
    %v274 = vld [vmem:[%s1 + $0x20] sm:$0xff]
    %v275 = vld [vmem:[%s1 + $0x28] sm:$0xff]
    %v276 = vld [vmem:[%s1 + $0x30] sm:$0x1]
    %v277 = vpack.c.bf16 %v271, %v270
    %v278 = vpack.c.bf16 %v273, %v272
    %v279 = vpack.c.bf16 %v275, %v274
    %v280 = vpack.c.bf16 %v276, %v276
    %v281 = vld [vmem:[%s2] sm:$0xf]
    %v282 = vld [vmem:[%s2 + $0x4] sm:$0xf]
    %v283 = vld [vmem:[%s2 + $0x8] sm:$0xf]
    %v284 = vld [vmem:[%s2 + $0xc] sm:$0xf]
    %v285 = vld [vmem:[%s2 + $0x10] sm:$0xf]
    %v286 = vld [vmem:[%s2 + $0x14] sm:$0xf]
    %v287 = vld [vmem:[%s2 + $0x18] sm:$0xf]
    %v288 = vld [vmem:[%s2 + $0x1c] sm:$0xf]
    %v289 = vld [vmem:[%s2 + $0x20] sm:$0xf]
    %v290 = vld [vmem:[%s2 + $0x24] sm:$0xf]
    %v291 = vld [vmem:[%s2 + $0x28] sm:$0xf]
    %v292 = vld [vmem:[%s2 + $0x2c] sm:$0xf]
    %v293 = vld [vmem:[%s2 + $0x30] sm:$0xf]
    %v294 = vld [vmem:[%s2 + $0x34] sm:$0xf]
    %v295 = vld [vmem:[%s2 + $0x38] sm:$0xf]
    %v296 = vld [vmem:[%s2 + $0x3c] sm:$0xf]
    %v297 = vld [vmem:[%s3] sm:$0x1]
    %v299 = vlaneseq
    %v300 = vshrl.u32 %v299, 7
    %v301 = vsub.s32 0, %v300
    %v302 = vrot.slane %v297, %v301
    %v320 = vunpack.c.l.b16 %v281
    %v321 = vunpack.c.l.b16 %v282
    %v322 = vunpack.c.l.b16 %v283
    %v323 = vunpack.c.l.b16 %v284
    %v324 = vunpack.c.l.b16 %v285
    %v325 = vunpack.c.l.b16 %v286
    %v326 = vunpack.c.l.b16 %v287
    %v327 = vunpack.c.l.b16 %v288
    %v328 = vunpack.c.l.b16 %v289
    %v329 = vunpack.c.l.b16 %v290
    %v330 = vunpack.c.l.b16 %v291
    %v331 = vunpack.c.l.b16 %v292
    %v332 = vunpack.c.l.b16 %v293
    %v333 = vunpack.c.l.b16 %v294
    %v334 = vunpack.c.l.b16 %v295
    %v335 = vunpack.c.l.b16 %v296
    %v336 = vpack.c.b16 %v321, %v320
    %v337 = vpack.c.b16 %v323, %v322
    %v338 = vpack.c.b16 %v325, %v324
    %v339 = vpack.c.b16 %v327, %v326
    %v340 = vpack.c.b16 %v329, %v328
    %v341 = vpack.c.b16 %v331, %v330
    %v342 = vpack.c.b16 %v333, %v332
    %v343 = vpack.c.b16 %v335, %v334
    %352 = vmatprep.subr.bf16.mxu0 0
    %353 = vmatpush1.bf16.msra.mxu0 %v343
    %354 = vmatprep.subr.bf16.mxu0 0
    %355 = vmatpush1.bf16.msra.mxu0 %v342
    %356 = vmatprep.subr.bf16.mxu0 0
    %357 = vmatpush1.bf16.msra.mxu0 %v341
    %358 = vmatprep.subr.bf16.mxu0 0
    %359 = vmatpush1.bf16.msra.mxu0 %v340
    %360 = vmatprep.subr.bf16.mxu0 0
    %361 = vmatpush1.bf16.msra.mxu0 %v339
    %362 = vmatprep.subr.bf16.mxu0 0
    %363 = vmatpush1.bf16.msra.mxu0 %v338
    %364 = vmatprep.subr.bf16.mxu0 0
    %365 = vmatpush1.bf16.msra.mxu0 %v337
    %366 = vmatprep.subr.bf16.mxu0 0
    %367 = vmatpush1.bf16.msra.mxu0 %v336
    %368 = vmatprep.subr.bf16.mxu0 0
    %369 = vmatpush2.bf16.msra.mxu0 0
    %370 = vmatprep.subr.bf16.mxu0 0
    %371 = vmatpush2.bf16.msra.mxu0 0
    %372 = vmatprep.subr.bf16.mxu0 0
    %373 = vmatpush2.bf16.msra.mxu0 0
    %374 = vmatprep.subr.bf16.mxu0 0
    %375 = vmatpush2.bf16.msra.mxu0 0
    %376 = vmatprep.subr.bf16.mxu0 0
    %377 = vmatpush2.bf16.msra.mxu0 0
    %378 = vmatprep.subr.bf16.mxu0 0
    %379 = vmatpush2.bf16.msra.mxu0 0
    %380 = vmatprep.subr.bf16.mxu0 0
    %381 = vmatpush2.bf16.msra.mxu0 0
    %382 = vmatprep.subr.bf16.mxu0 0
    %383 = vmatpush2.bf16.msra.mxu0 0
    %384 = vmatprep.mubr.bf16.mxu0 0
    %385 = vmatmul.mubr.bf16.gmra.mxu0 %v269
    %v386 = vpop.f32.mrf.mxu0
    %v387 = vadd.f32 %v302, %v386
    %v388 = vpop.f32.mrf.mxu0
    %v389 = vpop.f32.mrf.mxu0
    %v390 = vpop.f32.mrf.mxu0
    %391 = vdwg.mxu0
    %v392 = vld [vmem:[%s4] sm:$0xf]
    %v393 = vld [vmem:[%s4 + $0x4] sm:$0xf]
    %v394 = vld [vmem:[%s4 + $0x8] sm:$0xf]
    %v395 = vld [vmem:[%s4 + $0xc] sm:$0xf]
    %v396 = vld [vmem:[%s5] sm:$0x1]
    %v398 = vlaneseq
    %v399 = vshrl.u32 %v398, 7
    %v400 = vsub.s32 0, %v399
    %v401 = vrot.slane %v396, %v400
    %v407 = vunpack.c.l.b16 %v392
    %v408 = vunpack.c.l.b16 %v393
    %v409 = vunpack.c.l.b16 %v394
    %v410 = vunpack.c.l.b16 %v395
    %v411 = vpack.c.b16 %v408, %v407
    %v412 = vpack.c.b16 %v410, %v409
    %vm415 = vcmask 261120
    %v417 = vsel %vm415, %v277, 0
    %v420 = vsel %vm415, %v278, 0
    %v423 = vsel %vm415, %v279, 0
    %v426 = vsel %vm415, %v280, 0
    %428 = vmatprep.subr.bf16.mxu0 0
    %429 = vmatpush1.bf16.msra.mxu0 0
    %430 = vmatprep.subr.bf16.mxu0 0
    %431 = vmatpush1.bf16.msra.mxu0 0
    %432 = vmatprep.subr.bf16.mxu0 0
    %433 = vmatpush1.bf16.msra.mxu0 0
    %434 = vmatprep.subr.bf16.mxu0 0
    %435 = vmatpush1.bf16.msra.mxu0 0
    %436 = vmatprep.subr.bf16.mxu0 0
    %437 = vmatpush1.bf16.msra.mxu0 0
    %438 = vmatprep.subr.bf16.mxu0 0
    %439 = vmatpush1.bf16.msra.mxu0 0
    %440 = vmatprep.subr.bf16.mxu0 0
    %441 = vmatpush1.bf16.msra.mxu0 %v412
    %442 = vmatprep.subr.bf16.mxu0 0
    %443 = vmatpush1.bf16.msra.mxu0 %v411
    %444 = vmatprep.subr.bf16.mxu0 0
    %445 = vmatpush2.bf16.msra.mxu0 0
    %446 = vmatprep.subr.bf16.mxu0 0
    %447 = vmatpush2.bf16.msra.mxu0 0
    %448 = vmatprep.subr.bf16.mxu0 0
    %449 = vmatpush2.bf16.msra.mxu0 0
    %450 = vmatprep.subr.bf16.mxu0 0
    %451 = vmatpush2.bf16.msra.mxu0 0
    %452 = vmatprep.subr.bf16.mxu0 0
    %453 = vmatpush2.bf16.msra.mxu0 0
    %454 = vmatprep.subr.bf16.mxu0 0
    %455 = vmatpush2.bf16.msra.mxu0 0
    %456 = vmatprep.subr.bf16.mxu0 0
    %457 = vmatpush2.bf16.msra.mxu0 0
    %458 = vmatprep.subr.bf16.mxu0 0
    %459 = vmatpush2.bf16.msra.mxu0 0
    %460 = vmatprep.mubr.bf16.mxu0 0
    %461 = vmatmul.mubr.bf16.gmra.mxu0 %v417
    %v462 = vpop.f32.mrf.mxu0
    %v463 = vadd.f32 %v401, %v462
    %v464 = vpop.f32.mrf.mxu0
    %v465 = vpop.f32.mrf.mxu0
    %v466 = vadd.f32 %v401, %v465
    %v467 = vpop.f32.mrf.mxu0
    %468 = vmatprep.mubr.bf16.mxu0 0
    %469 = vmatmul.mubr.bf16.gmra.mxu0 %v420
    %v470 = vpop.f32.mrf.mxu0
    %v471 = vadd.f32 %v401, %v470
    %v472 = vpop.f32.mrf.mxu0
    %v473 = vpop.f32.mrf.mxu0
    %v474 = vadd.f32 %v401, %v473
    %v475 = vpop.f32.mrf.mxu0
    %476 = vmatprep.mubr.bf16.mxu0 0
    %477 = vmatmul.mubr.bf16.gmra.mxu0 %v423
    %v478 = vpop.f32.mrf.mxu0
    %v479 = vadd.f32 %v401, %v478
    %v480 = vpop.f32.mrf.mxu0
    %v481 = vpop.f32.mrf.mxu0
    %v482 = vadd.f32 %v401, %v481
    %v483 = vpop.f32.mrf.mxu0
    %484 = vmatprep.mubr.bf16.mxu0 0
    %485 = vmatmul.mubr.bf16.gmra.mxu0 %v426
    %v486 = vpop.f32.mrf.mxu0
    %v487 = vadd.f32 %v401, %v486
    %v488 = vpop.f32.mrf.mxu0
    %v489 = vpop.f32.mrf.mxu0
    %v490 = vpop.f32.mrf.mxu0
    %491 = vdwg.mxu0
    %v492 = vld [vmem:[%s6] sm:$0xf]
    %v493 = vld [vmem:[%s6 + $0x4] sm:$0xf]
    %v494 = vld [vmem:[%s6 + $0x8] sm:$0xf]
    %v495 = vld [vmem:[%s6 + $0xc] sm:$0xf]
    %v496 = vld [vmem:[%s7] sm:$0x1]
    %v498 = vlaneseq
    %v499 = vshrl.u32 %v498, 7
    %v500 = vsub.s32 0, %v499
    %v501 = vrot.slane %v496, %v500
    %v507 = vunpack.c.l.b16 %v492
    %v508 = vunpack.c.l.b16 %v493
    %v509 = vunpack.c.l.b16 %v494
    %v510 = vunpack.c.l.b16 %v495
    %v511 = vpack.c.b16 %v508, %v507
    %v512 = vpack.c.b16 %v510, %v509
    %515 = vmatprep.subr.bf16.mxu0 0
    %516 = vmatpush1.bf16.msra.mxu0 0
    %517 = vmatprep.subr.bf16.mxu0 0
    %518 = vmatpush1.bf16.msra.mxu0 0
    %519 = vmatprep.subr.bf16.mxu0 0
    %520 = vmatpush1.bf16.msra.mxu0 0
    %521 = vmatprep.subr.bf16.mxu0 0
    %522 = vmatpush1.bf16.msra.mxu0 0
    %523 = vmatprep.subr.bf16.mxu0 0
    %524 = vmatpush1.bf16.msra.mxu0 0
    %525 = vmatprep.subr.bf16.mxu0 0
    %526 = vmatpush1.bf16.msra.mxu0 0
    %527 = vmatprep.subr.bf16.mxu0 0
    %528 = vmatpush1.bf16.msra.mxu0 %v512
    %529 = vmatprep.subr.bf16.mxu0 0
    %530 = vmatpush1.bf16.msra.mxu0 %v511
    %531 = vmatprep.subr.bf16.mxu0 0
    %532 = vmatpush2.bf16.msra.mxu0 0
    %533 = vmatprep.subr.bf16.mxu0 0
    %534 = vmatpush2.bf16.msra.mxu0 0
    %535 = vmatprep.subr.bf16.mxu0 0
    %536 = vmatpush2.bf16.msra.mxu0 0
    %537 = vmatprep.subr.bf16.mxu0 0
    %538 = vmatpush2.bf16.msra.mxu0 0
    %539 = vmatprep.subr.bf16.mxu0 0
    %540 = vmatpush2.bf16.msra.mxu0 0
    %541 = vmatprep.subr.bf16.mxu0 0
    %542 = vmatpush2.bf16.msra.mxu0 0
    %543 = vmatprep.subr.bf16.mxu0 0
    %544 = vmatpush2.bf16.msra.mxu0 0
    %545 = vmatprep.subr.bf16.mxu0 0
    %546 = vmatpush2.bf16.msra.mxu0 0
    %547 = vmatprep.mubr.bf16.mxu0 0
    %548 = vmatmul.mubr.bf16.gmra.mxu0 %v417
    %v549 = vpop.f32.mrf.mxu0
    %v550 = vadd.f32 %v501, %v549
    %v551 = vpop.f32.mrf.mxu0
    %v552 = vpop.f32.mrf.mxu0
    %v553 = vadd.f32 %v501, %v552
    %v554 = vpop.f32.mrf.mxu0
    %555 = vmatprep.mubr.bf16.mxu0 0
    %556 = vmatmul.mubr.bf16.gmra.mxu0 %v420
    %v557 = vpop.f32.mrf.mxu0
    %v558 = vadd.f32 %v501, %v557
    %v559 = vpop.f32.mrf.mxu0
    %v560 = vpop.f32.mrf.mxu0
    %v561 = vadd.f32 %v501, %v560
    %v562 = vpop.f32.mrf.mxu0
    %563 = vmatprep.mubr.bf16.mxu0 0
    %564 = vmatmul.mubr.bf16.gmra.mxu0 %v423
    %v565 = vpop.f32.mrf.mxu0
    %v566 = vadd.f32 %v501, %v565
    %v567 = vpop.f32.mrf.mxu0
    %v568 = vpop.f32.mrf.mxu0
    %v569 = vadd.f32 %v501, %v568
    %v570 = vpop.f32.mrf.mxu0
    %571 = vmatprep.mubr.bf16.mxu0 0
    %572 = vmatmul.mubr.bf16.gmra.mxu0 %v426
    %v573 = vpop.f32.mrf.mxu0
    %v574 = vadd.f32 %v501, %v573
    %v575 = vpop.f32.mrf.mxu0
    %v576 = vpop.f32.mrf.mxu0
    %v577 = vpop.f32.mrf.mxu0
    %578 = vdwg.mxu0
    %v579 = vpack.c.bf16 %v387, %v387
    %v580 = vpack.c.bf16 %v466, %v463
    %v581 = vpack.c.bf16 %v474, %v471
    %v582 = vpack.c.bf16 %v482, %v479
    %v583 = vpack.c.bf16 %v487, %v487
    %v585 = vsel %vm415, %v579, 0
    %v588 = vsel %vm415, %v580, 0
    %v591 = vsel %vm415, %v581, 0
    %v594 = vsel %vm415, %v582, 0
    %v597 = vsel %vm415, %v583, 0
    %599 = vmatprep.subr.bf16.mxu0 0
    %600 = vmatpush1.bf16.xpose.msra.mxu0 0
    %601 = vmatprep.subr.bf16.mxu0 0
    %602 = vmatpush1.bf16.xpose.msra.mxu0 0
    %603 = vmatprep.subr.bf16.mxu0 0
    %604 = vmatpush1.bf16.xpose.msra.mxu0 0
    %605 = vmatprep.subr.bf16.mxu0 0
    %606 = vmatpush1.bf16.xpose.msra.mxu0 0
    %607 = vmatprep.subr.bf16.mxu0 0
    %608 = vmatpush1.bf16.xpose.msra.mxu0 %v597
    %609 = vmatprep.subr.bf16.mxu0 0
    %610 = vmatpush1.bf16.xpose.msra.mxu0 %v594
    %611 = vmatprep.subr.bf16.mxu0 0
    %612 = vmatpush1.bf16.xpose.msra.mxu0 %v591
    %613 = vmatprep.subr.bf16.mxu0 0
    %614 = vmatpush1.bf16.xpose.msra.mxu0 %v588
    %615 = vmatprep.subr.bf16.mxu0 0
    %616 = vmatpush2.bf16.xpose.msra.mxu0 0
    %617 = vmatprep.subr.bf16.mxu0 0
    %618 = vmatpush2.bf16.xpose.msra.mxu0 0
    %619 = vmatprep.subr.bf16.mxu0 0
    %620 = vmatpush2.bf16.xpose.msra.mxu0 0
    %621 = vmatprep.subr.bf16.mxu0 0
    %622 = vmatpush2.bf16.xpose.msra.mxu0 0
    %623 = vmatprep.subr.bf16.mxu0 0
    %624 = vmatpush2.bf16.xpose.msra.mxu0 0
    %625 = vmatprep.subr.bf16.mxu0 0
    %626 = vmatpush2.bf16.xpose.msra.mxu0 0
    %627 = vmatprep.subr.bf16.mxu0 0
    %628 = vmatpush2.bf16.xpose.msra.mxu0 0
    %629 = vmatprep.subr.bf16.mxu0 0
    %630 = vmatpush2.bf16.xpose.msra.mxu0 0
    %631 = vmatprep.mubr.bf16.mxu0 0
    %632 = vmatmul.mubr.bf16.gmra.mxu0 %v585
    %v633 = vpop.f32.mrf.mxu0
    %v634 = vadd.f32 0.0, %v633
    %v635 = vpop.f32.mrf.mxu0
    %v636 = vpop.f32.mrf.mxu0
    %v637 = vpop.f32.mrf.mxu0
    %638 = vdwg.mxu0
    %vm639 = vcmask 400384
    %v640 = vsel %vm639, %v634, -inf
    %641 = vmax.xlane.f32.xlu0 %v640
    %v642 = vpop.xlane.xlu0 %641
    %v643 = vsub.f32 %v634, %v642
    %v644 = vmul.f32 %v643, 1.442695
    %v645 = vpow.pop %v644
    %v646 = vsel %vm639, %v645, 0.0
    %647 = vadd.xlane.f32.xlu0 %v646
    %v648 = vpop.xlane.xlu0 %647
    %v649 = vrcp.pop %v648
    %v650 = vmul.f32 %v645, %v649
    %v651 = vpack.c.bf16 %v650, %v650
    %v652 = vpack.c.bf16 %v553, %v550
    %v653 = vpack.c.bf16 %v561, %v558
    %v654 = vpack.c.bf16 %v569, %v566
    %v655 = vpack.c.bf16 %v574, %v574
    %v657 = vsel %vm639, %v651, 0
    %vm659 = vcmask 1040384
    %v660 = vsel 0, 4294967295, 65535
    %v661 = vsel %vm659, %v660, 0
    %v663 = vand.u32 %v655, %v661
    %665 = vmatprep.subr.bf16.mxu0 0
    %666 = vmatpush1.bf16.msra.mxu0 0
    %667 = vmatprep.subr.bf16.mxu0 0
    %668 = vmatpush1.bf16.msra.mxu0 0
    %669 = vmatprep.subr.bf16.mxu0 0
    %670 = vmatpush1.bf16.msra.mxu0 0
    %671 = vmatprep.subr.bf16.mxu0 0
    %672 = vmatpush1.bf16.msra.mxu0 0
    %673 = vmatprep.subr.bf16.mxu0 0
    %674 = vmatpush1.bf16.msra.mxu0 %v663
    %675 = vmatprep.subr.bf16.mxu0 0
    %676 = vmatpush1.bf16.msra.mxu0 %v654
    %677 = vmatprep.subr.bf16.mxu0 0
    %678 = vmatpush1.bf16.msra.mxu0 %v653
    %679 = vmatprep.subr.bf16.mxu0 0
    %680 = vmatpush1.bf16.msra.mxu0 %v652
    %681 = vmatprep.subr.bf16.mxu0 0
    %682 = vmatpush2.bf16.msra.mxu0 0
    %683 = vmatprep.subr.bf16.mxu0 0
    %684 = vmatpush2.bf16.msra.mxu0 0
    %685 = vmatprep.subr.bf16.mxu0 0
    %686 = vmatpush2.bf16.msra.mxu0 0
    %687 = vmatprep.subr.bf16.mxu0 0
    %688 = vmatpush2.bf16.msra.mxu0 0
    %689 = vmatprep.subr.bf16.mxu0 0
    %690 = vmatpush2.bf16.msra.mxu0 0
    %691 = vmatprep.subr.bf16.mxu0 0
    %692 = vmatpush2.bf16.msra.mxu0 0
    %693 = vmatprep.subr.bf16.mxu0 0
    %694 = vmatpush2.bf16.msra.mxu0 0
    %695 = vmatprep.subr.bf16.mxu0 0
    %696 = vmatpush2.bf16.msra.mxu0 0
    %697 = vmatprep.mubr.bf16.mxu0 0
    %698 = vmatmul.mubr.bf16.gmra.mxu0 %v657
    %v699 = vpop.f32.mrf.mxu0
    %v700 = vadd.f32 0.0, %v699
    %v701 = vpop.f32.mrf.mxu0
    %v702 = vpop.f32.mrf.mxu0
    %v703 = vpop.f32.mrf.mxu0
    %704 = vdwg.mxu0
    %v705 = vpack.c.bf16 %v700, %v700
    %v706 = vld [vmem:[%s8] sm:$0xf]
    %v707 = vld [vmem:[%s8 + $0x4] sm:$0xf]
    %v708 = vld [vmem:[%s8 + $0x8] sm:$0xf]
    %v709 = vld [vmem:[%s8 + $0xc] sm:$0xf]
    %710 = vrot.lane.b32.xlu0 %v336, 96
    %v711 = vpop.permute.xlu0 %710
    %712 = vrot.lane.b32.xlu0 %v337, 96
    %v713 = vpop.permute.xlu0 %712
    %714 = vrot.lane.b32.xlu0 %v338, 96
    %v715 = vpop.permute.xlu0 %714
    %716 = vrot.lane.b32.xlu0 %v339, 96
    %v717 = vpop.permute.xlu0 %716
    %718 = vrot.lane.b32.xlu0 %v340, 96
    %v719 = vpop.permute.xlu0 %718
    %720 = vrot.lane.b32.xlu0 %v341, 96
    %v721 = vpop.permute.xlu0 %720
    %722 = vrot.lane.b32.xlu0 %v342, 96
    %v723 = vpop.permute.xlu0 %722
    %724 = vrot.lane.b32.xlu0 %v343, 96
    %v725 = vpop.permute.xlu0 %724
    %734 = vrot.lane.b32.xlu0 %v302, 96
    %v735 = vpop.permute.xlu0 %734
    %737 = vmatprep.subr.bf16.mxu0 0
    %738 = vmatpush1.bf16.msra.mxu0 %v725
    %739 = vmatprep.subr.bf16.mxu0 0
    %740 = vmatpush1.bf16.msra.mxu0 %v723
    %741 = vmatprep.subr.bf16.mxu0 0
    %742 = vmatpush1.bf16.msra.mxu0 %v721
    %743 = vmatprep.subr.bf16.mxu0 0
    %744 = vmatpush1.bf16.msra.mxu0 %v719
    %745 = vmatprep.subr.bf16.mxu0 0
    %746 = vmatpush1.bf16.msra.mxu0 %v717
    %747 = vmatprep.subr.bf16.mxu0 0
    %748 = vmatpush1.bf16.msra.mxu0 %v715
    %749 = vmatprep.subr.bf16.mxu0 0
    %750 = vmatpush1.bf16.msra.mxu0 %v713
    %751 = vmatprep.subr.bf16.mxu0 0
    %752 = vmatpush1.bf16.msra.mxu0 %v711
    %753 = vmatprep.subr.bf16.mxu0 0
    %754 = vmatpush2.bf16.msra.mxu0 0
    %755 = vmatprep.subr.bf16.mxu0 0
    %756 = vmatpush2.bf16.msra.mxu0 0
    %757 = vmatprep.subr.bf16.mxu0 0
    %758 = vmatpush2.bf16.msra.mxu0 0
    %759 = vmatprep.subr.bf16.mxu0 0
    %760 = vmatpush2.bf16.msra.mxu0 0
    %761 = vmatprep.subr.bf16.mxu0 0
    %762 = vmatpush2.bf16.msra.mxu0 0
    %763 = vmatprep.subr.bf16.mxu0 0
    %764 = vmatpush2.bf16.msra.mxu0 0
    %765 = vmatprep.subr.bf16.mxu0 0
    %766 = vmatpush2.bf16.msra.mxu0 0
    %767 = vmatprep.subr.bf16.mxu0 0
    %768 = vmatpush2.bf16.msra.mxu0 0
    %769 = vmatprep.mubr.bf16.mxu0 0
    %770 = vmatmul.mubr.bf16.gmra.mxu0 %v269
    %v771 = vpop.f32.mrf.mxu0
    %v772 = vadd.f32 %v735, %v771
    %v773 = vpop.f32.mrf.mxu0
    %v774 = vpop.f32.mrf.mxu0
    %v775 = vpop.f32.mrf.mxu0
    %776 = vdwg.mxu0
    %777 = vrot.lane.b32.xlu0 %v411, 96
    %v778 = vpop.permute.xlu0 %777
    %779 = vrot.lane.b32.xlu0 %v412, 96
    %v780 = vpop.permute.xlu0 %779
    %783 = vrot.lane.b32.xlu0 %v401, 96
    %v784 = vpop.permute.xlu0 %783
    %786 = vmatprep.subr.bf16.mxu0 0
    %787 = vmatpush1.bf16.msra.mxu0 0
    %788 = vmatprep.subr.bf16.mxu0 0
    %789 = vmatpush1.bf16.msra.mxu0 0
    %790 = vmatprep.subr.bf16.mxu0 0
    %791 = vmatpush1.bf16.msra.mxu0 0
    %792 = vmatprep.subr.bf16.mxu0 0
    %793 = vmatpush1.bf16.msra.mxu0 0
    %794 = vmatprep.subr.bf16.mxu0 0
    %795 = vmatpush1.bf16.msra.mxu0 0
    %796 = vmatprep.subr.bf16.mxu0 0
    %797 = vmatpush1.bf16.msra.mxu0 0
    %798 = vmatprep.subr.bf16.mxu0 0
    %799 = vmatpush1.bf16.msra.mxu0 %v780
    %800 = vmatprep.subr.bf16.mxu0 0
    %801 = vmatpush1.bf16.msra.mxu0 %v778
    %802 = vmatprep.subr.bf16.mxu0 0
    %803 = vmatpush2.bf16.msra.mxu0 0
    %804 = vmatprep.subr.bf16.mxu0 0
    %805 = vmatpush2.bf16.msra.mxu0 0
    %806 = vmatprep.subr.bf16.mxu0 0
    %807 = vmatpush2.bf16.msra.mxu0 0
    %808 = vmatprep.subr.bf16.mxu0 0
    %809 = vmatpush2.bf16.msra.mxu0 0
    %810 = vmatprep.subr.bf16.mxu0 0
    %811 = vmatpush2.bf16.msra.mxu0 0
    %812 = vmatprep.subr.bf16.mxu0 0
    %813 = vmatpush2.bf16.msra.mxu0 0
    %814 = vmatprep.subr.bf16.mxu0 0
    %815 = vmatpush2.bf16.msra.mxu0 0
    %816 = vmatprep.subr.bf16.mxu0 0
    %817 = vmatpush2.bf16.msra.mxu0 0
    %818 = vmatprep.mubr.bf16.mxu0 0
    %819 = vmatmul.mubr.bf16.gmra.mxu0 %v417
    %v820 = vpop.f32.mrf.mxu0
    %v821 = vadd.f32 %v784, %v820
    %v822 = vpop.f32.mrf.mxu0
    %v823 = vpop.f32.mrf.mxu0
    %v824 = vadd.f32 %v784, %v823
    %v825 = vpop.f32.mrf.mxu0
    %826 = vmatprep.mubr.bf16.mxu0 0
    %827 = vmatmul.mubr.bf16.gmra.mxu0 %v420
    %v828 = vpop.f32.mrf.mxu0
    %v829 = vadd.f32 %v784, %v828
    %v830 = vpop.f32.mrf.mxu0
    %v831 = vpop.f32.mrf.mxu0
    %v832 = vadd.f32 %v784, %v831
    %v833 = vpop.f32.mrf.mxu0
    %834 = vmatprep.mubr.bf16.mxu0 0
    %835 = vmatmul.mubr.bf16.gmra.mxu0 %v423
    %v836 = vpop.f32.mrf.mxu0
    %v837 = vadd.f32 %v784, %v836
    %v838 = vpop.f32.mrf.mxu0
    %v839 = vpop.f32.mrf.mxu0
    %v840 = vadd.f32 %v784, %v839
    %v841 = vpop.f32.mrf.mxu0
    %842 = vmatprep.mubr.bf16.mxu0 0
    %843 = vmatmul.mubr.bf16.gmra.mxu0 %v426
    %v844 = vpop.f32.mrf.mxu0
    %v845 = vadd.f32 %v784, %v844
    %v846 = vpop.f32.mrf.mxu0
    %v847 = vpop.f32.mrf.mxu0
    %v848 = vpop.f32.mrf.mxu0
    %849 = vdwg.mxu0
    %850 = vrot.lane.b32.xlu0 %v511, 96
    %v851 = vpop.permute.xlu0 %850
    %852 = vrot.lane.b32.xlu0 %v512, 96
    %v853 = vpop.permute.xlu0 %852
    %856 = vrot.lane.b32.xlu0 %v501, 96
    %v857 = vpop.permute.xlu0 %856
    %859 = vmatprep.subr.bf16.mxu0 0
    %860 = vmatpush1.bf16.msra.mxu0 0
    %861 = vmatprep.subr.bf16.mxu0 0
    %862 = vmatpush1.bf16.msra.mxu0 0
    %863 = vmatprep.subr.bf16.mxu0 0
    %864 = vmatpush1.bf16.msra.mxu0 0
    %865 = vmatprep.subr.bf16.mxu0 0
    %866 = vmatpush1.bf16.msra.mxu0 0
    %867 = vmatprep.subr.bf16.mxu0 0
    %868 = vmatpush1.bf16.msra.mxu0 0
    %869 = vmatprep.subr.bf16.mxu0 0
    %870 = vmatpush1.bf16.msra.mxu0 0
    %871 = vmatprep.subr.bf16.mxu0 0
    %872 = vmatpush1.bf16.msra.mxu0 %v853
    %873 = vmatprep.subr.bf16.mxu0 0
    %874 = vmatpush1.bf16.msra.mxu0 %v851
    %875 = vmatprep.subr.bf16.mxu0 0
    %876 = vmatpush2.bf16.msra.mxu0 0
    %877 = vmatprep.subr.bf16.mxu0 0
    %878 = vmatpush2.bf16.msra.mxu0 0
    %879 = vmatprep.subr.bf16.mxu0 0
    %880 = vmatpush2.bf16.msra.mxu0 0
    %881 = vmatprep.subr.bf16.mxu0 0
    %882 = vmatpush2.bf16.msra.mxu0 0
    %883 = vmatprep.subr.bf16.mxu0 0
    %884 = vmatpush2.bf16.msra.mxu0 0
    %885 = vmatprep.subr.bf16.mxu0 0
    %886 = vmatpush2.bf16.msra.mxu0 0
    %887 = vmatprep.subr.bf16.mxu0 0
    %888 = vmatpush2.bf16.msra.mxu0 0
    %889 = vmatprep.subr.bf16.mxu0 0
    %890 = vmatpush2.bf16.msra.mxu0 0
    %891 = vmatprep.mubr.bf16.mxu0 0
    %892 = vmatmul.mubr.bf16.gmra.mxu0 %v417
    %v893 = vpop.f32.mrf.mxu0
    %v894 = vadd.f32 %v857, %v893
    %v895 = vpop.f32.mrf.mxu0
    %v896 = vpop.f32.mrf.mxu0
    %v897 = vadd.f32 %v857, %v896
    %v898 = vpop.f32.mrf.mxu0
    %899 = vmatprep.mubr.bf16.mxu0 0
    %900 = vmatmul.mubr.bf16.gmra.mxu0 %v420
    %v901 = vpop.f32.mrf.mxu0
    %v902 = vadd.f32 %v857, %v901
    %v903 = vpop.f32.mrf.mxu0
    %v904 = vpop.f32.mrf.mxu0
    %v905 = vadd.f32 %v857, %v904
    %v906 = vpop.f32.mrf.mxu0
    %907 = vmatprep.mubr.bf16.mxu0 0
    %908 = vmatmul.mubr.bf16.gmra.mxu0 %v423
    %v909 = vpop.f32.mrf.mxu0
    %v910 = vadd.f32 %v857, %v909
    %v911 = vpop.f32.mrf.mxu0
    %v912 = vpop.f32.mrf.mxu0
    %v913 = vadd.f32 %v857, %v912
    %v914 = vpop.f32.mrf.mxu0
    %915 = vmatprep.mubr.bf16.mxu0 0
    %916 = vmatmul.mubr.bf16.gmra.mxu0 %v426
    %v917 = vpop.f32.mrf.mxu0
    %v918 = vadd.f32 %v857, %v917
    %v919 = vpop.f32.mrf.mxu0
    %v920 = vpop.f32.mrf.mxu0
    %v921 = vpop.f32.mrf.mxu0
    %922 = vdwg.mxu0
    %v923 = vpack.c.bf16 %v772, %v772
    %v924 = vpack.c.bf16 %v824, %v821
    %v925 = vpack.c.bf16 %v832, %v829
    %v926 = vpack.c.bf16 %v840, %v837
    %v927 = vpack.c.bf16 %v845, %v845
    %v929 = vsel %vm415, %v923, 0
    %v932 = vsel %vm415, %v924, 0
    %v935 = vsel %vm415, %v925, 0
    %v938 = vsel %vm415, %v926, 0
    %v941 = vsel %vm415, %v927, 0
    %943 = vmatprep.subr.bf16.mxu0 0
    %944 = vmatpush1.bf16.xpose.msra.mxu0 0
    %945 = vmatprep.subr.bf16.mxu0 0
    %946 = vmatpush1.bf16.xpose.msra.mxu0 0
    %947 = vmatprep.subr.bf16.mxu0 0
    %948 = vmatpush1.bf16.xpose.msra.mxu0 0
    %949 = vmatprep.subr.bf16.mxu0 0
    %950 = vmatpush1.bf16.xpose.msra.mxu0 0
    %951 = vmatprep.subr.bf16.mxu0 0
    %952 = vmatpush1.bf16.xpose.msra.mxu0 %v941
    %953 = vmatprep.subr.bf16.mxu0 0
    %954 = vmatpush1.bf16.xpose.msra.mxu0 %v938
    %955 = vmatprep.subr.bf16.mxu0 0
    %956 = vmatpush1.bf16.xpose.msra.mxu0 %v935
    %957 = vmatprep.subr.bf16.mxu0 0
    %958 = vmatpush1.bf16.xpose.msra.mxu0 %v932
    %959 = vmatprep.subr.bf16.mxu0 0
    %960 = vmatpush2.bf16.xpose.msra.mxu0 0
    %961 = vmatprep.subr.bf16.mxu0 0
    %962 = vmatpush2.bf16.xpose.msra.mxu0 0
    %963 = vmatprep.subr.bf16.mxu0 0
    %964 = vmatpush2.bf16.xpose.msra.mxu0 0
    %965 = vmatprep.subr.bf16.mxu0 0
    %966 = vmatpush2.bf16.xpose.msra.mxu0 0
    %967 = vmatprep.subr.bf16.mxu0 0
    %968 = vmatpush2.bf16.xpose.msra.mxu0 0
    %969 = vmatprep.subr.bf16.mxu0 0
    %970 = vmatpush2.bf16.xpose.msra.mxu0 0
    %971 = vmatprep.subr.bf16.mxu0 0
    %972 = vmatpush2.bf16.xpose.msra.mxu0 0
    %973 = vmatprep.subr.bf16.mxu0 0
    %974 = vmatpush2.bf16.xpose.msra.mxu0 0
    %975 = vmatprep.mubr.bf16.mxu0 0
    %976 = vmatmul.mubr.bf16.gmra.mxu0 %v929
    %v977 = vpop.f32.mrf.mxu0
    %v978 = vadd.f32 0.0, %v977
    %v979 = vpop.f32.mrf.mxu0
    %v980 = vpop.f32.mrf.mxu0
    %v981 = vpop.f32.mrf.mxu0
    %982 = vdwg.mxu0
    %v983 = vsel %vm639, %v978, -inf
    %984 = vmax.xlane.f32.xlu0 %v983
    %v985 = vpop.xlane.xlu0 %984
    %v986 = vsub.f32 %v978, %v985
    %v987 = vmul.f32 %v986, 1.442695
    %v988 = vpow.pop %v987
    %v989 = vsel %vm639, %v988, 0.0
    %990 = vadd.xlane.f32.xlu0 %v989
    %v991 = vpop.xlane.xlu0 %990
    %v992 = vrcp.pop %v991
    %v993 = vmul.f32 %v988, %v992
    %v994 = vpack.c.bf16 %v993, %v993
    %v995 = vpack.c.bf16 %v897, %v894
    %v996 = vpack.c.bf16 %v905, %v902
    %v997 = vpack.c.bf16 %v913, %v910
    %v998 = vpack.c.bf16 %v918, %v918
    %v1000 = vsel %vm639, %v994, 0
    %v1003 = vand.u32 %v998, %v661
    %1005 = vmatprep.subr.bf16.mxu0 0
    %1006 = vmatpush1.bf16.msra.mxu0 0
    %1007 = vmatprep.subr.bf16.mxu0 0
    %1008 = vmatpush1.bf16.msra.mxu0 0
    %1009 = vmatprep.subr.bf16.mxu0 0
    %1010 = vmatpush1.bf16.msra.mxu0 0
    %1011 = vmatprep.subr.bf16.mxu0 0
    %1012 = vmatpush1.bf16.msra.mxu0 0
    %1013 = vmatprep.subr.bf16.mxu0 0
    %1014 = vmatpush1.bf16.msra.mxu0 %v1003
    %1015 = vmatprep.subr.bf16.mxu0 0
    %1016 = vmatpush1.bf16.msra.mxu0 %v997
    %1017 = vmatprep.subr.bf16.mxu0 0
    %1018 = vmatpush1.bf16.msra.mxu0 %v996
    %1019 = vmatprep.subr.bf16.mxu0 0
    %1020 = vmatpush1.bf16.msra.mxu0 %v995
    %1021 = vmatprep.subr.bf16.mxu0 0
    %1022 = vmatpush2.bf16.msra.mxu0 0
    %1023 = vmatprep.subr.bf16.mxu0 0
    %1024 = vmatpush2.bf16.msra.mxu0 0
    %1025 = vmatprep.subr.bf16.mxu0 0
    %1026 = vmatpush2.bf16.msra.mxu0 0
    %1027 = vmatprep.subr.bf16.mxu0 0
    %1028 = vmatpush2.bf16.msra.mxu0 0
    %1029 = vmatprep.subr.bf16.mxu0 0
    %1030 = vmatpush2.bf16.msra.mxu0 0
    %1031 = vmatprep.subr.bf16.mxu0 0
    %1032 = vmatpush2.bf16.msra.mxu0 0
    %1033 = vmatprep.subr.bf16.mxu0 0
    %1034 = vmatpush2.bf16.msra.mxu0 0
    %1035 = vmatprep.subr.bf16.mxu0 0
    %1036 = vmatpush2.bf16.msra.mxu0 0
    %1037 = vmatprep.mubr.bf16.mxu0 0
    %1038 = vmatmul.mubr.bf16.gmra.mxu0 %v1000
    %v1039 = vpop.f32.mrf.mxu0
    %v1040 = vadd.f32 0.0, %v1039
    %v1041 = vpop.f32.mrf.mxu0
    %v1042 = vpop.f32.mrf.mxu0
    %v1043 = vpop.f32.mrf.mxu0
    %1044 = vdwg.mxu0
    %v1045 = vpack.c.bf16 %v1040, %v1040
    %v1046 = vld [vmem:[%s8 + $0x10] sm:$0xf]
    %v1047 = vld [vmem:[%s8 + $0x14] sm:$0xf]
    %v1048 = vld [vmem:[%s8 + $0x18] sm:$0xf]
    %v1049 = vld [vmem:[%s8 + $0x1c] sm:$0xf]
    %v1054 = vunpack.c.l.b16 %v1046
    %v1055 = vunpack.c.l.b16 %v1047
    %v1056 = vunpack.c.l.b16 %v1048
    %v1057 = vunpack.c.l.b16 %v1049
    %v1058 = vpack.c.b16 %v1055, %v1054
    %v1059 = vpack.c.b16 %v1057, %v1056
    %v1063 = vsel %vm415, %v1045, 0
    %1065 = vmatprep.subr.bf16.mxu0 0
    %1066 = vmatpush1.bf16.msra.mxu0 0
    %1067 = vmatprep.subr.bf16.mxu0 0
    %1068 = vmatpush1.bf16.msra.mxu0 0
    %1069 = vmatprep.subr.bf16.mxu0 0
    %1070 = vmatpush1.bf16.msra.mxu0 0
    %1071 = vmatprep.subr.bf16.mxu0 0
    %1072 = vmatpush1.bf16.msra.mxu0 0
    %1073 = vmatprep.subr.bf16.mxu0 0
    %1074 = vmatpush1.bf16.msra.mxu0 0
    %1075 = vmatprep.subr.bf16.mxu0 0
    %1076 = vmatpush1.bf16.msra.mxu0 0
    %1077 = vmatprep.subr.bf16.mxu0 0
    %1078 = vmatpush1.bf16.msra.mxu0 %v1059
    %1079 = vmatprep.subr.bf16.mxu0 0
    %1080 = vmatpush1.bf16.msra.mxu0 %v1058
    %1081 = vmatprep.subr.bf16.mxu0 0
    %1082 = vmatpush2.bf16.msra.mxu0 0
    %1083 = vmatprep.subr.bf16.mxu0 0
    %1084 = vmatpush2.bf16.msra.mxu0 0
    %1085 = vmatprep.subr.bf16.mxu0 0
    %1086 = vmatpush2.bf16.msra.mxu0 0
    %1087 = vmatprep.subr.bf16.mxu0 0
    %1088 = vmatpush2.bf16.msra.mxu0 0
    %1089 = vmatprep.subr.bf16.mxu0 0
    %1090 = vmatpush2.bf16.msra.mxu0 0
    %1091 = vmatprep.subr.bf16.mxu0 0
    %1092 = vmatpush2.bf16.msra.mxu0 0
    %1093 = vmatprep.subr.bf16.mxu0 0
    %1094 = vmatpush2.bf16.msra.mxu0 0
    %1095 = vmatprep.subr.bf16.mxu0 0
    %1096 = vmatpush2.bf16.msra.mxu0 0
    %1097 = vmatprep.mubr.bf16.mxu0 0
    %1098 = vmatmul.mubr.bf16.gmra.mxu0 %v1063
    %v1099 = vpop.f32.mrf.mxu0
    %v1100 = vadd.f32 0.0, %v1099
    %v1101 = vpop.f32.mrf.mxu0
    %v1102 = vpop.f32.mrf.mxu0
    %v1103 = vpop.f32.mrf.mxu0
    %1104 = vdwg.mxu0
    %v1109 = vunpack.c.l.b16 %v706
    %v1110 = vunpack.c.l.b16 %v707
    %v1111 = vunpack.c.l.b16 %v708
    %v1112 = vunpack.c.l.b16 %v709
    %v1113 = vpack.c.b16 %v1110, %v1109
    %v1114 = vpack.c.b16 %v1112, %v1111
    %v1118 = vsel %vm415, %v705, 0
    %1120 = vmatprep.subr.bf16.mxu0 0
    %1121 = vmatpush1.bf16.msra.mxu0 0
    %1122 = vmatprep.subr.bf16.mxu0 0
    %1123 = vmatpush1.bf16.msra.mxu0 0
    %1124 = vmatprep.subr.bf16.mxu0 0
    %1125 = vmatpush1.bf16.msra.mxu0 0
    %1126 = vmatprep.subr.bf16.mxu0 0
    %1127 = vmatpush1.bf16.msra.mxu0 0
    %1128 = vmatprep.subr.bf16.mxu0 0
    %1129 = vmatpush1.bf16.msra.mxu0 0
    %1130 = vmatprep.subr.bf16.mxu0 0
    %1131 = vmatpush1.bf16.msra.mxu0 0
    %1132 = vmatprep.subr.bf16.mxu0 0
    %1133 = vmatpush1.bf16.msra.mxu0 %v1114
    %1134 = vmatprep.subr.bf16.mxu0 0
    %1135 = vmatpush1.bf16.msra.mxu0 %v1113
    %1136 = vmatprep.subr.bf16.mxu0 0
    %1137 = vmatpush2.bf16.msra.mxu0 0
    %1138 = vmatprep.subr.bf16.mxu0 0
    %1139 = vmatpush2.bf16.msra.mxu0 0
    %1140 = vmatprep.subr.bf16.mxu0 0
    %1141 = vmatpush2.bf16.msra.mxu0 0
    %1142 = vmatprep.subr.bf16.mxu0 0
    %1143 = vmatpush2.bf16.msra.mxu0 0
    %1144 = vmatprep.subr.bf16.mxu0 0
    %1145 = vmatpush2.bf16.msra.mxu0 0
    %1146 = vmatprep.subr.bf16.mxu0 0
    %1147 = vmatpush2.bf16.msra.mxu0 0
    %1148 = vmatprep.subr.bf16.mxu0 0
    %1149 = vmatpush2.bf16.msra.mxu0 0
    %1150 = vmatprep.subr.bf16.mxu0 0
    %1151 = vmatpush2.bf16.msra.mxu0 0
    %1152 = vmatprep.mubr.bf16.mxu0 0
    %1153 = vmatmul.mubr.bf16.gmra.mxu0 %v1118
    %v1154 = vpop.f32.mrf.mxu0
    %v1155 = vadd.f32 %v1100, %v1154
    %v1156 = vpop.f32.mrf.mxu0
    %v1157 = vpop.f32.mrf.mxu0
    %v1158 = vpop.f32.mrf.mxu0
    %1159 = vdwg.mxu0
    %1160 = vrot.lane.b32.xlu0 %v336, 64
    %v1161 = vpop.permute.xlu0 %1160
    %1162 = vrot.lane.b32.xlu0 %v337, 64
    %v1163 = vpop.permute.xlu0 %1162
    %1164 = vrot.lane.b32.xlu0 %v338, 64
    %v1165 = vpop.permute.xlu0 %1164
    %1166 = vrot.lane.b32.xlu0 %v339, 64
    %v1167 = vpop.permute.xlu0 %1166
    %1168 = vrot.lane.b32.xlu0 %v340, 64
    %v1169 = vpop.permute.xlu0 %1168
    %1170 = vrot.lane.b32.xlu0 %v341, 64
    %v1171 = vpop.permute.xlu0 %1170
    %1172 = vrot.lane.b32.xlu0 %v342, 64
    %v1173 = vpop.permute.xlu0 %1172
    %1174 = vrot.lane.b32.xlu0 %v343, 64
    %v1175 = vpop.permute.xlu0 %1174
    %1184 = vrot.lane.b32.xlu0 %v302, 64
    %v1185 = vpop.permute.xlu0 %1184
    %1187 = vmatprep.subr.bf16.mxu0 0
    %1188 = vmatpush1.bf16.msra.mxu0 %v1175
    %1189 = vmatprep.subr.bf16.mxu0 0
    %1190 = vmatpush1.bf16.msra.mxu0 %v1173
    %1191 = vmatprep.subr.bf16.mxu0 0
    %1192 = vmatpush1.bf16.msra.mxu0 %v1171
    %1193 = vmatprep.subr.bf16.mxu0 0
    %1194 = vmatpush1.bf16.msra.mxu0 %v1169
    %1195 = vmatprep.subr.bf16.mxu0 0
    %1196 = vmatpush1.bf16.msra.mxu0 %v1167
    %1197 = vmatprep.subr.bf16.mxu0 0
    %1198 = vmatpush1.bf16.msra.mxu0 %v1165
    %1199 = vmatprep.subr.bf16.mxu0 0
    %1200 = vmatpush1.bf16.msra.mxu0 %v1163
    %1201 = vmatprep.subr.bf16.mxu0 0
    %1202 = vmatpush1.bf16.msra.mxu0 %v1161
    %1203 = vmatprep.subr.bf16.mxu0 0
    %1204 = vmatpush2.bf16.msra.mxu0 0
    %1205 = vmatprep.subr.bf16.mxu0 0
    %1206 = vmatpush2.bf16.msra.mxu0 0
    %1207 = vmatprep.subr.bf16.mxu0 0
    %1208 = vmatpush2.bf16.msra.mxu0 0
    %1209 = vmatprep.subr.bf16.mxu0 0
    %1210 = vmatpush2.bf16.msra.mxu0 0
    %1211 = vmatprep.subr.bf16.mxu0 0
    %1212 = vmatpush2.bf16.msra.mxu0 0
    %1213 = vmatprep.subr.bf16.mxu0 0
    %1214 = vmatpush2.bf16.msra.mxu0 0
    %1215 = vmatprep.subr.bf16.mxu0 0
    %1216 = vmatpush2.bf16.msra.mxu0 0
    %1217 = vmatprep.subr.bf16.mxu0 0
    %1218 = vmatpush2.bf16.msra.mxu0 0
    %1219 = vmatprep.mubr.bf16.mxu0 0
    %1220 = vmatmul.mubr.bf16.gmra.mxu0 %v269
    %v1221 = vpop.f32.mrf.mxu0
    %v1222 = vadd.f32 %v1185, %v1221
    %v1223 = vpop.f32.mrf.mxu0
    %v1224 = vpop.f32.mrf.mxu0
    %v1225 = vpop.f32.mrf.mxu0
    %1226 = vdwg.mxu0
    %1227 = vrot.lane.b32.xlu0 %v411, 64
    %v1228 = vpop.permute.xlu0 %1227
    %1229 = vrot.lane.b32.xlu0 %v412, 64
    %v1230 = vpop.permute.xlu0 %1229
    %1233 = vrot.lane.b32.xlu0 %v401, 64
    %v1234 = vpop.permute.xlu0 %1233
    %1236 = vmatprep.subr.bf16.mxu0 0
    %1237 = vmatpush1.bf16.msra.mxu0 0
    %1238 = vmatprep.subr.bf16.mxu0 0
    %1239 = vmatpush1.bf16.msra.mxu0 0
    %1240 = vmatprep.subr.bf16.mxu0 0
    %1241 = vmatpush1.bf16.msra.mxu0 0
    %1242 = vmatprep.subr.bf16.mxu0 0
    %1243 = vmatpush1.bf16.msra.mxu0 0
    %1244 = vmatprep.subr.bf16.mxu0 0
    %1245 = vmatpush1.bf16.msra.mxu0 0
    %1246 = vmatprep.subr.bf16.mxu0 0
    %1247 = vmatpush1.bf16.msra.mxu0 0
    %1248 = vmatprep.subr.bf16.mxu0 0
    %1249 = vmatpush1.bf16.msra.mxu0 %v1230
    %1250 = vmatprep.subr.bf16.mxu0 0
    %1251 = vmatpush1.bf16.msra.mxu0 %v1228
    %1252 = vmatprep.subr.bf16.mxu0 0
    %1253 = vmatpush2.bf16.msra.mxu0 0
    %1254 = vmatprep.subr.bf16.mxu0 0
    %1255 = vmatpush2.bf16.msra.mxu0 0
    %1256 = vmatprep.subr.bf16.mxu0 0
    %1257 = vmatpush2.bf16.msra.mxu0 0
    %1258 = vmatprep.subr.bf16.mxu0 0
    %1259 = vmatpush2.bf16.msra.mxu0 0
    %1260 = vmatprep.subr.bf16.mxu0 0
    %1261 = vmatpush2.bf16.msra.mxu0 0
    %1262 = vmatprep.subr.bf16.mxu0 0
    %1263 = vmatpush2.bf16.msra.mxu0 0
    %1264 = vmatprep.subr.bf16.mxu0 0
    %1265 = vmatpush2.bf16.msra.mxu0 0
    %1266 = vmatprep.subr.bf16.mxu0 0
    %1267 = vmatpush2.bf16.msra.mxu0 0
    %1268 = vmatprep.mubr.bf16.mxu0 0
    %1269 = vmatmul.mubr.bf16.gmra.mxu0 %v417
    %v1270 = vpop.f32.mrf.mxu0
    %v1271 = vadd.f32 %v1234, %v1270
    %v1272 = vpop.f32.mrf.mxu0
    %v1273 = vpop.f32.mrf.mxu0
    %v1274 = vadd.f32 %v1234, %v1273
    %v1275 = vpop.f32.mrf.mxu0
    %1276 = vmatprep.mubr.bf16.mxu0 0
    %1277 = vmatmul.mubr.bf16.gmra.mxu0 %v420
    %v1278 = vpop.f32.mrf.mxu0
    %v1279 = vadd.f32 %v1234, %v1278
    %v1280 = vpop.f32.mrf.mxu0
    %v1281 = vpop.f32.mrf.mxu0
    %v1282 = vadd.f32 %v1234, %v1281
    %v1283 = vpop.f32.mrf.mxu0
    %1284 = vmatprep.mubr.bf16.mxu0 0
    %1285 = vmatmul.mubr.bf16.gmra.mxu0 %v423
    %v1286 = vpop.f32.mrf.mxu0
    %v1287 = vadd.f32 %v1234, %v1286
    %v1288 = vpop.f32.mrf.mxu0
    %v1289 = vpop.f32.mrf.mxu0
    %v1290 = vadd.f32 %v1234, %v1289
    %v1291 = vpop.f32.mrf.mxu0
    %1292 = vmatprep.mubr.bf16.mxu0 0
    %1293 = vmatmul.mubr.bf16.gmra.mxu0 %v426
    %v1294 = vpop.f32.mrf.mxu0
    %v1295 = vadd.f32 %v1234, %v1294
    %v1296 = vpop.f32.mrf.mxu0
    %v1297 = vpop.f32.mrf.mxu0
    %v1298 = vpop.f32.mrf.mxu0
    %1299 = vdwg.mxu0
    %1300 = vrot.lane.b32.xlu0 %v511, 64
    %v1301 = vpop.permute.xlu0 %1300
    %1302 = vrot.lane.b32.xlu0 %v512, 64
    %v1303 = vpop.permute.xlu0 %1302
    %1306 = vrot.lane.b32.xlu0 %v501, 64
    %v1307 = vpop.permute.xlu0 %1306
    %1309 = vmatprep.subr.bf16.mxu0 0
    %1310 = vmatpush1.bf16.msra.mxu0 0
    %1311 = vmatprep.subr.bf16.mxu0 0
    %1312 = vmatpush1.bf16.msra.mxu0 0
    %1313 = vmatprep.subr.bf16.mxu0 0
    %1314 = vmatpush1.bf16.msra.mxu0 0
    %1315 = vmatprep.subr.bf16.mxu0 0
    %1316 = vmatpush1.bf16.msra.mxu0 0
    %1317 = vmatprep.subr.bf16.mxu0 0
    %1318 = vmatpush1.bf16.msra.mxu0 0
    %1319 = vmatprep.subr.bf16.mxu0 0
    %1320 = vmatpush1.bf16.msra.mxu0 0
    %1321 = vmatprep.subr.bf16.mxu0 0
    %1322 = vmatpush1.bf16.msra.mxu0 %v1303
    %1323 = vmatprep.subr.bf16.mxu0 0
    %1324 = vmatpush1.bf16.msra.mxu0 %v1301
    %1325 = vmatprep.subr.bf16.mxu0 0
    %1326 = vmatpush2.bf16.msra.mxu0 0
    %1327 = vmatprep.subr.bf16.mxu0 0
    %1328 = vmatpush2.bf16.msra.mxu0 0
    %1329 = vmatprep.subr.bf16.mxu0 0
    %1330 = vmatpush2.bf16.msra.mxu0 0
    %1331 = vmatprep.subr.bf16.mxu0 0
    %1332 = vmatpush2.bf16.msra.mxu0 0
    %1333 = vmatprep.subr.bf16.mxu0 0
    %1334 = vmatpush2.bf16.msra.mxu0 0
    %1335 = vmatprep.subr.bf16.mxu0 0
    %1336 = vmatpush2.bf16.msra.mxu0 0
    %1337 = vmatprep.subr.bf16.mxu0 0
    %1338 = vmatpush2.bf16.msra.mxu0 0
    %1339 = vmatprep.subr.bf16.mxu0 0
    %1340 = vmatpush2.bf16.msra.mxu0 0
    %1341 = vmatprep.mubr.bf16.mxu0 0
    %1342 = vmatmul.mubr.bf16.gmra.mxu0 %v417
    %v1343 = vpop.f32.mrf.mxu0
    %v1344 = vadd.f32 %v1307, %v1343
    %v1345 = vpop.f32.mrf.mxu0
    %v1346 = vpop.f32.mrf.mxu0
    %v1347 = vadd.f32 %v1307, %v1346
    %v1348 = vpop.f32.mrf.mxu0
    %1349 = vmatprep.mubr.bf16.mxu0 0
    %1350 = vmatmul.mubr.bf16.gmra.mxu0 %v420
    %v1351 = vpop.f32.mrf.mxu0
    %v1352 = vadd.f32 %v1307, %v1351
    %v1353 = vpop.f32.mrf.mxu0
    %v1354 = vpop.f32.mrf.mxu0
    %v1355 = vadd.f32 %v1307, %v1354
    %v1356 = vpop.f32.mrf.mxu0
    %1357 = vmatprep.mubr.bf16.mxu0 0
    %1358 = vmatmul.mubr.bf16.gmra.mxu0 %v423
    %v1359 = vpop.f32.mrf.mxu0
    %v1360 = vadd.f32 %v1307, %v1359
    %v1361 = vpop.f32.mrf.mxu0
    %v1362 = vpop.f32.mrf.mxu0
    %v1363 = vadd.f32 %v1307, %v1362
    %v1364 = vpop.f32.mrf.mxu0
    %1365 = vmatprep.mubr.bf16.mxu0 0
    %1366 = vmatmul.mubr.bf16.gmra.mxu0 %v426
    %v1367 = vpop.f32.mrf.mxu0
    %v1368 = vadd.f32 %v1307, %v1367
    %v1369 = vpop.f32.mrf.mxu0
    %v1370 = vpop.f32.mrf.mxu0
    %v1371 = vpop.f32.mrf.mxu0
    %1372 = vdwg.mxu0
    %v1373 = vpack.c.bf16 %v1222, %v1222
    %v1374 = vpack.c.bf16 %v1274, %v1271
    %v1375 = vpack.c.bf16 %v1282, %v1279
    %v1376 = vpack.c.bf16 %v1290, %v1287
    %v1377 = vpack.c.bf16 %v1295, %v1295
    %v1379 = vsel %vm415, %v1373, 0
    %v1382 = vsel %vm415, %v1374, 0
    %v1385 = vsel %vm415, %v1375, 0
    %v1388 = vsel %vm415, %v1376, 0
    %v1391 = vsel %vm415, %v1377, 0
    %1393 = vmatprep.subr.bf16.mxu0 0
    %1394 = vmatpush1.bf16.xpose.msra.mxu0 0
    %1395 = vmatprep.subr.bf16.mxu0 0
    %1396 = vmatpush1.bf16.xpose.msra.mxu0 0
    %1397 = vmatprep.subr.bf16.mxu0 0
    %1398 = vmatpush1.bf16.xpose.msra.mxu0 0
    %1399 = vmatprep.subr.bf16.mxu0 0
    %1400 = vmatpush1.bf16.xpose.msra.mxu0 0
    %1401 = vmatprep.subr.bf16.mxu0 0
    %1402 = vmatpush1.bf16.xpose.msra.mxu0 %v1391
    %1403 = vmatprep.subr.bf16.mxu0 0
    %1404 = vmatpush1.bf16.xpose.msra.mxu0 %v1388
    %1405 = vmatprep.subr.bf16.mxu0 0
    %1406 = vmatpush1.bf16.xpose.msra.mxu0 %v1385
    %1407 = vmatprep.subr.bf16.mxu0 0
    %1408 = vmatpush1.bf16.xpose.msra.mxu0 %v1382
    %1409 = vmatprep.subr.bf16.mxu0 0
    %1410 = vmatpush2.bf16.xpose.msra.mxu0 0
    %1411 = vmatprep.subr.bf16.mxu0 0
    %1412 = vmatpush2.bf16.xpose.msra.mxu0 0
    %1413 = vmatprep.subr.bf16.mxu0 0
    %1414 = vmatpush2.bf16.xpose.msra.mxu0 0
    %1415 = vmatprep.subr.bf16.mxu0 0
    %1416 = vmatpush2.bf16.xpose.msra.mxu0 0
    %1417 = vmatprep.subr.bf16.mxu0 0
    %1418 = vmatpush2.bf16.xpose.msra.mxu0 0
    %1419 = vmatprep.subr.bf16.mxu0 0
    %1420 = vmatpush2.bf16.xpose.msra.mxu0 0
    %1421 = vmatprep.subr.bf16.mxu0 0
    %1422 = vmatpush2.bf16.xpose.msra.mxu0 0
    %1423 = vmatprep.subr.bf16.mxu0 0
    %1424 = vmatpush2.bf16.xpose.msra.mxu0 0
    %1425 = vmatprep.mubr.bf16.mxu0 0
    %1426 = vmatmul.mubr.bf16.gmra.mxu0 %v1379
    %v1427 = vpop.f32.mrf.mxu0
    %v1428 = vadd.f32 0.0, %v1427
    %v1429 = vpop.f32.mrf.mxu0
    %v1430 = vpop.f32.mrf.mxu0
    %v1431 = vpop.f32.mrf.mxu0
    %1432 = vdwg.mxu0
    %v1433 = vsel %vm639, %v1428, -inf
    %1434 = vmax.xlane.f32.xlu0 %v1433
    %v1435 = vpop.xlane.xlu0 %1434
    %v1436 = vsub.f32 %v1428, %v1435
    %v1437 = vmul.f32 %v1436, 1.442695
    %v1438 = vpow.pop %v1437
    %v1439 = vsel %vm639, %v1438, 0.0
    %1440 = vadd.xlane.f32.xlu0 %v1439
    %v1441 = vpop.xlane.xlu0 %1440
    %v1442 = vrcp.pop %v1441
    %v1443 = vmul.f32 %v1438, %v1442
    %v1444 = vpack.c.bf16 %v1443, %v1443
    %v1445 = vpack.c.bf16 %v1347, %v1344
    %v1446 = vpack.c.bf16 %v1355, %v1352
    %v1447 = vpack.c.bf16 %v1363, %v1360
    %v1448 = vpack.c.bf16 %v1368, %v1368
    %v1450 = vsel %vm639, %v1444, 0
    %v1453 = vand.u32 %v1448, %v661
    %1455 = vmatprep.subr.bf16.mxu0 0
    %1456 = vmatpush1.bf16.msra.mxu0 0
    %1457 = vmatprep.subr.bf16.mxu0 0
    %1458 = vmatpush1.bf16.msra.mxu0 0
    %1459 = vmatprep.subr.bf16.mxu0 0
    %1460 = vmatpush1.bf16.msra.mxu0 0
    %1461 = vmatprep.subr.bf16.mxu0 0
    %1462 = vmatpush1.bf16.msra.mxu0 0
    %1463 = vmatprep.subr.bf16.mxu0 0
    %1464 = vmatpush1.bf16.msra.mxu0 %v1453
    %1465 = vmatprep.subr.bf16.mxu0 0
    %1466 = vmatpush1.bf16.msra.mxu0 %v1447
    %1467 = vmatprep.subr.bf16.mxu0 0
    %1468 = vmatpush1.bf16.msra.mxu0 %v1446
    %1469 = vmatprep.subr.bf16.mxu0 0
    %1470 = vmatpush1.bf16.msra.mxu0 %v1445
    %1471 = vmatprep.subr.bf16.mxu0 0
    %1472 = vmatpush2.bf16.msra.mxu0 0
    %1473 = vmatprep.subr.bf16.mxu0 0
    %1474 = vmatpush2.bf16.msra.mxu0 0
    %1475 = vmatprep.subr.bf16.mxu0 0
    %1476 = vmatpush2.bf16.msra.mxu0 0
    %1477 = vmatprep.subr.bf16.mxu0 0
    %1478 = vmatpush2.bf16.msra.mxu0 0
    %1479 = vmatprep.subr.bf16.mxu0 0
    %1480 = vmatpush2.bf16.msra.mxu0 0
    %1481 = vmatprep.subr.bf16.mxu0 0
    %1482 = vmatpush2.bf16.msra.mxu0 0
    %1483 = vmatprep.subr.bf16.mxu0 0
    %1484 = vmatpush2.bf16.msra.mxu0 0
    %1485 = vmatprep.subr.bf16.mxu0 0
    %1486 = vmatpush2.bf16.msra.mxu0 0
    %1487 = vmatprep.mubr.bf16.mxu0 0
    %1488 = vmatmul.mubr.bf16.gmra.mxu0 %v1450
    %v1489 = vpop.f32.mrf.mxu0
    %v1490 = vadd.f32 0.0, %v1489
    %v1491 = vpop.f32.mrf.mxu0
    %v1492 = vpop.f32.mrf.mxu0
    %v1493 = vpop.f32.mrf.mxu0
    %1494 = vdwg.mxu0
    %v1495 = vpack.c.bf16 %v1490, %v1490
    %v1496 = vld [vmem:[%s8 + $0x20] sm:$0xf]
    %v1497 = vld [vmem:[%s8 + $0x24] sm:$0xf]
    %v1498 = vld [vmem:[%s8 + $0x28] sm:$0xf]
    %v1499 = vld [vmem:[%s8 + $0x2c] sm:$0xf]
    %v1504 = vunpack.c.l.b16 %v1496
    %v1505 = vunpack.c.l.b16 %v1497
    %v1506 = vunpack.c.l.b16 %v1498
    %v1507 = vunpack.c.l.b16 %v1499
    %v1508 = vpack.c.b16 %v1505, %v1504
    %v1509 = vpack.c.b16 %v1507, %v1506
    %v1513 = vsel %vm415, %v1495, 0
    %1515 = vmatprep.subr.bf16.mxu0 0
    %1516 = vmatpush1.bf16.msra.mxu0 0
    %1517 = vmatprep.subr.bf16.mxu0 0
    %1518 = vmatpush1.bf16.msra.mxu0 0
    %1519 = vmatprep.subr.bf16.mxu0 0
    %1520 = vmatpush1.bf16.msra.mxu0 0
    %1521 = vmatprep.subr.bf16.mxu0 0
    %1522 = vmatpush1.bf16.msra.mxu0 0
    %1523 = vmatprep.subr.bf16.mxu0 0
    %1524 = vmatpush1.bf16.msra.mxu0 0
    %1525 = vmatprep.subr.bf16.mxu0 0
    %1526 = vmatpush1.bf16.msra.mxu0 0
    %1527 = vmatprep.subr.bf16.mxu0 0
    %1528 = vmatpush1.bf16.msra.mxu0 %v1509
    %1529 = vmatprep.subr.bf16.mxu0 0
    %1530 = vmatpush1.bf16.msra.mxu0 %v1508
    %1531 = vmatprep.subr.bf16.mxu0 0
    %1532 = vmatpush2.bf16.msra.mxu0 0
    %1533 = vmatprep.subr.bf16.mxu0 0
    %1534 = vmatpush2.bf16.msra.mxu0 0
    %1535 = vmatprep.subr.bf16.mxu0 0
    %1536 = vmatpush2.bf16.msra.mxu0 0
    %1537 = vmatprep.subr.bf16.mxu0 0
    %1538 = vmatpush2.bf16.msra.mxu0 0
    %1539 = vmatprep.subr.bf16.mxu0 0
    %1540 = vmatpush2.bf16.msra.mxu0 0
    %1541 = vmatprep.subr.bf16.mxu0 0
    %1542 = vmatpush2.bf16.msra.mxu0 0
    %1543 = vmatprep.subr.bf16.mxu0 0
    %1544 = vmatpush2.bf16.msra.mxu0 0
    %1545 = vmatprep.subr.bf16.mxu0 0
    %1546 = vmatpush2.bf16.msra.mxu0 0
    %1547 = vmatprep.mubr.bf16.mxu0 0
    %1548 = vmatmul.mubr.bf16.gmra.mxu0 %v1513
    %v1549 = vpop.f32.mrf.mxu0
    %v1550 = vadd.f32 0.0, %v1549
    %v1551 = vpop.f32.mrf.mxu0
    %v1552 = vpop.f32.mrf.mxu0
    %v1553 = vpop.f32.mrf.mxu0
    %1554 = vdwg.mxu0
    %v1555 = vadd.f32 %v1155, %v1550
    %1556 = vrot.lane.b32.xlu0 %v336, 32
    %v1557 = vpop.permute.xlu0 %1556
    %1558 = vrot.lane.b32.xlu0 %v337, 32
    %v1559 = vpop.permute.xlu0 %1558
    %1560 = vrot.lane.b32.xlu0 %v338, 32
    %v1561 = vpop.permute.xlu0 %1560
    %1562 = vrot.lane.b32.xlu0 %v339, 32
    %v1563 = vpop.permute.xlu0 %1562
    %1564 = vrot.lane.b32.xlu0 %v340, 32
    %v1565 = vpop.permute.xlu0 %1564
    %1566 = vrot.lane.b32.xlu0 %v341, 32
    %v1567 = vpop.permute.xlu0 %1566
    %1568 = vrot.lane.b32.xlu0 %v342, 32
    %v1569 = vpop.permute.xlu0 %1568
    %1570 = vrot.lane.b32.xlu0 %v343, 32
    %v1571 = vpop.permute.xlu0 %1570
    %1580 = vrot.lane.b32.xlu0 %v302, 32
    %v1581 = vpop.permute.xlu0 %1580
    %1583 = vmatprep.subr.bf16.mxu0 0
    %1584 = vmatpush1.bf16.msra.mxu0 %v1571
    %1585 = vmatprep.subr.bf16.mxu0 0
    %1586 = vmatpush1.bf16.msra.mxu0 %v1569
    %1587 = vmatprep.subr.bf16.mxu0 0
    %1588 = vmatpush1.bf16.msra.mxu0 %v1567
    %1589 = vmatprep.subr.bf16.mxu0 0
    %1590 = vmatpush1.bf16.msra.mxu0 %v1565
    %1591 = vmatprep.subr.bf16.mxu0 0
    %1592 = vmatpush1.bf16.msra.mxu0 %v1563
    %1593 = vmatprep.subr.bf16.mxu0 0
    %1594 = vmatpush1.bf16.msra.mxu0 %v1561
    %1595 = vmatprep.subr.bf16.mxu0 0
    %1596 = vmatpush1.bf16.msra.mxu0 %v1559
    %1597 = vmatprep.subr.bf16.mxu0 0
    %1598 = vmatpush1.bf16.msra.mxu0 %v1557
    %1599 = vmatprep.subr.bf16.mxu0 0
    %1600 = vmatpush2.bf16.msra.mxu0 0
    %1601 = vmatprep.subr.bf16.mxu0 0
    %1602 = vmatpush2.bf16.msra.mxu0 0
    %1603 = vmatprep.subr.bf16.mxu0 0
    %1604 = vmatpush2.bf16.msra.mxu0 0
    %1605 = vmatprep.subr.bf16.mxu0 0
    %1606 = vmatpush2.bf16.msra.mxu0 0
    %1607 = vmatprep.subr.bf16.mxu0 0
    %1608 = vmatpush2.bf16.msra.mxu0 0
    %1609 = vmatprep.subr.bf16.mxu0 0
    %1610 = vmatpush2.bf16.msra.mxu0 0
    %1611 = vmatprep.subr.bf16.mxu0 0
    %1612 = vmatpush2.bf16.msra.mxu0 0
    %1613 = vmatprep.subr.bf16.mxu0 0
    %1614 = vmatpush2.bf16.msra.mxu0 0
    %1615 = vmatprep.mubr.bf16.mxu0 0
    %1616 = vmatmul.mubr.bf16.gmra.mxu0 %v269
    %v1617 = vpop.f32.mrf.mxu0
    %v1618 = vadd.f32 %v1581, %v1617
    %v1619 = vpop.f32.mrf.mxu0
    %v1620 = vpop.f32.mrf.mxu0
    %v1621 = vpop.f32.mrf.mxu0
    %1622 = vdwg.mxu0
    %1623 = vrot.lane.b32.xlu0 %v411, 32
    %v1624 = vpop.permute.xlu0 %1623
    %1625 = vrot.lane.b32.xlu0 %v412, 32
    %v1626 = vpop.permute.xlu0 %1625
    %1629 = vrot.lane.b32.xlu0 %v401, 32
    %v1630 = vpop.permute.xlu0 %1629
    %1632 = vmatprep.subr.bf16.mxu0 0
    %1633 = vmatpush1.bf16.msra.mxu0 0
    %1634 = vmatprep.subr.bf16.mxu0 0
    %1635 = vmatpush1.bf16.msra.mxu0 0
    %1636 = vmatprep.subr.bf16.mxu0 0
    %1637 = vmatpush1.bf16.msra.mxu0 0
    %1638 = vmatprep.subr.bf16.mxu0 0
    %1639 = vmatpush1.bf16.msra.mxu0 0
    %1640 = vmatprep.subr.bf16.mxu0 0
    %1641 = vmatpush1.bf16.msra.mxu0 0
    %1642 = vmatprep.subr.bf16.mxu0 0
    %1643 = vmatpush1.bf16.msra.mxu0 0
    %1644 = vmatprep.subr.bf16.mxu0 0
    %1645 = vmatpush1.bf16.msra.mxu0 %v1626
    %1646 = vmatprep.subr.bf16.mxu0 0
    %1647 = vmatpush1.bf16.msra.mxu0 %v1624
    %1648 = vmatprep.subr.bf16.mxu0 0
    %1649 = vmatpush2.bf16.msra.mxu0 0
    %1650 = vmatprep.subr.bf16.mxu0 0
    %1651 = vmatpush2.bf16.msra.mxu0 0
    %1652 = vmatprep.subr.bf16.mxu0 0
    %1653 = vmatpush2.bf16.msra.mxu0 0
    %1654 = vmatprep.subr.bf16.mxu0 0
    %1655 = vmatpush2.bf16.msra.mxu0 0
    %1656 = vmatprep.subr.bf16.mxu0 0
    %1657 = vmatpush2.bf16.msra.mxu0 0
    %1658 = vmatprep.subr.bf16.mxu0 0
    %1659 = vmatpush2.bf16.msra.mxu0 0
    %1660 = vmatprep.subr.bf16.mxu0 0
    %1661 = vmatpush2.bf16.msra.mxu0 0
    %1662 = vmatprep.subr.bf16.mxu0 0
    %1663 = vmatpush2.bf16.msra.mxu0 0
    %1664 = vmatprep.mubr.bf16.mxu0 0
    %1665 = vmatmul.mubr.bf16.gmra.mxu0 %v417
    %v1666 = vpop.f32.mrf.mxu0
    %v1667 = vadd.f32 %v1630, %v1666
    %v1668 = vpop.f32.mrf.mxu0
    %v1669 = vpop.f32.mrf.mxu0
    %v1670 = vadd.f32 %v1630, %v1669
    %v1671 = vpop.f32.mrf.mxu0
    %1672 = vmatprep.mubr.bf16.mxu0 0
    %1673 = vmatmul.mubr.bf16.gmra.mxu0 %v420
    %v1674 = vpop.f32.mrf.mxu0
    %v1675 = vadd.f32 %v1630, %v1674
    %v1676 = vpop.f32.mrf.mxu0
    %v1677 = vpop.f32.mrf.mxu0
    %v1678 = vadd.f32 %v1630, %v1677
    %v1679 = vpop.f32.mrf.mxu0
    %1680 = vmatprep.mubr.bf16.mxu0 0
    %1681 = vmatmul.mubr.bf16.gmra.mxu0 %v423
    %v1682 = vpop.f32.mrf.mxu0
    %v1683 = vadd.f32 %v1630, %v1682
    %v1684 = vpop.f32.mrf.mxu0
    %v1685 = vpop.f32.mrf.mxu0
    %v1686 = vadd.f32 %v1630, %v1685
    %v1687 = vpop.f32.mrf.mxu0
    %1688 = vmatprep.mubr.bf16.mxu0 0
    %1689 = vmatmul.mubr.bf16.gmra.mxu0 %v426
    %v1690 = vpop.f32.mrf.mxu0
    %v1691 = vadd.f32 %v1630, %v1690
    %v1692 = vpop.f32.mrf.mxu0
    %v1693 = vpop.f32.mrf.mxu0
    %v1694 = vpop.f32.mrf.mxu0
    %1695 = vdwg.mxu0
    %1696 = vrot.lane.b32.xlu0 %v511, 32
    %v1697 = vpop.permute.xlu0 %1696
    %1698 = vrot.lane.b32.xlu0 %v512, 32
    %v1699 = vpop.permute.xlu0 %1698
    %1702 = vrot.lane.b32.xlu0 %v501, 32
    %v1703 = vpop.permute.xlu0 %1702
    %1705 = vmatprep.subr.bf16.mxu0 0
    %1706 = vmatpush1.bf16.msra.mxu0 0
    %1707 = vmatprep.subr.bf16.mxu0 0
    %1708 = vmatpush1.bf16.msra.mxu0 0
    %1709 = vmatprep.subr.bf16.mxu0 0
    %1710 = vmatpush1.bf16.msra.mxu0 0
    %1711 = vmatprep.subr.bf16.mxu0 0
    %1712 = vmatpush1.bf16.msra.mxu0 0
    %1713 = vmatprep.subr.bf16.mxu0 0
    %1714 = vmatpush1.bf16.msra.mxu0 0
    %1715 = vmatprep.subr.bf16.mxu0 0
    %1716 = vmatpush1.bf16.msra.mxu0 0
    %1717 = vmatprep.subr.bf16.mxu0 0
    %1718 = vmatpush1.bf16.msra.mxu0 %v1699
    %1719 = vmatprep.subr.bf16.mxu0 0
    %1720 = vmatpush1.bf16.msra.mxu0 %v1697
    %1721 = vmatprep.subr.bf16.mxu0 0
    %1722 = vmatpush2.bf16.msra.mxu0 0
    %1723 = vmatprep.subr.bf16.mxu0 0
    %1724 = vmatpush2.bf16.msra.mxu0 0
    %1725 = vmatprep.subr.bf16.mxu0 0
    %1726 = vmatpush2.bf16.msra.mxu0 0
    %1727 = vmatprep.subr.bf16.mxu0 0
    %1728 = vmatpush2.bf16.msra.mxu0 0
    %1729 = vmatprep.subr.bf16.mxu0 0
    %1730 = vmatpush2.bf16.msra.mxu0 0
    %1731 = vmatprep.subr.bf16.mxu0 0
    %1732 = vmatpush2.bf16.msra.mxu0 0
    %1733 = vmatprep.subr.bf16.mxu0 0
    %1734 = vmatpush2.bf16.msra.mxu0 0
    %1735 = vmatprep.subr.bf16.mxu0 0
    %1736 = vmatpush2.bf16.msra.mxu0 0
    %1737 = vmatprep.mubr.bf16.mxu0 0
    %1738 = vmatmul.mubr.bf16.gmra.mxu0 %v417
    %v1739 = vpop.f32.mrf.mxu0
    %v1740 = vadd.f32 %v1703, %v1739
    %v1741 = vpop.f32.mrf.mxu0
    %v1742 = vpop.f32.mrf.mxu0
    %v1743 = vadd.f32 %v1703, %v1742
    %v1744 = vpop.f32.mrf.mxu0
    %1745 = vmatprep.mubr.bf16.mxu0 0
    %1746 = vmatmul.mubr.bf16.gmra.mxu0 %v420
    %v1747 = vpop.f32.mrf.mxu0
    %v1748 = vadd.f32 %v1703, %v1747
    %v1749 = vpop.f32.mrf.mxu0
    %v1750 = vpop.f32.mrf.mxu0
    %v1751 = vadd.f32 %v1703, %v1750
    %v1752 = vpop.f32.mrf.mxu0
    %1753 = vmatprep.mubr.bf16.mxu0 0
    %1754 = vmatmul.mubr.bf16.gmra.mxu0 %v423
    %v1755 = vpop.f32.mrf.mxu0
    %v1756 = vadd.f32 %v1703, %v1755
    %v1757 = vpop.f32.mrf.mxu0
    %v1758 = vpop.f32.mrf.mxu0
    %v1759 = vadd.f32 %v1703, %v1758
    %v1760 = vpop.f32.mrf.mxu0
    %1761 = vmatprep.mubr.bf16.mxu0 0
    %1762 = vmatmul.mubr.bf16.gmra.mxu0 %v426
    %v1763 = vpop.f32.mrf.mxu0
    %v1764 = vadd.f32 %v1703, %v1763
    %v1765 = vpop.f32.mrf.mxu0
    %v1766 = vpop.f32.mrf.mxu0
    %v1767 = vpop.f32.mrf.mxu0
    %1768 = vdwg.mxu0
    %v1769 = vpack.c.bf16 %v1618, %v1618
    %v1770 = vpack.c.bf16 %v1670, %v1667
    %v1771 = vpack.c.bf16 %v1678, %v1675
    %v1772 = vpack.c.bf16 %v1686, %v1683
    %v1773 = vpack.c.bf16 %v1691, %v1691
    %v1775 = vsel %vm415, %v1769, 0
    %v1778 = vsel %vm415, %v1770, 0
    %v1781 = vsel %vm415, %v1771, 0
    %v1784 = vsel %vm415, %v1772, 0
    %v1787 = vsel %vm415, %v1773, 0
    %1789 = vmatprep.subr.bf16.mxu0 0
    %1790 = vmatpush1.bf16.xpose.msra.mxu0 0
    %1791 = vmatprep.subr.bf16.mxu0 0
    %1792 = vmatpush1.bf16.xpose.msra.mxu0 0
    %1793 = vmatprep.subr.bf16.mxu0 0
    %1794 = vmatpush1.bf16.xpose.msra.mxu0 0
    %1795 = vmatprep.subr.bf16.mxu0 0
    %1796 = vmatpush1.bf16.xpose.msra.mxu0 0
    %1797 = vmatprep.subr.bf16.mxu0 0
    %1798 = vmatpush1.bf16.xpose.msra.mxu0 %v1787
    %1799 = vmatprep.subr.bf16.mxu0 0
    %1800 = vmatpush1.bf16.xpose.msra.mxu0 %v1784
    %1801 = vmatprep.subr.bf16.mxu0 0
    %1802 = vmatpush1.bf16.xpose.msra.mxu0 %v1781
    %1803 = vmatprep.subr.bf16.mxu0 0
    %1804 = vmatpush1.bf16.xpose.msra.mxu0 %v1778
    %1805 = vmatprep.subr.bf16.mxu0 0
    %1806 = vmatpush2.bf16.xpose.msra.mxu0 0
    %1807 = vmatprep.subr.bf16.mxu0 0
    %1808 = vmatpush2.bf16.xpose.msra.mxu0 0
    %1809 = vmatprep.subr.bf16.mxu0 0
    %1810 = vmatpush2.bf16.xpose.msra.mxu0 0
    %1811 = vmatprep.subr.bf16.mxu0 0
    %1812 = vmatpush2.bf16.xpose.msra.mxu0 0
    %1813 = vmatprep.subr.bf16.mxu0 0
    %1814 = vmatpush2.bf16.xpose.msra.mxu0 0
    %1815 = vmatprep.subr.bf16.mxu0 0
    %1816 = vmatpush2.bf16.xpose.msra.mxu0 0
    %1817 = vmatprep.subr.bf16.mxu0 0
    %1818 = vmatpush2.bf16.xpose.msra.mxu0 0
    %1819 = vmatprep.subr.bf16.mxu0 0
    %1820 = vmatpush2.bf16.xpose.msra.mxu0 0
    %1821 = vmatprep.mubr.bf16.mxu0 0
    %1822 = vmatmul.mubr.bf16.gmra.mxu0 %v1775
    %v1823 = vpop.f32.mrf.mxu0
    %v1824 = vadd.f32 0.0, %v1823
    %v1825 = vpop.f32.mrf.mxu0
    %v1826 = vpop.f32.mrf.mxu0
    %v1827 = vpop.f32.mrf.mxu0
    %1828 = vdwg.mxu0
    %v1829 = vsel %vm639, %v1824, -inf
    %1830 = vmax.xlane.f32.xlu0 %v1829
    %v1831 = vpop.xlane.xlu0 %1830
    %v1832 = vsub.f32 %v1824, %v1831
    %v1833 = vmul.f32 %v1832, 1.442695
    %v1834 = vpow.pop %v1833
    %v1835 = vsel %vm639, %v1834, 0.0
    %1836 = vadd.xlane.f32.xlu0 %v1835
    %v1837 = vpop.xlane.xlu0 %1836
    %v1838 = vrcp.pop %v1837
    %v1839 = vmul.f32 %v1834, %v1838
    %v1840 = vpack.c.bf16 %v1839, %v1839
    %v1841 = vpack.c.bf16 %v1743, %v1740
    %v1842 = vpack.c.bf16 %v1751, %v1748
    %v1843 = vpack.c.bf16 %v1759, %v1756
    %v1844 = vpack.c.bf16 %v1764, %v1764
    %v1846 = vsel %vm639, %v1840, 0
    %v1849 = vand.u32 %v1844, %v661
    %1851 = vmatprep.subr.bf16.mxu0 0
    %1852 = vmatpush1.bf16.msra.mxu0 0
    %1853 = vmatprep.subr.bf16.mxu0 0
    %1854 = vmatpush1.bf16.msra.mxu0 0
    %1855 = vmatprep.subr.bf16.mxu0 0
    %1856 = vmatpush1.bf16.msra.mxu0 0
    %1857 = vmatprep.subr.bf16.mxu0 0
    %1858 = vmatpush1.bf16.msra.mxu0 0
    %1859 = vmatprep.subr.bf16.mxu0 0
    %1860 = vmatpush1.bf16.msra.mxu0 %v1849
    %1861 = vmatprep.subr.bf16.mxu0 0
    %1862 = vmatpush1.bf16.msra.mxu0 %v1843
    %1863 = vmatprep.subr.bf16.mxu0 0
    %1864 = vmatpush1.bf16.msra.mxu0 %v1842
    %1865 = vmatprep.subr.bf16.mxu0 0
    %1866 = vmatpush1.bf16.msra.mxu0 %v1841
    %1867 = vmatprep.subr.bf16.mxu0 0
    %1868 = vmatpush2.bf16.msra.mxu0 0
    %1869 = vmatprep.subr.bf16.mxu0 0
    %1870 = vmatpush2.bf16.msra.mxu0 0
    %1871 = vmatprep.subr.bf16.mxu0 0
    %1872 = vmatpush2.bf16.msra.mxu0 0
    %1873 = vmatprep.subr.bf16.mxu0 0
    %1874 = vmatpush2.bf16.msra.mxu0 0
    %1875 = vmatprep.subr.bf16.mxu0 0
    %1876 = vmatpush2.bf16.msra.mxu0 0
    %1877 = vmatprep.subr.bf16.mxu0 0
    %1878 = vmatpush2.bf16.msra.mxu0 0
    %1879 = vmatprep.subr.bf16.mxu0 0
    %1880 = vmatpush2.bf16.msra.mxu0 0
    %1881 = vmatprep.subr.bf16.mxu0 0
    %1882 = vmatpush2.bf16.msra.mxu0 0
    %1883 = vmatprep.mubr.bf16.mxu0 0
    %1884 = vmatmul.mubr.bf16.gmra.mxu0 %v1846
    %v1885 = vpop.f32.mrf.mxu0
    %v1886 = vadd.f32 0.0, %v1885
    %v1887 = vpop.f32.mrf.mxu0
    %v1888 = vpop.f32.mrf.mxu0
    %v1889 = vpop.f32.mrf.mxu0
    %1890 = vdwg.mxu0
    %v1891 = vpack.c.bf16 %v1886, %v1886
    %v1892 = vld [vmem:[%s8 + $0x30] sm:$0xf]
    %v1893 = vld [vmem:[%s8 + $0x34] sm:$0xf]
    %v1894 = vld [vmem:[%s8 + $0x38] sm:$0xf]
    %v1895 = vld [vmem:[%s8 + $0x3c] sm:$0xf]
    %v1900 = vunpack.c.l.b16 %v1892
    %v1901 = vunpack.c.l.b16 %v1893
    %v1902 = vunpack.c.l.b16 %v1894
    %v1903 = vunpack.c.l.b16 %v1895
    %v1904 = vpack.c.b16 %v1901, %v1900
    %v1905 = vpack.c.b16 %v1903, %v1902
    %v1909 = vsel %vm415, %v1891, 0
    %1911 = vmatprep.subr.bf16.mxu0 0
    %1912 = vmatpush1.bf16.msra.mxu0 0
    %1913 = vmatprep.subr.bf16.mxu0 0
    %1914 = vmatpush1.bf16.msra.mxu0 0
    %1915 = vmatprep.subr.bf16.mxu0 0
    %1916 = vmatpush1.bf16.msra.mxu0 0
    %1917 = vmatprep.subr.bf16.mxu0 0
    %1918 = vmatpush1.bf16.msra.mxu0 0
    %1919 = vmatprep.subr.bf16.mxu0 0
    %1920 = vmatpush1.bf16.msra.mxu0 0
    %1921 = vmatprep.subr.bf16.mxu0 0
    %1922 = vmatpush1.bf16.msra.mxu0 0
    %1923 = vmatprep.subr.bf16.mxu0 0
    %1924 = vmatpush1.bf16.msra.mxu0 %v1905
    %1925 = vmatprep.subr.bf16.mxu0 0
    %1926 = vmatpush1.bf16.msra.mxu0 %v1904
    %1927 = vmatprep.subr.bf16.mxu0 0
    %1928 = vmatpush2.bf16.msra.mxu0 0
    %1929 = vmatprep.subr.bf16.mxu0 0
    %1930 = vmatpush2.bf16.msra.mxu0 0
    %1931 = vmatprep.subr.bf16.mxu0 0
    %1932 = vmatpush2.bf16.msra.mxu0 0
    %1933 = vmatprep.subr.bf16.mxu0 0
    %1934 = vmatpush2.bf16.msra.mxu0 0
    %1935 = vmatprep.subr.bf16.mxu0 0
    %1936 = vmatpush2.bf16.msra.mxu0 0
    %1937 = vmatprep.subr.bf16.mxu0 0
    %1938 = vmatpush2.bf16.msra.mxu0 0
    %1939 = vmatprep.subr.bf16.mxu0 0
    %1940 = vmatpush2.bf16.msra.mxu0 0
    %1941 = vmatprep.subr.bf16.mxu0 0
    %1942 = vmatpush2.bf16.msra.mxu0 0
    %1943 = vmatprep.mubr.bf16.mxu0 0
    %1944 = vmatmul.mubr.bf16.gmra.mxu0 %v1909
    %v1945 = vpop.f32.mrf.mxu0
    %v1946 = vadd.f32 0.0, %v1945
    %v1947 = vpop.f32.mrf.mxu0
    %v1948 = vpop.f32.mrf.mxu0
    %v1949 = vpop.f32.mrf.mxu0
    %1950 = vdwg.mxu0
    %v1951 = vadd.f32 %v1555, %v1946
    %v1952 = vld [vmem:[%s9] sm:$0x1]
    %v1954 = vlaneseq
    %v1955 = vshrl.u32 %v1954, 7
    %v1956 = vsub.s32 0, %v1955
    %v1957 = vrot.slane %v1952, %v1956
    %v1959 = vadd.f32 %v1951, %v1957
    %1960 = vst [vmem:[#allocation4] sm:$0xff] %v1959
    %v1961 = vld [vmem:[%s0 + $0x8] sm:$0xff]
    %v1962 = vpack.c.bf16 %v1961, %v1961
    %s1963 = scalar_lea.vmem %s1, 56
    %v1964 = vld [vmem:[%s1963] sm:$0xff]
    %v1965 = vld [vmem:[%s1963 + $0x8] sm:$0xff]
    %v1966 = vld [vmem:[%s1963 + $0x10] sm:$0xff]
    %v1967 = vld [vmem:[%s1963 + $0x18] sm:$0xff]
    %v1968 = vld [vmem:[%s1963 + $0x20] sm:$0xff]
    %v1969 = vld [vmem:[%s1963 + $0x28] sm:$0xff]
    %v1970 = vld [vmem:[%s1963 + $0x30] sm:$0x1]
    %v1971 = vpack.c.bf16 %v1965, %v1964
    %v1972 = vpack.c.bf16 %v1967, %v1966
    %v1973 = vpack.c.bf16 %v1969, %v1968
    %v1974 = vpack.c.bf16 %v1970, %v1970
    %v1975 = vld [vmem:[%s2] sm:$0xf]
    %v1976 = vld [vmem:[%s2 + $0x4] sm:$0xf]
    %v1977 = vld [vmem:[%s2 + $0x8] sm:$0xf]
    %v1978 = vld [vmem:[%s2 + $0xc] sm:$0xf]
    %v1979 = vld [vmem:[%s2 + $0x10] sm:$0xf]
    %v1980 = vld [vmem:[%s2 + $0x14] sm:$0xf]
    %v1981 = vld [vmem:[%s2 + $0x18] sm:$0xf]
    %v1982 = vld [vmem:[%s2 + $0x1c] sm:$0xf]
    %v1983 = vld [vmem:[%s2 + $0x20] sm:$0xf]
    %v1984 = vld [vmem:[%s2 + $0x24] sm:$0xf]
    %v1985 = vld [vmem:[%s2 + $0x28] sm:$0xf]
    %v1986 = vld [vmem:[%s2 + $0x2c] sm:$0xf]
    %v1987 = vld [vmem:[%s2 + $0x30] sm:$0xf]
    %v1988 = vld [vmem:[%s2 + $0x34] sm:$0xf]
    %v1989 = vld [vmem:[%s2 + $0x38] sm:$0xf]
    %v1990 = vld [vmem:[%s2 + $0x3c] sm:$0xf]
    %v1991 = vld [vmem:[%s3] sm:$0x1]
    %v1993 = vlaneseq
    %v1994 = vshrl.u32 %v1993, 7
    %v1995 = vsub.s32 0, %v1994
    %v1996 = vrot.slane %v1991, %v1995
    %v2014 = vunpack.c.l.b16 %v1975
    %v2015 = vunpack.c.l.b16 %v1976
    %v2016 = vunpack.c.l.b16 %v1977
    %v2017 = vunpack.c.l.b16 %v1978
    %v2018 = vunpack.c.l.b16 %v1979
    %v2019 = vunpack.c.l.b16 %v1980
    %v2020 = vunpack.c.l.b16 %v1981
    %v2021 = vunpack.c.l.b16 %v1982
    %v2022 = vunpack.c.l.b16 %v1983
    %v2023 = vunpack.c.l.b16 %v1984
    %v2024 = vunpack.c.l.b16 %v1985
    %v2025 = vunpack.c.l.b16 %v1986
    %v2026 = vunpack.c.l.b16 %v1987
    %v2027 = vunpack.c.l.b16 %v1988
    %v2028 = vunpack.c.l.b16 %v1989
    %v2029 = vunpack.c.l.b16 %v1990
    %v2030 = vpack.c.b16 %v2015, %v2014
    %v2031 = vpack.c.b16 %v2017, %v2016
    %v2032 = vpack.c.b16 %v2019, %v2018
    %v2033 = vpack.c.b16 %v2021, %v2020
    %v2034 = vpack.c.b16 %v2023, %v2022
    %v2035 = vpack.c.b16 %v2025, %v2024
    %v2036 = vpack.c.b16 %v2027, %v2026
    %v2037 = vpack.c.b16 %v2029, %v2028
    %2046 = vmatprep.subr.bf16.mxu0 0
    %2047 = vmatpush1.bf16.msra.mxu0 %v2037
    %2048 = vmatprep.subr.bf16.mxu0 0
    %2049 = vmatpush1.bf16.msra.mxu0 %v2036
    %2050 = vmatprep.subr.bf16.mxu0 0
    %2051 = vmatpush1.bf16.msra.mxu0 %v2035
    %2052 = vmatprep.subr.bf16.mxu0 0
    %2053 = vmatpush1.bf16.msra.mxu0 %v2034
    %2054 = vmatprep.subr.bf16.mxu0 0
    %2055 = vmatpush1.bf16.msra.mxu0 %v2033
    %2056 = vmatprep.subr.bf16.mxu0 0
    %2057 = vmatpush1.bf16.msra.mxu0 %v2032
    %2058 = vmatprep.subr.bf16.mxu0 0
    %2059 = vmatpush1.bf16.msra.mxu0 %v2031
    %2060 = vmatprep.subr.bf16.mxu0 0
    %2061 = vmatpush1.bf16.msra.mxu0 %v2030
    %2062 = vmatprep.subr.bf16.mxu0 0
    %2063 = vmatpush2.bf16.msra.mxu0 0
    %2064 = vmatprep.subr.bf16.mxu0 0
    %2065 = vmatpush2.bf16.msra.mxu0 0
    %2066 = vmatprep.subr.bf16.mxu0 0
    %2067 = vmatpush2.bf16.msra.mxu0 0
    %2068 = vmatprep.subr.bf16.mxu0 0
    %2069 = vmatpush2.bf16.msra.mxu0 0
    %2070 = vmatprep.subr.bf16.mxu0 0
    %2071 = vmatpush2.bf16.msra.mxu0 0
    %2072 = vmatprep.subr.bf16.mxu0 0
    %2073 = vmatpush2.bf16.msra.mxu0 0
    %2074 = vmatprep.subr.bf16.mxu0 0
    %2075 = vmatpush2.bf16.msra.mxu0 0
    %2076 = vmatprep.subr.bf16.mxu0 0
    %2077 = vmatpush2.bf16.msra.mxu0 0
    %2078 = vmatprep.mubr.bf16.mxu0 0
    %2079 = vmatmul.mubr.bf16.gmra.mxu0 %v1962
    %v2080 = vpop.f32.mrf.mxu0
    %v2081 = vadd.f32 %v1996, %v2080
    %v2082 = vpop.f32.mrf.mxu0
    %v2083 = vpop.f32.mrf.mxu0
    %v2084 = vpop.f32.mrf.mxu0
    %2085 = vdwg.mxu0
    %v2086 = vld [vmem:[%s4] sm:$0xf]
    %v2087 = vld [vmem:[%s4 + $0x4] sm:$0xf]
    %v2088 = vld [vmem:[%s4 + $0x8] sm:$0xf]
    %v2089 = vld [vmem:[%s4 + $0xc] sm:$0xf]
    %v2090 = vld [vmem:[%s5] sm:$0x1]
    %v2092 = vlaneseq
    %v2093 = vshrl.u32 %v2092, 7
    %v2094 = vsub.s32 0, %v2093
    %v2095 = vrot.slane %v2090, %v2094
    %v2101 = vunpack.c.l.b16 %v2086
    %v2102 = vunpack.c.l.b16 %v2087
    %v2103 = vunpack.c.l.b16 %v2088
    %v2104 = vunpack.c.l.b16 %v2089
    %v2105 = vpack.c.b16 %v2102, %v2101
    %v2106 = vpack.c.b16 %v2104, %v2103
    %v2110 = vsel %vm415, %v1971, 0
    %v2113 = vsel %vm415, %v1972, 0
    %v2116 = vsel %vm415, %v1973, 0
    %v2119 = vsel %vm415, %v1974, 0
    %2121 = vmatprep.subr.bf16.mxu0 0
    %2122 = vmatpush1.bf16.msra.mxu0 0
    %2123 = vmatprep.subr.bf16.mxu0 0
    %2124 = vmatpush1.bf16.msra.mxu0 0
    %2125 = vmatprep.subr.bf16.mxu0 0
    %2126 = vmatpush1.bf16.msra.mxu0 0
    %2127 = vmatprep.subr.bf16.mxu0 0
    %2128 = vmatpush1.bf16.msra.mxu0 0
    %2129 = vmatprep.subr.bf16.mxu0 0
    %2130 = vmatpush1.bf16.msra.mxu0 0
    %2131 = vmatprep.subr.bf16.mxu0 0
    %2132 = vmatpush1.bf16.msra.mxu0 0
    %2133 = vmatprep.subr.bf16.mxu0 0
    %2134 = vmatpush1.bf16.msra.mxu0 %v2106
    %2135 = vmatprep.subr.bf16.mxu0 0
    %2136 = vmatpush1.bf16.msra.mxu0 %v2105
    %2137 = vmatprep.subr.bf16.mxu0 0
    %2138 = vmatpush2.bf16.msra.mxu0 0
    %2139 = vmatprep.subr.bf16.mxu0 0
    %2140 = vmatpush2.bf16.msra.mxu0 0
    %2141 = vmatprep.subr.bf16.mxu0 0
    %2142 = vmatpush2.bf16.msra.mxu0 0
    %2143 = vmatprep.subr.bf16.mxu0 0
    %2144 = vmatpush2.bf16.msra.mxu0 0
    %2145 = vmatprep.subr.bf16.mxu0 0
    %2146 = vmatpush2.bf16.msra.mxu0 0
    %2147 = vmatprep.subr.bf16.mxu0 0
    %2148 = vmatpush2.bf16.msra.mxu0 0
    %2149 = vmatprep.subr.bf16.mxu0 0
    %2150 = vmatpush2.bf16.msra.mxu0 0
    %2151 = vmatprep.subr.bf16.mxu0 0
    %2152 = vmatpush2.bf16.msra.mxu0 0
    %2153 = vmatprep.mubr.bf16.mxu0 0
    %2154 = vmatmul.mubr.bf16.gmra.mxu0 %v2110
    %v2155 = vpop.f32.mrf.mxu0
    %v2156 = vadd.f32 %v2095, %v2155
    %v2157 = vpop.f32.mrf.mxu0
    %v2158 = vpop.f32.mrf.mxu0
    %v2159 = vadd.f32 %v2095, %v2158
    %v2160 = vpop.f32.mrf.mxu0
    %2161 = vmatprep.mubr.bf16.mxu0 0
    %2162 = vmatmul.mubr.bf16.gmra.mxu0 %v2113
    %v2163 = vpop.f32.mrf.mxu0
    %v2164 = vadd.f32 %v2095, %v2163
    %v2165 = vpop.f32.mrf.mxu0
    %v2166 = vpop.f32.mrf.mxu0
    %v2167 = vadd.f32 %v2095, %v2166
    %v2168 = vpop.f32.mrf.mxu0
    %2169 = vmatprep.mubr.bf16.mxu0 0
    %2170 = vmatmul.mubr.bf16.gmra.mxu0 %v2116
    %v2171 = vpop.f32.mrf.mxu0
    %v2172 = vadd.f32 %v2095, %v2171
    %v2173 = vpop.f32.mrf.mxu0
    %v2174 = vpop.f32.mrf.mxu0
    %v2175 = vadd.f32 %v2095, %v2174
    %v2176 = vpop.f32.mrf.mxu0
    %2177 = vmatprep.mubr.bf16.mxu0 0
    %2178 = vmatmul.mubr.bf16.gmra.mxu0 %v2119
    %v2179 = vpop.f32.mrf.mxu0
    %v2180 = vadd.f32 %v2095, %v2179
    %v2181 = vpop.f32.mrf.mxu0
    %v2182 = vpop.f32.mrf.mxu0
    %v2183 = vpop.f32.mrf.mxu0
    %2184 = vdwg.mxu0
    %v2185 = vld [vmem:[%s6] sm:$0xf]
    %v2186 = vld [vmem:[%s6 + $0x4] sm:$0xf]
    %v2187 = vld [vmem:[%s6 + $0x8] sm:$0xf]
    %v2188 = vld [vmem:[%s6 + $0xc] sm:$0xf]
    %v2189 = vld [vmem:[%s7] sm:$0x1]
    %v2191 = vlaneseq
    %v2192 = vshrl.u32 %v2191, 7
    %v2193 = vsub.s32 0, %v2192
    %v2194 = vrot.slane %v2189, %v2193
    %v2200 = vunpack.c.l.b16 %v2185
    %v2201 = vunpack.c.l.b16 %v2186
    %v2202 = vunpack.c.l.b16 %v2187
    %v2203 = vunpack.c.l.b16 %v2188
    %v2204 = vpack.c.b16 %v2201, %v2200
    %v2205 = vpack.c.b16 %v2203, %v2202
    %2208 = vmatprep.subr.bf16.mxu0 0
    %2209 = vmatpush1.bf16.msra.mxu0 0
    %2210 = vmatprep.subr.bf16.mxu0 0
    %2211 = vmatpush1.bf16.msra.mxu0 0
    %2212 = vmatprep.subr.bf16.mxu0 0
    %2213 = vmatpush1.bf16.msra.mxu0 0
    %2214 = vmatprep.subr.bf16.mxu0 0
    %2215 = vmatpush1.bf16.msra.mxu0 0
    %2216 = vmatprep.subr.bf16.mxu0 0
    %2217 = vmatpush1.bf16.msra.mxu0 0
    %2218 = vmatprep.subr.bf16.mxu0 0
    %2219 = vmatpush1.bf16.msra.mxu0 0
    %2220 = vmatprep.subr.bf16.mxu0 0
    %2221 = vmatpush1.bf16.msra.mxu0 %v2205
    %2222 = vmatprep.subr.bf16.mxu0 0
    %2223 = vmatpush1.bf16.msra.mxu0 %v2204
    %2224 = vmatprep.subr.bf16.mxu0 0
    %2225 = vmatpush2.bf16.msra.mxu0 0
    %2226 = vmatprep.subr.bf16.mxu0 0
    %2227 = vmatpush2.bf16.msra.mxu0 0
    %2228 = vmatprep.subr.bf16.mxu0 0
    %2229 = vmatpush2.bf16.msra.mxu0 0
    %2230 = vmatprep.subr.bf16.mxu0 0
    %2231 = vmatpush2.bf16.msra.mxu0 0
    %2232 = vmatprep.subr.bf16.mxu0 0
    %2233 = vmatpush2.bf16.msra.mxu0 0
    %2234 = vmatprep.subr.bf16.mxu0 0
    %2235 = vmatpush2.bf16.msra.mxu0 0
    %2236 = vmatprep.subr.bf16.mxu0 0
    %2237 = vmatpush2.bf16.msra.mxu0 0
    %2238 = vmatprep.subr.bf16.mxu0 0
    %2239 = vmatpush2.bf16.msra.mxu0 0
    %2240 = vmatprep.mubr.bf16.mxu0 0
    %2241 = vmatmul.mubr.bf16.gmra.mxu0 %v2110
    %v2242 = vpop.f32.mrf.mxu0
    %v2243 = vadd.f32 %v2194, %v2242
    %v2244 = vpop.f32.mrf.mxu0
    %v2245 = vpop.f32.mrf.mxu0
    %v2246 = vadd.f32 %v2194, %v2245
    %v2247 = vpop.f32.mrf.mxu0
    %2248 = vmatprep.mubr.bf16.mxu0 0
    %2249 = vmatmul.mubr.bf16.gmra.mxu0 %v2113
    %v2250 = vpop.f32.mrf.mxu0
    %v2251 = vadd.f32 %v2194, %v2250
    %v2252 = vpop.f32.mrf.mxu0
    %v2253 = vpop.f32.mrf.mxu0
    %v2254 = vadd.f32 %v2194, %v2253
    %v2255 = vpop.f32.mrf.mxu0
    %2256 = vmatprep.mubr.bf16.mxu0 0
    %2257 = vmatmul.mubr.bf16.gmra.mxu0 %v2116
    %v2258 = vpop.f32.mrf.mxu0
    %v2259 = vadd.f32 %v2194, %v2258
    %v2260 = vpop.f32.mrf.mxu0
    %v2261 = vpop.f32.mrf.mxu0
    %v2262 = vadd.f32 %v2194, %v2261
    %v2263 = vpop.f32.mrf.mxu0
    %2264 = vmatprep.mubr.bf16.mxu0 0
    %2265 = vmatmul.mubr.bf16.gmra.mxu0 %v2119
    %v2266 = vpop.f32.mrf.mxu0
    %v2267 = vadd.f32 %v2194, %v2266
    %v2268 = vpop.f32.mrf.mxu0
    %v2269 = vpop.f32.mrf.mxu0
    %v2270 = vpop.f32.mrf.mxu0
    %2271 = vdwg.mxu0
    %v2272 = vpack.c.bf16 %v2081, %v2081
    %v2273 = vpack.c.bf16 %v2159, %v2156
    %v2274 = vpack.c.bf16 %v2167, %v2164
    %v2275 = vpack.c.bf16 %v2175, %v2172
    %v2276 = vpack.c.bf16 %v2180, %v2180
    %v2278 = vsel %vm415, %v2272, 0
    %v2281 = vsel %vm415, %v2273, 0
    %v2284 = vsel %vm415, %v2274, 0
    %v2287 = vsel %vm415, %v2275, 0
    %v2290 = vsel %vm415, %v2276, 0
    %2292 = vmatprep.subr.bf16.mxu0 0
    %2293 = vmatpush1.bf16.xpose.msra.mxu0 0
    %2294 = vmatprep.subr.bf16.mxu0 0
    %2295 = vmatpush1.bf16.xpose.msra.mxu0 0
    %2296 = vmatprep.subr.bf16.mxu0 0
    %2297 = vmatpush1.bf16.xpose.msra.mxu0 0
    %2298 = vmatprep.subr.bf16.mxu0 0
    %2299 = vmatpush1.bf16.xpose.msra.mxu0 0
    %2300 = vmatprep.subr.bf16.mxu0 0
    %2301 = vmatpush1.bf16.xpose.msra.mxu0 %v2290
    %2302 = vmatprep.subr.bf16.mxu0 0
    %2303 = vmatpush1.bf16.xpose.msra.mxu0 %v2287
    %2304 = vmatprep.subr.bf16.mxu0 0
    %2305 = vmatpush1.bf16.xpose.msra.mxu0 %v2284
    %2306 = vmatprep.subr.bf16.mxu0 0
    %2307 = vmatpush1.bf16.xpose.msra.mxu0 %v2281
    %2308 = vmatprep.subr.bf16.mxu0 0
    %2309 = vmatpush2.bf16.xpose.msra.mxu0 0
    %2310 = vmatprep.subr.bf16.mxu0 0
    %2311 = vmatpush2.bf16.xpose.msra.mxu0 0
    %2312 = vmatprep.subr.bf16.mxu0 0
    %2313 = vmatpush2.bf16.xpose.msra.mxu0 0
    %2314 = vmatprep.subr.bf16.mxu0 0
    %2315 = vmatpush2.bf16.xpose.msra.mxu0 0
    %2316 = vmatprep.subr.bf16.mxu0 0
    %2317 = vmatpush2.bf16.xpose.msra.mxu0 0
    %2318 = vmatprep.subr.bf16.mxu0 0
    %2319 = vmatpush2.bf16.xpose.msra.mxu0 0
    %2320 = vmatprep.subr.bf16.mxu0 0
    %2321 = vmatpush2.bf16.xpose.msra.mxu0 0
    %2322 = vmatprep.subr.bf16.mxu0 0
    %2323 = vmatpush2.bf16.xpose.msra.mxu0 0
    %2324 = vmatprep.mubr.bf16.mxu0 0
    %2325 = vmatmul.mubr.bf16.gmra.mxu0 %v2278
    %v2326 = vpop.f32.mrf.mxu0
    %v2327 = vadd.f32 0.0, %v2326
    %v2328 = vpop.f32.mrf.mxu0
    %v2329 = vpop.f32.mrf.mxu0
    %v2330 = vpop.f32.mrf.mxu0
    %2331 = vdwg.mxu0
    %v2332 = vsel %vm639, %v2327, -inf
    %2333 = vmax.xlane.f32.xlu0 %v2332
    %v2334 = vpop.xlane.xlu0 %2333
    %v2335 = vsub.f32 %v2327, %v2334
    %v2336 = vmul.f32 %v2335, 1.442695
    %v2337 = vpow.pop %v2336
    %v2338 = vsel %vm639, %v2337, 0.0
    %2339 = vadd.xlane.f32.xlu0 %v2338
    %v2340 = vpop.xlane.xlu0 %2339
    %v2341 = vrcp.pop %v2340
    %v2342 = vmul.f32 %v2337, %v2341
    %v2343 = vpack.c.bf16 %v2342, %v2342
    %v2344 = vpack.c.bf16 %v2246, %v2243
    %v2345 = vpack.c.bf16 %v2254, %v2251
    %v2346 = vpack.c.bf16 %v2262, %v2259
    %v2347 = vpack.c.bf16 %v2267, %v2267
    %v2349 = vsel %vm639, %v2343, 0
    %v2352 = vand.u32 %v2347, %v661
    %2354 = vmatprep.subr.bf16.mxu0 0
    %2355 = vmatpush1.bf16.msra.mxu0 0
    %2356 = vmatprep.subr.bf16.mxu0 0
    %2357 = vmatpush1.bf16.msra.mxu0 0
    %2358 = vmatprep.subr.bf16.mxu0 0
    %2359 = vmatpush1.bf16.msra.mxu0 0
    %2360 = vmatprep.subr.bf16.mxu0 0
    %2361 = vmatpush1.bf16.msra.mxu0 0
    %2362 = vmatprep.subr.bf16.mxu0 0
    %2363 = vmatpush1.bf16.msra.mxu0 %v2352
    %2364 = vmatprep.subr.bf16.mxu0 0
    %2365 = vmatpush1.bf16.msra.mxu0 %v2346
    %2366 = vmatprep.subr.bf16.mxu0 0
    %2367 = vmatpush1.bf16.msra.mxu0 %v2345
    %2368 = vmatprep.subr.bf16.mxu0 0
    %2369 = vmatpush1.bf16.msra.mxu0 %v2344
    %2370 = vmatprep.subr.bf16.mxu0 0
    %2371 = vmatpush2.bf16.msra.mxu0 0
    %2372 = vmatprep.subr.bf16.mxu0 0
    %2373 = vmatpush2.bf16.msra.mxu0 0
    %2374 = vmatprep.subr.bf16.mxu0 0
    %2375 = vmatpush2.bf16.msra.mxu0 0
    %2376 = vmatprep.subr.bf16.mxu0 0
    %2377 = vmatpush2.bf16.msra.mxu0 0
    %2378 = vmatprep.subr.bf16.mxu0 0
    %2379 = vmatpush2.bf16.msra.mxu0 0
    %2380 = vmatprep.subr.bf16.mxu0 0
    %2381 = vmatpush2.bf16.msra.mxu0 0
    %2382 = vmatprep.subr.bf16.mxu0 0
    %2383 = vmatpush2.bf16.msra.mxu0 0
    %2384 = vmatprep.subr.bf16.mxu0 0
    %2385 = vmatpush2.bf16.msra.mxu0 0
    %2386 = vmatprep.mubr.bf16.mxu0 0
    %2387 = vmatmul.mubr.bf16.gmra.mxu0 %v2349
    %v2388 = vpop.f32.mrf.mxu0
    %v2389 = vadd.f32 0.0, %v2388
    %v2390 = vpop.f32.mrf.mxu0
    %v2391 = vpop.f32.mrf.mxu0
    %v2392 = vpop.f32.mrf.mxu0
    %2393 = vdwg.mxu0
    %v2394 = vpack.c.bf16 %v2389, %v2389
    %v2395 = vld [vmem:[%s8] sm:$0xf]
    %v2396 = vld [vmem:[%s8 + $0x4] sm:$0xf]
    %v2397 = vld [vmem:[%s8 + $0x8] sm:$0xf]
    %v2398 = vld [vmem:[%s8 + $0xc] sm:$0xf]
    %2399 = vrot.lane.b32.xlu0 %v2030, 96
    %v2400 = vpop.permute.xlu0 %2399
    %2401 = vrot.lane.b32.xlu0 %v2031, 96
    %v2402 = vpop.permute.xlu0 %2401
    %2403 = vrot.lane.b32.xlu0 %v2032, 96
    %v2404 = vpop.permute.xlu0 %2403
    %2405 = vrot.lane.b32.xlu0 %v2033, 96
    %v2406 = vpop.permute.xlu0 %2405
    %2407 = vrot.lane.b32.xlu0 %v2034, 96
    %v2408 = vpop.permute.xlu0 %2407
    %2409 = vrot.lane.b32.xlu0 %v2035, 96
    %v2410 = vpop.permute.xlu0 %2409
    %2411 = vrot.lane.b32.xlu0 %v2036, 96
    %v2412 = vpop.permute.xlu0 %2411
    %2413 = vrot.lane.b32.xlu0 %v2037, 96
    %v2414 = vpop.permute.xlu0 %2413
    %2423 = vrot.lane.b32.xlu0 %v1996, 96
    %v2424 = vpop.permute.xlu0 %2423
    %2426 = vmatprep.subr.bf16.mxu0 0
    %2427 = vmatpush1.bf16.msra.mxu0 %v2414
    %2428 = vmatprep.subr.bf16.mxu0 0
    %2429 = vmatpush1.bf16.msra.mxu0 %v2412
    %2430 = vmatprep.subr.bf16.mxu0 0
    %2431 = vmatpush1.bf16.msra.mxu0 %v2410
    %2432 = vmatprep.subr.bf16.mxu0 0
    %2433 = vmatpush1.bf16.msra.mxu0 %v2408
    %2434 = vmatprep.subr.bf16.mxu0 0
    %2435 = vmatpush1.bf16.msra.mxu0 %v2406
    %2436 = vmatprep.subr.bf16.mxu0 0
    %2437 = vmatpush1.bf16.msra.mxu0 %v2404
    %2438 = vmatprep.subr.bf16.mxu0 0
    %2439 = vmatpush1.bf16.msra.mxu0 %v2402
    %2440 = vmatprep.subr.bf16.mxu0 0
    %2441 = vmatpush1.bf16.msra.mxu0 %v2400
    %2442 = vmatprep.subr.bf16.mxu0 0
    %2443 = vmatpush2.bf16.msra.mxu0 0
    %2444 = vmatprep.subr.bf16.mxu0 0
    %2445 = vmatpush2.bf16.msra.mxu0 0
    %2446 = vmatprep.subr.bf16.mxu0 0
    %2447 = vmatpush2.bf16.msra.mxu0 0
    %2448 = vmatprep.subr.bf16.mxu0 0
    %2449 = vmatpush2.bf16.msra.mxu0 0
    %2450 = vmatprep.subr.bf16.mxu0 0
    %2451 = vmatpush2.bf16.msra.mxu0 0
    %2452 = vmatprep.subr.bf16.mxu0 0
    %2453 = vmatpush2.bf16.msra.mxu0 0
    %2454 = vmatprep.subr.bf16.mxu0 0
    %2455 = vmatpush2.bf16.msra.mxu0 0
    %2456 = vmatprep.subr.bf16.mxu0 0
    %2457 = vmatpush2.bf16.msra.mxu0 0
    %2458 = vmatprep.mubr.bf16.mxu0 0
    %2459 = vmatmul.mubr.bf16.gmra.mxu0 %v1962
    %v2460 = vpop.f32.mrf.mxu0
    %v2461 = vadd.f32 %v2424, %v2460
    %v2462 = vpop.f32.mrf.mxu0
    %v2463 = vpop.f32.mrf.mxu0
    %v2464 = vpop.f32.mrf.mxu0
    %2465 = vdwg.mxu0
    %2466 = vrot.lane.b32.xlu0 %v2105, 96
    %v2467 = vpop.permute.xlu0 %2466
    %2468 = vrot.lane.b32.xlu0 %v2106, 96
    %v2469 = vpop.permute.xlu0 %2468
    %2472 = vrot.lane.b32.xlu0 %v2095, 96
    %v2473 = vpop.permute.xlu0 %2472
    %2475 = vmatprep.subr.bf16.mxu0 0
    %2476 = vmatpush1.bf16.msra.mxu0 0
    %2477 = vmatprep.subr.bf16.mxu0 0
    %2478 = vmatpush1.bf16.msra.mxu0 0
    %2479 = vmatprep.subr.bf16.mxu0 0
    %2480 = vmatpush1.bf16.msra.mxu0 0
    %2481 = vmatprep.subr.bf16.mxu0 0
    %2482 = vmatpush1.bf16.msra.mxu0 0
    %2483 = vmatprep.subr.bf16.mxu0 0
    %2484 = vmatpush1.bf16.msra.mxu0 0
    %2485 = vmatprep.subr.bf16.mxu0 0
    %2486 = vmatpush1.bf16.msra.mxu0 0
    %2487 = vmatprep.subr.bf16.mxu0 0
    %2488 = vmatpush1.bf16.msra.mxu0 %v2469
    %2489 = vmatprep.subr.bf16.mxu0 0
    %2490 = vmatpush1.bf16.msra.mxu0 %v2467
    %2491 = vmatprep.subr.bf16.mxu0 0
    %2492 = vmatpush2.bf16.msra.mxu0 0
    %2493 = vmatprep.subr.bf16.mxu0 0
    %2494 = vmatpush2.bf16.msra.mxu0 0
    %2495 = vmatprep.subr.bf16.mxu0 0
    %2496 = vmatpush2.bf16.msra.mxu0 0
    %2497 = vmatprep.subr.bf16.mxu0 0
    %2498 = vmatpush2.bf16.msra.mxu0 0
    %2499 = vmatprep.subr.bf16.mxu0 0
    %2500 = vmatpush2.bf16.msra.mxu0 0
    %2501 = vmatprep.subr.bf16.mxu0 0
    %2502 = vmatpush2.bf16.msra.mxu0 0
    %2503 = vmatprep.subr.bf16.mxu0 0
    %2504 = vmatpush2.bf16.msra.mxu0 0
    %2505 = vmatprep.subr.bf16.mxu0 0
    %2506 = vmatpush2.bf16.msra.mxu0 0
    %2507 = vmatprep.mubr.bf16.mxu0 0
    %2508 = vmatmul.mubr.bf16.gmra.mxu0 %v2110
    %v2509 = vpop.f32.mrf.mxu0
    %v2510 = vadd.f32 %v2473, %v2509
    %v2511 = vpop.f32.mrf.mxu0
    %v2512 = vpop.f32.mrf.mxu0
    %v2513 = vadd.f32 %v2473, %v2512
    %v2514 = vpop.f32.mrf.mxu0
    %2515 = vmatprep.mubr.bf16.mxu0 0
    %2516 = vmatmul.mubr.bf16.gmra.mxu0 %v2113
    %v2517 = vpop.f32.mrf.mxu0
    %v2518 = vadd.f32 %v2473, %v2517
    %v2519 = vpop.f32.mrf.mxu0
    %v2520 = vpop.f32.mrf.mxu0
    %v2521 = vadd.f32 %v2473, %v2520
    %v2522 = vpop.f32.mrf.mxu0
    %2523 = vmatprep.mubr.bf16.mxu0 0
    %2524 = vmatmul.mubr.bf16.gmra.mxu0 %v2116
    %v2525 = vpop.f32.mrf.mxu0
    %v2526 = vadd.f32 %v2473, %v2525
    %v2527 = vpop.f32.mrf.mxu0
    %v2528 = vpop.f32.mrf.mxu0
    %v2529 = vadd.f32 %v2473, %v2528
    %v2530 = vpop.f32.mrf.mxu0
    %2531 = vmatprep.mubr.bf16.mxu0 0
    %2532 = vmatmul.mubr.bf16.gmra.mxu0 %v2119
    %v2533 = vpop.f32.mrf.mxu0
    %v2534 = vadd.f32 %v2473, %v2533
    %v2535 = vpop.f32.mrf.mxu0
    %v2536 = vpop.f32.mrf.mxu0
    %v2537 = vpop.f32.mrf.mxu0
    %2538 = vdwg.mxu0
    %2539 = vrot.lane.b32.xlu0 %v2204, 96
    %v2540 = vpop.permute.xlu0 %2539
    %2541 = vrot.lane.b32.xlu0 %v2205, 96
    %v2542 = vpop.permute.xlu0 %2541
    %2545 = vrot.lane.b32.xlu0 %v2194, 96
    %v2546 = vpop.permute.xlu0 %2545
    %2548 = vmatprep.subr.bf16.mxu0 0
    %2549 = vmatpush1.bf16.msra.mxu0 0
    %2550 = vmatprep.subr.bf16.mxu0 0
    %2551 = vmatpush1.bf16.msra.mxu0 0
    %2552 = vmatprep.subr.bf16.mxu0 0
    %2553 = vmatpush1.bf16.msra.mxu0 0
    %2554 = vmatprep.subr.bf16.mxu0 0
    %2555 = vmatpush1.bf16.msra.mxu0 0
    %2556 = vmatprep.subr.bf16.mxu0 0
    %2557 = vmatpush1.bf16.msra.mxu0 0
    %2558 = vmatprep.subr.bf16.mxu0 0
    %2559 = vmatpush1.bf16.msra.mxu0 0
    %2560 = vmatprep.subr.bf16.mxu0 0
    %2561 = vmatpush1.bf16.msra.mxu0 %v2542
    %2562 = vmatprep.subr.bf16.mxu0 0
    %2563 = vmatpush1.bf16.msra.mxu0 %v2540
    %2564 = vmatprep.subr.bf16.mxu0 0
    %2565 = vmatpush2.bf16.msra.mxu0 0
    %2566 = vmatprep.subr.bf16.mxu0 0
    %2567 = vmatpush2.bf16.msra.mxu0 0
    %2568 = vmatprep.subr.bf16.mxu0 0
    %2569 = vmatpush2.bf16.msra.mxu0 0
    %2570 = vmatprep.subr.bf16.mxu0 0
    %2571 = vmatpush2.bf16.msra.mxu0 0
    %2572 = vmatprep.subr.bf16.mxu0 0
    %2573 = vmatpush2.bf16.msra.mxu0 0
    %2574 = vmatprep.subr.bf16.mxu0 0
    %2575 = vmatpush2.bf16.msra.mxu0 0
    %2576 = vmatprep.subr.bf16.mxu0 0
    %2577 = vmatpush2.bf16.msra.mxu0 0
    %2578 = vmatprep.subr.bf16.mxu0 0
    %2579 = vmatpush2.bf16.msra.mxu0 0
    %2580 = vmatprep.mubr.bf16.mxu0 0
    %2581 = vmatmul.mubr.bf16.gmra.mxu0 %v2110
    %v2582 = vpop.f32.mrf.mxu0
    %v2583 = vadd.f32 %v2546, %v2582
    %v2584 = vpop.f32.mrf.mxu0
    %v2585 = vpop.f32.mrf.mxu0
    %v2586 = vadd.f32 %v2546, %v2585
    %v2587 = vpop.f32.mrf.mxu0
    %2588 = vmatprep.mubr.bf16.mxu0 0
    %2589 = vmatmul.mubr.bf16.gmra.mxu0 %v2113
    %v2590 = vpop.f32.mrf.mxu0
    %v2591 = vadd.f32 %v2546, %v2590
    %v2592 = vpop.f32.mrf.mxu0
    %v2593 = vpop.f32.mrf.mxu0
    %v2594 = vadd.f32 %v2546, %v2593
    %v2595 = vpop.f32.mrf.mxu0
    %2596 = vmatprep.mubr.bf16.mxu0 0
    %2597 = vmatmul.mubr.bf16.gmra.mxu0 %v2116
    %v2598 = vpop.f32.mrf.mxu0
    %v2599 = vadd.f32 %v2546, %v2598
    %v2600 = vpop.f32.mrf.mxu0
    %v2601 = vpop.f32.mrf.mxu0
    %v2602 = vadd.f32 %v2546, %v2601
    %v2603 = vpop.f32.mrf.mxu0
    %2604 = vmatprep.mubr.bf16.mxu0 0
    %2605 = vmatmul.mubr.bf16.gmra.mxu0 %v2119
    %v2606 = vpop.f32.mrf.mxu0
    %v2607 = vadd.f32 %v2546, %v2606
    %v2608 = vpop.f32.mrf.mxu0
    %v2609 = vpop.f32.mrf.mxu0
    %v2610 = vpop.f32.mrf.mxu0
    %2611 = vdwg.mxu0
    %v2612 = vpack.c.bf16 %v2461, %v2461
    %v2613 = vpack.c.bf16 %v2513, %v2510
    %v2614 = vpack.c.bf16 %v2521, %v2518
    %v2615 = vpack.c.bf16 %v2529, %v2526
    %v2616 = vpack.c.bf16 %v2534, %v2534
    %v2618 = vsel %vm415, %v2612, 0
    %v2621 = vsel %vm415, %v2613, 0
    %v2624 = vsel %vm415, %v2614, 0
    %v2627 = vsel %vm415, %v2615, 0
    %v2630 = vsel %vm415, %v2616, 0
    %2632 = vmatprep.subr.bf16.mxu0 0
    %2633 = vmatpush1.bf16.xpose.msra.mxu0 0
    %2634 = vmatprep.subr.bf16.mxu0 0
    %2635 = vmatpush1.bf16.xpose.msra.mxu0 0
    %2636 = vmatprep.subr.bf16.mxu0 0
    %2637 = vmatpush1.bf16.xpose.msra.mxu0 0
    %2638 = vmatprep.subr.bf16.mxu0 0
    %2639 = vmatpush1.bf16.xpose.msra.mxu0 0
    %2640 = vmatprep.subr.bf16.mxu0 0
    %2641 = vmatpush1.bf16.xpose.msra.mxu0 %v2630
    %2642 = vmatprep.subr.bf16.mxu0 0
    %2643 = vmatpush1.bf16.xpose.msra.mxu0 %v2627
    %2644 = vmatprep.subr.bf16.mxu0 0
    %2645 = vmatpush1.bf16.xpose.msra.mxu0 %v2624
    %2646 = vmatprep.subr.bf16.mxu0 0
    %2647 = vmatpush1.bf16.xpose.msra.mxu0 %v2621
    %2648 = vmatprep.subr.bf16.mxu0 0
    %2649 = vmatpush2.bf16.xpose.msra.mxu0 0
    %2650 = vmatprep.subr.bf16.mxu0 0
    %2651 = vmatpush2.bf16.xpose.msra.mxu0 0
    %2652 = vmatprep.subr.bf16.mxu0 0
    %2653 = vmatpush2.bf16.xpose.msra.mxu0 0
    %2654 = vmatprep.subr.bf16.mxu0 0
    %2655 = vmatpush2.bf16.xpose.msra.mxu0 0
    %2656 = vmatprep.subr.bf16.mxu0 0
    %2657 = vmatpush2.bf16.xpose.msra.mxu0 0
    %2658 = vmatprep.subr.bf16.mxu0 0
    %2659 = vmatpush2.bf16.xpose.msra.mxu0 0
    %2660 = vmatprep.subr.bf16.mxu0 0
    %2661 = vmatpush2.bf16.xpose.msra.mxu0 0
    %2662 = vmatprep.subr.bf16.mxu0 0
    %2663 = vmatpush2.bf16.xpose.msra.mxu0 0
    %2664 = vmatprep.mubr.bf16.mxu0 0
    %2665 = vmatmul.mubr.bf16.gmra.mxu0 %v2618
    %v2666 = vpop.f32.mrf.mxu0
    %v2667 = vadd.f32 0.0, %v2666
    %v2668 = vpop.f32.mrf.mxu0
    %v2669 = vpop.f32.mrf.mxu0
    %v2670 = vpop.f32.mrf.mxu0
    %2671 = vdwg.mxu0
    %v2672 = vsel %vm639, %v2667, -inf
    %2673 = vmax.xlane.f32.xlu0 %v2672
    %v2674 = vpop.xlane.xlu0 %2673
    %v2675 = vsub.f32 %v2667, %v2674
    %v2676 = vmul.f32 %v2675, 1.442695
    %v2677 = vpow.pop %v2676
    %v2678 = vsel %vm639, %v2677, 0.0
    %2679 = vadd.xlane.f32.xlu0 %v2678
    %v2680 = vpop.xlane.xlu0 %2679
    %v2681 = vrcp.pop %v2680
    %v2682 = vmul.f32 %v2677, %v2681
    %v2683 = vpack.c.bf16 %v2682, %v2682
    %v2684 = vpack.c.bf16 %v2586, %v2583
    %v2685 = vpack.c.bf16 %v2594, %v2591
    %v2686 = vpack.c.bf16 %v2602, %v2599
    %v2687 = vpack.c.bf16 %v2607, %v2607
    %v2689 = vsel %vm639, %v2683, 0
    %v2692 = vand.u32 %v2687, %v661
    %2694 = vmatprep.subr.bf16.mxu0 0
    %2695 = vmatpush1.bf16.msra.mxu0 0
    %2696 = vmatprep.subr.bf16.mxu0 0
    %2697 = vmatpush1.bf16.msra.mxu0 0
    %2698 = vmatprep.subr.bf16.mxu0 0
    %2699 = vmatpush1.bf16.msra.mxu0 0
    %2700 = vmatprep.subr.bf16.mxu0 0
    %2701 = vmatpush1.bf16.msra.mxu0 0
    %2702 = vmatprep.subr.bf16.mxu0 0
    %2703 = vmatpush1.bf16.msra.mxu0 %v2692
    %2704 = vmatprep.subr.bf16.mxu0 0
    %2705 = vmatpush1.bf16.msra.mxu0 %v2686
    %2706 = vmatprep.subr.bf16.mxu0 0
    %2707 = vmatpush1.bf16.msra.mxu0 %v2685
    %2708 = vmatprep.subr.bf16.mxu0 0
    %2709 = vmatpush1.bf16.msra.mxu0 %v2684
    %2710 = vmatprep.subr.bf16.mxu0 0
    %2711 = vmatpush2.bf16.msra.mxu0 0
    %2712 = vmatprep.subr.bf16.mxu0 0
    %2713 = vmatpush2.bf16.msra.mxu0 0
    %2714 = vmatprep.subr.bf16.mxu0 0
    %2715 = vmatpush2.bf16.msra.mxu0 0
    %2716 = vmatprep.subr.bf16.mxu0 0
    %2717 = vmatpush2.bf16.msra.mxu0 0
    %2718 = vmatprep.subr.bf16.mxu0 0
    %2719 = vmatpush2.bf16.msra.mxu0 0
    %2720 = vmatprep.subr.bf16.mxu0 0
    %2721 = vmatpush2.bf16.msra.mxu0 0
    %2722 = vmatprep.subr.bf16.mxu0 0
    %2723 = vmatpush2.bf16.msra.mxu0 0
    %2724 = vmatprep.subr.bf16.mxu0 0
    %2725 = vmatpush2.bf16.msra.mxu0 0
    %2726 = vmatprep.mubr.bf16.mxu0 0
    %2727 = vmatmul.mubr.bf16.gmra.mxu0 %v2689
    %v2728 = vpop.f32.mrf.mxu0
    %v2729 = vadd.f32 0.0, %v2728
    %v2730 = vpop.f32.mrf.mxu0
    %v2731 = vpop.f32.mrf.mxu0
    %v2732 = vpop.f32.mrf.mxu0
    %2733 = vdwg.mxu0
    %v2734 = vpack.c.bf16 %v2729, %v2729
    %v2735 = vld [vmem:[%s8 + $0x10] sm:$0xf]
    %v2736 = vld [vmem:[%s8 + $0x14] sm:$0xf]
    %v2737 = vld [vmem:[%s8 + $0x18] sm:$0xf]
    %v2738 = vld [vmem:[%s8 + $0x1c] sm:$0xf]
    %v2743 = vunpack.c.l.b16 %v2735
    %v2744 = vunpack.c.l.b16 %v2736
    %v2745 = vunpack.c.l.b16 %v2737
    %v2746 = vunpack.c.l.b16 %v2738
    %v2747 = vpack.c.b16 %v2744, %v2743
    %v2748 = vpack.c.b16 %v2746, %v2745
    %v2752 = vsel %vm415, %v2734, 0
    %2754 = vmatprep.subr.bf16.mxu0 0
    %2755 = vmatpush1.bf16.msra.mxu0 0
    %2756 = vmatprep.subr.bf16.mxu0 0
    %2757 = vmatpush1.bf16.msra.mxu0 0
    %2758 = vmatprep.subr.bf16.mxu0 0
    %2759 = vmatpush1.bf16.msra.mxu0 0
    %2760 = vmatprep.subr.bf16.mxu0 0
    %2761 = vmatpush1.bf16.msra.mxu0 0
    %2762 = vmatprep.subr.bf16.mxu0 0
    %2763 = vmatpush1.bf16.msra.mxu0 0
    %2764 = vmatprep.subr.bf16.mxu0 0
    %2765 = vmatpush1.bf16.msra.mxu0 0
    %2766 = vmatprep.subr.bf16.mxu0 0
    %2767 = vmatpush1.bf16.msra.mxu0 %v2748
    %2768 = vmatprep.subr.bf16.mxu0 0
    %2769 = vmatpush1.bf16.msra.mxu0 %v2747
    %2770 = vmatprep.subr.bf16.mxu0 0
    %2771 = vmatpush2.bf16.msra.mxu0 0
    %2772 = vmatprep.subr.bf16.mxu0 0
    %2773 = vmatpush2.bf16.msra.mxu0 0
    %2774 = vmatprep.subr.bf16.mxu0 0
    %2775 = vmatpush2.bf16.msra.mxu0 0
    %2776 = vmatprep.subr.bf16.mxu0 0
    %2777 = vmatpush2.bf16.msra.mxu0 0
    %2778 = vmatprep.subr.bf16.mxu0 0
    %2779 = vmatpush2.bf16.msra.mxu0 0
    %2780 = vmatprep.subr.bf16.mxu0 0
    %2781 = vmatpush2.bf16.msra.mxu0 0
    %2782 = vmatprep.subr.bf16.mxu0 0
    %2783 = vmatpush2.bf16.msra.mxu0 0
    %2784 = vmatprep.subr.bf16.mxu0 0
    %2785 = vmatpush2.bf16.msra.mxu0 0
    %2786 = vmatprep.mubr.bf16.mxu0 0
    %2787 = vmatmul.mubr.bf16.gmra.mxu0 %v2752
    %v2788 = vpop.f32.mrf.mxu0
    %v2789 = vadd.f32 0.0, %v2788
    %v2790 = vpop.f32.mrf.mxu0
    %v2791 = vpop.f32.mrf.mxu0
    %v2792 = vpop.f32.mrf.mxu0
    %2793 = vdwg.mxu0
    %v2798 = vunpack.c.l.b16 %v2395
    %v2799 = vunpack.c.l.b16 %v2396
    %v2800 = vunpack.c.l.b16 %v2397
    %v2801 = vunpack.c.l.b16 %v2398
    %v2802 = vpack.c.b16 %v2799, %v2798
    %v2803 = vpack.c.b16 %v2801, %v2800
    %v2807 = vsel %vm415, %v2394, 0
    %2809 = vmatprep.subr.bf16.mxu0 0
    %2810 = vmatpush1.bf16.msra.mxu0 0
    %2811 = vmatprep.subr.bf16.mxu0 0
    %2812 = vmatpush1.bf16.msra.mxu0 0
    %2813 = vmatprep.subr.bf16.mxu0 0
    %2814 = vmatpush1.bf16.msra.mxu0 0
    %2815 = vmatprep.subr.bf16.mxu0 0
    %2816 = vmatpush1.bf16.msra.mxu0 0
    %2817 = vmatprep.subr.bf16.mxu0 0
    %2818 = vmatpush1.bf16.msra.mxu0 0
    %2819 = vmatprep.subr.bf16.mxu0 0
    %2820 = vmatpush1.bf16.msra.mxu0 0
    %2821 = vmatprep.subr.bf16.mxu0 0
    %2822 = vmatpush1.bf16.msra.mxu0 %v2803
    %2823 = vmatprep.subr.bf16.mxu0 0
    %2824 = vmatpush1.bf16.msra.mxu0 %v2802
    %2825 = vmatprep.subr.bf16.mxu0 0
    %2826 = vmatpush2.bf16.msra.mxu0 0
    %2827 = vmatprep.subr.bf16.mxu0 0
    %2828 = vmatpush2.bf16.msra.mxu0 0
    %2829 = vmatprep.subr.bf16.mxu0 0
    %2830 = vmatpush2.bf16.msra.mxu0 0
    %2831 = vmatprep.subr.bf16.mxu0 0
    %2832 = vmatpush2.bf16.msra.mxu0 0
    %2833 = vmatprep.subr.bf16.mxu0 0
    %2834 = vmatpush2.bf16.msra.mxu0 0
    %2835 = vmatprep.subr.bf16.mxu0 0
    %2836 = vmatpush2.bf16.msra.mxu0 0
    %2837 = vmatprep.subr.bf16.mxu0 0
    %2838 = vmatpush2.bf16.msra.mxu0 0
    %2839 = vmatprep.subr.bf16.mxu0 0
    %2840 = vmatpush2.bf16.msra.mxu0 0
    %2841 = vmatprep.mubr.bf16.mxu0 0
    %2842 = vmatmul.mubr.bf16.gmra.mxu0 %v2807
    %v2843 = vpop.f32.mrf.mxu0
    %v2844 = vadd.f32 %v2789, %v2843
    %v2845 = vpop.f32.mrf.mxu0
    %v2846 = vpop.f32.mrf.mxu0
    %v2847 = vpop.f32.mrf.mxu0
    %2848 = vdwg.mxu0
    %2849 = vrot.lane.b32.xlu0 %v2030, 64
    %v2850 = vpop.permute.xlu0 %2849
    %2851 = vrot.lane.b32.xlu0 %v2031, 64
    %v2852 = vpop.permute.xlu0 %2851
    %2853 = vrot.lane.b32.xlu0 %v2032, 64
    %v2854 = vpop.permute.xlu0 %2853
    %2855 = vrot.lane.b32.xlu0 %v2033, 64
    %v2856 = vpop.permute.xlu0 %2855
    %2857 = vrot.lane.b32.xlu0 %v2034, 64
    %v2858 = vpop.permute.xlu0 %2857
    %2859 = vrot.lane.b32.xlu0 %v2035, 64
    %v2860 = vpop.permute.xlu0 %2859
    %2861 = vrot.lane.b32.xlu0 %v2036, 64
    %v2862 = vpop.permute.xlu0 %2861
    %2863 = vrot.lane.b32.xlu0 %v2037, 64
    %v2864 = vpop.permute.xlu0 %2863
    %2873 = vrot.lane.b32.xlu0 %v1996, 64
    %v2874 = vpop.permute.xlu0 %2873
    %2876 = vmatprep.subr.bf16.mxu0 0
    %2877 = vmatpush1.bf16.msra.mxu0 %v2864
    %2878 = vmatprep.subr.bf16.mxu0 0
    %2879 = vmatpush1.bf16.msra.mxu0 %v2862
    %2880 = vmatprep.subr.bf16.mxu0 0
    %2881 = vmatpush1.bf16.msra.mxu0 %v2860
    %2882 = vmatprep.subr.bf16.mxu0 0
    %2883 = vmatpush1.bf16.msra.mxu0 %v2858
    %2884 = vmatprep.subr.bf16.mxu0 0
    %2885 = vmatpush1.bf16.msra.mxu0 %v2856
    %2886 = vmatprep.subr.bf16.mxu0 0
    %2887 = vmatpush1.bf16.msra.mxu0 %v2854
    %2888 = vmatprep.subr.bf16.mxu0 0
    %2889 = vmatpush1.bf16.msra.mxu0 %v2852
    %2890 = vmatprep.subr.bf16.mxu0 0
    %2891 = vmatpush1.bf16.msra.mxu0 %v2850
    %2892 = vmatprep.subr.bf16.mxu0 0
    %2893 = vmatpush2.bf16.msra.mxu0 0
    %2894 = vmatprep.subr.bf16.mxu0 0
    %2895 = vmatpush2.bf16.msra.mxu0 0
    %2896 = vmatprep.subr.bf16.mxu0 0
    %2897 = vmatpush2.bf16.msra.mxu0 0
    %2898 = vmatprep.subr.bf16.mxu0 0
    %2899 = vmatpush2.bf16.msra.mxu0 0
    %2900 = vmatprep.subr.bf16.mxu0 0
    %2901 = vmatpush2.bf16.msra.mxu0 0
    %2902 = vmatprep.subr.bf16.mxu0 0
    %2903 = vmatpush2.bf16.msra.mxu0 0
    %2904 = vmatprep.subr.bf16.mxu0 0
    %2905 = vmatpush2.bf16.msra.mxu0 0
    %2906 = vmatprep.subr.bf16.mxu0 0
    %2907 = vmatpush2.bf16.msra.mxu0 0
    %2908 = vmatprep.mubr.bf16.mxu0 0
    %2909 = vmatmul.mubr.bf16.gmra.mxu0 %v1962
    %v2910 = vpop.f32.mrf.mxu0
    %v2911 = vadd.f32 %v2874, %v2910
    %v2912 = vpop.f32.mrf.mxu0
    %v2913 = vpop.f32.mrf.mxu0
    %v2914 = vpop.f32.mrf.mxu0
    %2915 = vdwg.mxu0
    %2916 = vrot.lane.b32.xlu0 %v2105, 64
    %v2917 = vpop.permute.xlu0 %2916
    %2918 = vrot.lane.b32.xlu0 %v2106, 64
    %v2919 = vpop.permute.xlu0 %2918
    %2922 = vrot.lane.b32.xlu0 %v2095, 64
    %v2923 = vpop.permute.xlu0 %2922
    %2925 = vmatprep.subr.bf16.mxu0 0
    %2926 = vmatpush1.bf16.msra.mxu0 0
    %2927 = vmatprep.subr.bf16.mxu0 0
    %2928 = vmatpush1.bf16.msra.mxu0 0
    %2929 = vmatprep.subr.bf16.mxu0 0
    %2930 = vmatpush1.bf16.msra.mxu0 0
    %2931 = vmatprep.subr.bf16.mxu0 0
    %2932 = vmatpush1.bf16.msra.mxu0 0
    %2933 = vmatprep.subr.bf16.mxu0 0
    %2934 = vmatpush1.bf16.msra.mxu0 0
    %2935 = vmatprep.subr.bf16.mxu0 0
    %2936 = vmatpush1.bf16.msra.mxu0 0
    %2937 = vmatprep.subr.bf16.mxu0 0
    %2938 = vmatpush1.bf16.msra.mxu0 %v2919
    %2939 = vmatprep.subr.bf16.mxu0 0
    %2940 = vmatpush1.bf16.msra.mxu0 %v2917
    %2941 = vmatprep.subr.bf16.mxu0 0
    %2942 = vmatpush2.bf16.msra.mxu0 0
    %2943 = vmatprep.subr.bf16.mxu0 0
    %2944 = vmatpush2.bf16.msra.mxu0 0
    %2945 = vmatprep.subr.bf16.mxu0 0
    %2946 = vmatpush2.bf16.msra.mxu0 0
    %2947 = vmatprep.subr.bf16.mxu0 0
    %2948 = vmatpush2.bf16.msra.mxu0 0
    %2949 = vmatprep.subr.bf16.mxu0 0
    %2950 = vmatpush2.bf16.msra.mxu0 0
    %2951 = vmatprep.subr.bf16.mxu0 0
    %2952 = vmatpush2.bf16.msra.mxu0 0
    %2953 = vmatprep.subr.bf16.mxu0 0
    %2954 = vmatpush2.bf16.msra.mxu0 0
    %2955 = vmatprep.subr.bf16.mxu0 0
    %2956 = vmatpush2.bf16.msra.mxu0 0
    %2957 = vmatprep.mubr.bf16.mxu0 0
    %2958 = vmatmul.mubr.bf16.gmra.mxu0 %v2110
    %v2959 = vpop.f32.mrf.mxu0
    %v2960 = vadd.f32 %v2923, %v2959
    %v2961 = vpop.f32.mrf.mxu0
    %v2962 = vpop.f32.mrf.mxu0
    %v2963 = vadd.f32 %v2923, %v2962
    %v2964 = vpop.f32.mrf.mxu0
    %2965 = vmatprep.mubr.bf16.mxu0 0
    %2966 = vmatmul.mubr.bf16.gmra.mxu0 %v2113
    %v2967 = vpop.f32.mrf.mxu0
    %v2968 = vadd.f32 %v2923, %v2967
    %v2969 = vpop.f32.mrf.mxu0
    %v2970 = vpop.f32.mrf.mxu0
    %v2971 = vadd.f32 %v2923, %v2970
    %v2972 = vpop.f32.mrf.mxu0
    %2973 = vmatprep.mubr.bf16.mxu0 0
    %2974 = vmatmul.mubr.bf16.gmra.mxu0 %v2116
    %v2975 = vpop.f32.mrf.mxu0
    %v2976 = vadd.f32 %v2923, %v2975
    %v2977 = vpop.f32.mrf.mxu0
    %v2978 = vpop.f32.mrf.mxu0
    %v2979 = vadd.f32 %v2923, %v2978
    %v2980 = vpop.f32.mrf.mxu0
    %2981 = vmatprep.mubr.bf16.mxu0 0
    %2982 = vmatmul.mubr.bf16.gmra.mxu0 %v2119
    %v2983 = vpop.f32.mrf.mxu0
    %v2984 = vadd.f32 %v2923, %v2983
    %v2985 = vpop.f32.mrf.mxu0
    %v2986 = vpop.f32.mrf.mxu0
    %v2987 = vpop.f32.mrf.mxu0
    %2988 = vdwg.mxu0
    %2989 = vrot.lane.b32.xlu0 %v2204, 64
    %v2990 = vpop.permute.xlu0 %2989
    %2991 = vrot.lane.b32.xlu0 %v2205, 64
    %v2992 = vpop.permute.xlu0 %2991
    %2995 = vrot.lane.b32.xlu0 %v2194, 64
    %v2996 = vpop.permute.xlu0 %2995
    %2998 = vmatprep.subr.bf16.mxu0 0
    %2999 = vmatpush1.bf16.msra.mxu0 0
    %3000 = vmatprep.subr.bf16.mxu0 0
    %3001 = vmatpush1.bf16.msra.mxu0 0
    %3002 = vmatprep.subr.bf16.mxu0 0
    %3003 = vmatpush1.bf16.msra.mxu0 0
    %3004 = vmatprep.subr.bf16.mxu0 0
    %3005 = vmatpush1.bf16.msra.mxu0 0
    %3006 = vmatprep.subr.bf16.mxu0 0
    %3007 = vmatpush1.bf16.msra.mxu0 0
    %3008 = vmatprep.subr.bf16.mxu0 0
    %3009 = vmatpush1.bf16.msra.mxu0 0
    %3010 = vmatprep.subr.bf16.mxu0 0
    %3011 = vmatpush1.bf16.msra.mxu0 %v2992
    %3012 = vmatprep.subr.bf16.mxu0 0
    %3013 = vmatpush1.bf16.msra.mxu0 %v2990
    %3014 = vmatprep.subr.bf16.mxu0 0
    %3015 = vmatpush2.bf16.msra.mxu0 0
    %3016 = vmatprep.subr.bf16.mxu0 0
    %3017 = vmatpush2.bf16.msra.mxu0 0
    %3018 = vmatprep.subr.bf16.mxu0 0
    %3019 = vmatpush2.bf16.msra.mxu0 0
    %3020 = vmatprep.subr.bf16.mxu0 0
    %3021 = vmatpush2.bf16.msra.mxu0 0
    %3022 = vmatprep.subr.bf16.mxu0 0
    %3023 = vmatpush2.bf16.msra.mxu0 0
    %3024 = vmatprep.subr.bf16.mxu0 0
    %3025 = vmatpush2.bf16.msra.mxu0 0
    %3026 = vmatprep.subr.bf16.mxu0 0
    %3027 = vmatpush2.bf16.msra.mxu0 0
    %3028 = vmatprep.subr.bf16.mxu0 0
    %3029 = vmatpush2.bf16.msra.mxu0 0
    %3030 = vmatprep.mubr.bf16.mxu0 0
    %3031 = vmatmul.mubr.bf16.gmra.mxu0 %v2110
    %v3032 = vpop.f32.mrf.mxu0
    %v3033 = vadd.f32 %v2996, %v3032
    %v3034 = vpop.f32.mrf.mxu0
    %v3035 = vpop.f32.mrf.mxu0
    %v3036 = vadd.f32 %v2996, %v3035
    %v3037 = vpop.f32.mrf.mxu0
    %3038 = vmatprep.mubr.bf16.mxu0 0
    %3039 = vmatmul.mubr.bf16.gmra.mxu0 %v2113
    %v3040 = vpop.f32.mrf.mxu0
    %v3041 = vadd.f32 %v2996, %v3040
    %v3042 = vpop.f32.mrf.mxu0
    %v3043 = vpop.f32.mrf.mxu0
    %v3044 = vadd.f32 %v2996, %v3043
    %v3045 = vpop.f32.mrf.mxu0
    %3046 = vmatprep.mubr.bf16.mxu0 0
    %3047 = vmatmul.mubr.bf16.gmra.mxu0 %v2116
    %v3048 = vpop.f32.mrf.mxu0
    %v3049 = vadd.f32 %v2996, %v3048
    %v3050 = vpop.f32.mrf.mxu0
    %v3051 = vpop.f32.mrf.mxu0
    %v3052 = vadd.f32 %v2996, %v3051
    %v3053 = vpop.f32.mrf.mxu0
    %3054 = vmatprep.mubr.bf16.mxu0 0
    %3055 = vmatmul.mubr.bf16.gmra.mxu0 %v2119
    %v3056 = vpop.f32.mrf.mxu0
    %v3057 = vadd.f32 %v2996, %v3056
    %v3058 = vpop.f32.mrf.mxu0
    %v3059 = vpop.f32.mrf.mxu0
    %v3060 = vpop.f32.mrf.mxu0
    %3061 = vdwg.mxu0
    %v3062 = vpack.c.bf16 %v2911, %v2911
    %v3063 = vpack.c.bf16 %v2963, %v2960
    %v3064 = vpack.c.bf16 %v2971, %v2968
    %v3065 = vpack.c.bf16 %v2979, %v2976
    %v3066 = vpack.c.bf16 %v2984, %v2984
    %v3068 = vsel %vm415, %v3062, 0
    %v3071 = vsel %vm415, %v3063, 0
    %v3074 = vsel %vm415, %v3064, 0
    %v3077 = vsel %vm415, %v3065, 0
    %v3080 = vsel %vm415, %v3066, 0
    %3082 = vmatprep.subr.bf16.mxu0 0
    %3083 = vmatpush1.bf16.xpose.msra.mxu0 0
    %3084 = vmatprep.subr.bf16.mxu0 0
    %3085 = vmatpush1.bf16.xpose.msra.mxu0 0
    %3086 = vmatprep.subr.bf16.mxu0 0
    %3087 = vmatpush1.bf16.xpose.msra.mxu0 0
    %3088 = vmatprep.subr.bf16.mxu0 0
    %3089 = vmatpush1.bf16.xpose.msra.mxu0 0
    %3090 = vmatprep.subr.bf16.mxu0 0
    %3091 = vmatpush1.bf16.xpose.msra.mxu0 %v3080
    %3092 = vmatprep.subr.bf16.mxu0 0
    %3093 = vmatpush1.bf16.xpose.msra.mxu0 %v3077
    %3094 = vmatprep.subr.bf16.mxu0 0
    %3095 = vmatpush1.bf16.xpose.msra.mxu0 %v3074
    %3096 = vmatprep.subr.bf16.mxu0 0
    %3097 = vmatpush1.bf16.xpose.msra.mxu0 %v3071
    %3098 = vmatprep.subr.bf16.mxu0 0
    %3099 = vmatpush2.bf16.xpose.msra.mxu0 0
    %3100 = vmatprep.subr.bf16.mxu0 0
    %3101 = vmatpush2.bf16.xpose.msra.mxu0 0
    %3102 = vmatprep.subr.bf16.mxu0 0
    %3103 = vmatpush2.bf16.xpose.msra.mxu0 0
    %3104 = vmatprep.subr.bf16.mxu0 0
    %3105 = vmatpush2.bf16.xpose.msra.mxu0 0
    %3106 = vmatprep.subr.bf16.mxu0 0
    %3107 = vmatpush2.bf16.xpose.msra.mxu0 0
    %3108 = vmatprep.subr.bf16.mxu0 0
    %3109 = vmatpush2.bf16.xpose.msra.mxu0 0
    %3110 = vmatprep.subr.bf16.mxu0 0
    %3111 = vmatpush2.bf16.xpose.msra.mxu0 0
    %3112 = vmatprep.subr.bf16.mxu0 0
    %3113 = vmatpush2.bf16.xpose.msra.mxu0 0
    %3114 = vmatprep.mubr.bf16.mxu0 0
    %3115 = vmatmul.mubr.bf16.gmra.mxu0 %v3068
    %v3116 = vpop.f32.mrf.mxu0
    %v3117 = vadd.f32 0.0, %v3116
    %v3118 = vpop.f32.mrf.mxu0
    %v3119 = vpop.f32.mrf.mxu0
    %v3120 = vpop.f32.mrf.mxu0
    %3121 = vdwg.mxu0
    %v3122 = vsel %vm639, %v3117, -inf
    %3123 = vmax.xlane.f32.xlu0 %v3122
    %v3124 = vpop.xlane.xlu0 %3123
    %v3125 = vsub.f32 %v3117, %v3124
    %v3126 = vmul.f32 %v3125, 1.442695
    %v3127 = vpow.pop %v3126
    %v3128 = vsel %vm639, %v3127, 0.0
    %3129 = vadd.xlane.f32.xlu0 %v3128
    %v3130 = vpop.xlane.xlu0 %3129
    %v3131 = vrcp.pop %v3130
    %v3132 = vmul.f32 %v3127, %v3131
    %v3133 = vpack.c.bf16 %v3132, %v3132
    %v3134 = vpack.c.bf16 %v3036, %v3033
    %v3135 = vpack.c.bf16 %v3044, %v3041
    %v3136 = vpack.c.bf16 %v3052, %v3049
    %v3137 = vpack.c.bf16 %v3057, %v3057
    %v3139 = vsel %vm639, %v3133, 0
    %v3142 = vand.u32 %v3137, %v661
    %3144 = vmatprep.subr.bf16.mxu0 0
    %3145 = vmatpush1.bf16.msra.mxu0 0
    %3146 = vmatprep.subr.bf16.mxu0 0
    %3147 = vmatpush1.bf16.msra.mxu0 0
    %3148 = vmatprep.subr.bf16.mxu0 0
    %3149 = vmatpush1.bf16.msra.mxu0 0
    %3150 = vmatprep.subr.bf16.mxu0 0
    %3151 = vmatpush1.bf16.msra.mxu0 0
    %3152 = vmatprep.subr.bf16.mxu0 0
    %3153 = vmatpush1.bf16.msra.mxu0 %v3142
    %3154 = vmatprep.subr.bf16.mxu0 0
    %3155 = vmatpush1.bf16.msra.mxu0 %v3136
    %3156 = vmatprep.subr.bf16.mxu0 0
    %3157 = vmatpush1.bf16.msra.mxu0 %v3135
    %3158 = vmatprep.subr.bf16.mxu0 0
    %3159 = vmatpush1.bf16.msra.mxu0 %v3134
    %3160 = vmatprep.subr.bf16.mxu0 0
    %3161 = vmatpush2.bf16.msra.mxu0 0
    %3162 = vmatprep.subr.bf16.mxu0 0
    %3163 = vmatpush2.bf16.msra.mxu0 0
    %3164 = vmatprep.subr.bf16.mxu0 0
    %3165 = vmatpush2.bf16.msra.mxu0 0
    %3166 = vmatprep.subr.bf16.mxu0 0
    %3167 = vmatpush2.bf16.msra.mxu0 0
    %3168 = vmatprep.subr.bf16.mxu0 0
    %3169 = vmatpush2.bf16.msra.mxu0 0
    %3170 = vmatprep.subr.bf16.mxu0 0
    %3171 = vmatpush2.bf16.msra.mxu0 0
    %3172 = vmatprep.subr.bf16.mxu0 0
    %3173 = vmatpush2.bf16.msra.mxu0 0
    %3174 = vmatprep.subr.bf16.mxu0 0
    %3175 = vmatpush2.bf16.msra.mxu0 0
    %3176 = vmatprep.mubr.bf16.mxu0 0
    %3177 = vmatmul.mubr.bf16.gmra.mxu0 %v3139
    %v3178 = vpop.f32.mrf.mxu0
    %v3179 = vadd.f32 0.0, %v3178
    %v3180 = vpop.f32.mrf.mxu0
    %v3181 = vpop.f32.mrf.mxu0
    %v3182 = vpop.f32.mrf.mxu0
    %3183 = vdwg.mxu0
    %v3184 = vpack.c.bf16 %v3179, %v3179
    %v3185 = vld [vmem:[%s8 + $0x20] sm:$0xf]
    %v3186 = vld [vmem:[%s8 + $0x24] sm:$0xf]
    %v3187 = vld [vmem:[%s8 + $0x28] sm:$0xf]
    %v3188 = vld [vmem:[%s8 + $0x2c] sm:$0xf]
    %v3193 = vunpack.c.l.b16 %v3185
    %v3194 = vunpack.c.l.b16 %v3186
    %v3195 = vunpack.c.l.b16 %v3187
    %v3196 = vunpack.c.l.b16 %v3188
    %v3197 = vpack.c.b16 %v3194, %v3193
    %v3198 = vpack.c.b16 %v3196, %v3195
    %v3202 = vsel %vm415, %v3184, 0
    %3204 = vmatprep.subr.bf16.mxu0 0
    %3205 = vmatpush1.bf16.msra.mxu0 0
    %3206 = vmatprep.subr.bf16.mxu0 0
    %3207 = vmatpush1.bf16.msra.mxu0 0
    %3208 = vmatprep.subr.bf16.mxu0 0
    %3209 = vmatpush1.bf16.msra.mxu0 0
    %3210 = vmatprep.subr.bf16.mxu0 0
    %3211 = vmatpush1.bf16.msra.mxu0 0
    %3212 = vmatprep.subr.bf16.mxu0 0
    %3213 = vmatpush1.bf16.msra.mxu0 0
    %3214 = vmatprep.subr.bf16.mxu0 0
    %3215 = vmatpush1.bf16.msra.mxu0 0
    %3216 = vmatprep.subr.bf16.mxu0 0
    %3217 = vmatpush1.bf16.msra.mxu0 %v3198
    %3218 = vmatprep.subr.bf16.mxu0 0
    %3219 = vmatpush1.bf16.msra.mxu0 %v3197
    %3220 = vmatprep.subr.bf16.mxu0 0
    %3221 = vmatpush2.bf16.msra.mxu0 0
    %3222 = vmatprep.subr.bf16.mxu0 0
    %3223 = vmatpush2.bf16.msra.mxu0 0
    %3224 = vmatprep.subr.bf16.mxu0 0
    %3225 = vmatpush2.bf16.msra.mxu0 0
    %3226 = vmatprep.subr.bf16.mxu0 0
    %3227 = vmatpush2.bf16.msra.mxu0 0
    %3228 = vmatprep.subr.bf16.mxu0 0
    %3229 = vmatpush2.bf16.msra.mxu0 0
    %3230 = vmatprep.subr.bf16.mxu0 0
    %3231 = vmatpush2.bf16.msra.mxu0 0
    %3232 = vmatprep.subr.bf16.mxu0 0
    %3233 = vmatpush2.bf16.msra.mxu0 0
    %3234 = vmatprep.subr.bf16.mxu0 0
    %3235 = vmatpush2.bf16.msra.mxu0 0
    %3236 = vmatprep.mubr.bf16.mxu0 0
    %3237 = vmatmul.mubr.bf16.gmra.mxu0 %v3202
    %v3238 = vpop.f32.mrf.mxu0
    %v3239 = vadd.f32 0.0, %v3238
    %v3240 = vpop.f32.mrf.mxu0
    %v3241 = vpop.f32.mrf.mxu0
    %v3242 = vpop.f32.mrf.mxu0
    %3243 = vdwg.mxu0
    %v3244 = vadd.f32 %v2844, %v3239
    %3245 = vrot.lane.b32.xlu0 %v2030, 32
    %v3246 = vpop.permute.xlu0 %3245
    %3247 = vrot.lane.b32.xlu0 %v2031, 32
    %v3248 = vpop.permute.xlu0 %3247
    %3249 = vrot.lane.b32.xlu0 %v2032, 32
    %v3250 = vpop.permute.xlu0 %3249
    %3251 = vrot.lane.b32.xlu0 %v2033, 32
    %v3252 = vpop.permute.xlu0 %3251
    %3253 = vrot.lane.b32.xlu0 %v2034, 32
    %v3254 = vpop.permute.xlu0 %3253
    %3255 = vrot.lane.b32.xlu0 %v2035, 32
    %v3256 = vpop.permute.xlu0 %3255
    %3257 = vrot.lane.b32.xlu0 %v2036, 32
    %v3258 = vpop.permute.xlu0 %3257
    %3259 = vrot.lane.b32.xlu0 %v2037, 32
    %v3260 = vpop.permute.xlu0 %3259
    %3269 = vrot.lane.b32.xlu0 %v1996, 32
    %v3270 = vpop.permute.xlu0 %3269
    %3272 = vmatprep.subr.bf16.mxu0 0
    %3273 = vmatpush1.bf16.msra.mxu0 %v3260
    %3274 = vmatprep.subr.bf16.mxu0 0
    %3275 = vmatpush1.bf16.msra.mxu0 %v3258
    %3276 = vmatprep.subr.bf16.mxu0 0
    %3277 = vmatpush1.bf16.msra.mxu0 %v3256
    %3278 = vmatprep.subr.bf16.mxu0 0
    %3279 = vmatpush1.bf16.msra.mxu0 %v3254
    %3280 = vmatprep.subr.bf16.mxu0 0
    %3281 = vmatpush1.bf16.msra.mxu0 %v3252
    %3282 = vmatprep.subr.bf16.mxu0 0
    %3283 = vmatpush1.bf16.msra.mxu0 %v3250
    %3284 = vmatprep.subr.bf16.mxu0 0
    %3285 = vmatpush1.bf16.msra.mxu0 %v3248
    %3286 = vmatprep.subr.bf16.mxu0 0
    %3287 = vmatpush1.bf16.msra.mxu0 %v3246
    %3288 = vmatprep.subr.bf16.mxu0 0
    %3289 = vmatpush2.bf16.msra.mxu0 0
    %3290 = vmatprep.subr.bf16.mxu0 0
    %3291 = vmatpush2.bf16.msra.mxu0 0
    %3292 = vmatprep.subr.bf16.mxu0 0
    %3293 = vmatpush2.bf16.msra.mxu0 0
    %3294 = vmatprep.subr.bf16.mxu0 0
    %3295 = vmatpush2.bf16.msra.mxu0 0
    %3296 = vmatprep.subr.bf16.mxu0 0
    %3297 = vmatpush2.bf16.msra.mxu0 0
    %3298 = vmatprep.subr.bf16.mxu0 0
    %3299 = vmatpush2.bf16.msra.mxu0 0
    %3300 = vmatprep.subr.bf16.mxu0 0
    %3301 = vmatpush2.bf16.msra.mxu0 0
    %3302 = vmatprep.subr.bf16.mxu0 0
    %3303 = vmatpush2.bf16.msra.mxu0 0
    %3304 = vmatprep.mubr.bf16.mxu0 0
    %3305 = vmatmul.mubr.bf16.gmra.mxu0 %v1962
    %v3306 = vpop.f32.mrf.mxu0
    %v3307 = vadd.f32 %v3270, %v3306
    %v3308 = vpop.f32.mrf.mxu0
    %v3309 = vpop.f32.mrf.mxu0
    %v3310 = vpop.f32.mrf.mxu0
    %3311 = vdwg.mxu0
    %3312 = vrot.lane.b32.xlu0 %v2105, 32
    %v3313 = vpop.permute.xlu0 %3312
    %3314 = vrot.lane.b32.xlu0 %v2106, 32
    %v3315 = vpop.permute.xlu0 %3314
    %3318 = vrot.lane.b32.xlu0 %v2095, 32
    %v3319 = vpop.permute.xlu0 %3318
    %3321 = vmatprep.subr.bf16.mxu0 0
    %3322 = vmatpush1.bf16.msra.mxu0 0
    %3323 = vmatprep.subr.bf16.mxu0 0
    %3324 = vmatpush1.bf16.msra.mxu0 0
    %3325 = vmatprep.subr.bf16.mxu0 0
    %3326 = vmatpush1.bf16.msra.mxu0 0
    %3327 = vmatprep.subr.bf16.mxu0 0
    %3328 = vmatpush1.bf16.msra.mxu0 0
    %3329 = vmatprep.subr.bf16.mxu0 0
    %3330 = vmatpush1.bf16.msra.mxu0 0
    %3331 = vmatprep.subr.bf16.mxu0 0
    %3332 = vmatpush1.bf16.msra.mxu0 0
    %3333 = vmatprep.subr.bf16.mxu0 0
    %3334 = vmatpush1.bf16.msra.mxu0 %v3315
    %3335 = vmatprep.subr.bf16.mxu0 0
    %3336 = vmatpush1.bf16.msra.mxu0 %v3313
    %3337 = vmatprep.subr.bf16.mxu0 0
    %3338 = vmatpush2.bf16.msra.mxu0 0
    %3339 = vmatprep.subr.bf16.mxu0 0
    %3340 = vmatpush2.bf16.msra.mxu0 0
    %3341 = vmatprep.subr.bf16.mxu0 0
    %3342 = vmatpush2.bf16.msra.mxu0 0
    %3343 = vmatprep.subr.bf16.mxu0 0
    %3344 = vmatpush2.bf16.msra.mxu0 0
    %3345 = vmatprep.subr.bf16.mxu0 0
    %3346 = vmatpush2.bf16.msra.mxu0 0
    %3347 = vmatprep.subr.bf16.mxu0 0
    %3348 = vmatpush2.bf16.msra.mxu0 0
    %3349 = vmatprep.subr.bf16.mxu0 0
    %3350 = vmatpush2.bf16.msra.mxu0 0
    %3351 = vmatprep.subr.bf16.mxu0 0
    %3352 = vmatpush2.bf16.msra.mxu0 0
    %3353 = vmatprep.mubr.bf16.mxu0 0
    %3354 = vmatmul.mubr.bf16.gmra.mxu0 %v2110
    %v3355 = vpop.f32.mrf.mxu0
    %v3356 = vadd.f32 %v3319, %v3355
    %v3357 = vpop.f32.mrf.mxu0
    %v3358 = vpop.f32.mrf.mxu0
    %v3359 = vadd.f32 %v3319, %v3358
    %v3360 = vpop.f32.mrf.mxu0
    %3361 = vmatprep.mubr.bf16.mxu0 0
    %3362 = vmatmul.mubr.bf16.gmra.mxu0 %v2113
    %v3363 = vpop.f32.mrf.mxu0
    %v3364 = vadd.f32 %v3319, %v3363
    %v3365 = vpop.f32.mrf.mxu0
    %v3366 = vpop.f32.mrf.mxu0
    %v3367 = vadd.f32 %v3319, %v3366
    %v3368 = vpop.f32.mrf.mxu0
    %3369 = vmatprep.mubr.bf16.mxu0 0
    %3370 = vmatmul.mubr.bf16.gmra.mxu0 %v2116
    %v3371 = vpop.f32.mrf.mxu0
    %v3372 = vadd.f32 %v3319, %v3371
    %v3373 = vpop.f32.mrf.mxu0
    %v3374 = vpop.f32.mrf.mxu0
    %v3375 = vadd.f32 %v3319, %v3374
    %v3376 = vpop.f32.mrf.mxu0
    %3377 = vmatprep.mubr.bf16.mxu0 0
    %3378 = vmatmul.mubr.bf16.gmra.mxu0 %v2119
    %v3379 = vpop.f32.mrf.mxu0
    %v3380 = vadd.f32 %v3319, %v3379
    %v3381 = vpop.f32.mrf.mxu0
    %v3382 = vpop.f32.mrf.mxu0
    %v3383 = vpop.f32.mrf.mxu0
    %3384 = vdwg.mxu0
    %3385 = vrot.lane.b32.xlu0 %v2204, 32
    %v3386 = vpop.permute.xlu0 %3385
    %3387 = vrot.lane.b32.xlu0 %v2205, 32
    %v3388 = vpop.permute.xlu0 %3387
    %3391 = vrot.lane.b32.xlu0 %v2194, 32
    %v3392 = vpop.permute.xlu0 %3391
    %3394 = vmatprep.subr.bf16.mxu0 0
    %3395 = vmatpush1.bf16.msra.mxu0 0
    %3396 = vmatprep.subr.bf16.mxu0 0
    %3397 = vmatpush1.bf16.msra.mxu0 0
    %3398 = vmatprep.subr.bf16.mxu0 0
    %3399 = vmatpush1.bf16.msra.mxu0 0
    %3400 = vmatprep.subr.bf16.mxu0 0
    %3401 = vmatpush1.bf16.msra.mxu0 0
    %3402 = vmatprep.subr.bf16.mxu0 0
    %3403 = vmatpush1.bf16.msra.mxu0 0
    %3404 = vmatprep.subr.bf16.mxu0 0
    %3405 = vmatpush1.bf16.msra.mxu0 0
    %3406 = vmatprep.subr.bf16.mxu0 0
    %3407 = vmatpush1.bf16.msra.mxu0 %v3388
    %3408 = vmatprep.subr.bf16.mxu0 0
    %3409 = vmatpush1.bf16.msra.mxu0 %v3386
    %3410 = vmatprep.subr.bf16.mxu0 0
    %3411 = vmatpush2.bf16.msra.mxu0 0
    %3412 = vmatprep.subr.bf16.mxu0 0
    %3413 = vmatpush2.bf16.msra.mxu0 0
    %3414 = vmatprep.subr.bf16.mxu0 0
    %3415 = vmatpush2.bf16.msra.mxu0 0
    %3416 = vmatprep.subr.bf16.mxu0 0
    %3417 = vmatpush2.bf16.msra.mxu0 0
    %3418 = vmatprep.subr.bf16.mxu0 0
    %3419 = vmatpush2.bf16.msra.mxu0 0
    %3420 = vmatprep.subr.bf16.mxu0 0
    %3421 = vmatpush2.bf16.msra.mxu0 0
    %3422 = vmatprep.subr.bf16.mxu0 0
    %3423 = vmatpush2.bf16.msra.mxu0 0
    %3424 = vmatprep.subr.bf16.mxu0 0
    %3425 = vmatpush2.bf16.msra.mxu0 0
    %3426 = vmatprep.mubr.bf16.mxu0 0
    %3427 = vmatmul.mubr.bf16.gmra.mxu0 %v2110
    %v3428 = vpop.f32.mrf.mxu0
    %v3429 = vadd.f32 %v3392, %v3428
    %v3430 = vpop.f32.mrf.mxu0
    %v3431 = vpop.f32.mrf.mxu0
    %v3432 = vadd.f32 %v3392, %v3431
    %v3433 = vpop.f32.mrf.mxu0
    %3434 = vmatprep.mubr.bf16.mxu0 0
    %3435 = vmatmul.mubr.bf16.gmra.mxu0 %v2113
    %v3436 = vpop.f32.mrf.mxu0
    %v3437 = vadd.f32 %v3392, %v3436
    %v3438 = vpop.f32.mrf.mxu0
    %v3439 = vpop.f32.mrf.mxu0
    %v3440 = vadd.f32 %v3392, %v3439
    %v3441 = vpop.f32.mrf.mxu0
    %3442 = vmatprep.mubr.bf16.mxu0 0
    %3443 = vmatmul.mubr.bf16.gmra.mxu0 %v2116
    %v3444 = vpop.f32.mrf.mxu0
    %v3445 = vadd.f32 %v3392, %v3444
    %v3446 = vpop.f32.mrf.mxu0
    %v3447 = vpop.f32.mrf.mxu0
    %v3448 = vadd.f32 %v3392, %v3447
    %v3449 = vpop.f32.mrf.mxu0
    %3450 = vmatprep.mubr.bf16.mxu0 0
    %3451 = vmatmul.mubr.bf16.gmra.mxu0 %v2119
    %v3452 = vpop.f32.mrf.mxu0
    %v3453 = vadd.f32 %v3392, %v3452
    %v3454 = vpop.f32.mrf.mxu0
    %v3455 = vpop.f32.mrf.mxu0
    %v3456 = vpop.f32.mrf.mxu0
    %3457 = vdwg.mxu0
    %v3458 = vpack.c.bf16 %v3307, %v3307
    %v3459 = vpack.c.bf16 %v3359, %v3356
    %v3460 = vpack.c.bf16 %v3367, %v3364
    %v3461 = vpack.c.bf16 %v3375, %v3372
    %v3462 = vpack.c.bf16 %v3380, %v3380
    %v3464 = vsel %vm415, %v3458, 0
    %v3467 = vsel %vm415, %v3459, 0
    %v3470 = vsel %vm415, %v3460, 0
    %v3473 = vsel %vm415, %v3461, 0
    %v3476 = vsel %vm415, %v3462, 0
    %3478 = vmatprep.subr.bf16.mxu0 0
    %3479 = vmatpush1.bf16.xpose.msra.mxu0 0
    %3480 = vmatprep.subr.bf16.mxu0 0
    %3481 = vmatpush1.bf16.xpose.msra.mxu0 0
    %3482 = vmatprep.subr.bf16.mxu0 0
    %3483 = vmatpush1.bf16.xpose.msra.mxu0 0
    %3484 = vmatprep.subr.bf16.mxu0 0
    %3485 = vmatpush1.bf16.xpose.msra.mxu0 0
    %3486 = vmatprep.subr.bf16.mxu0 0
    %3487 = vmatpush1.bf16.xpose.msra.mxu0 %v3476
    %3488 = vmatprep.subr.bf16.mxu0 0
    %3489 = vmatpush1.bf16.xpose.msra.mxu0 %v3473
    %3490 = vmatprep.subr.bf16.mxu0 0
    %3491 = vmatpush1.bf16.xpose.msra.mxu0 %v3470
    %3492 = vmatprep.subr.bf16.mxu0 0
    %3493 = vmatpush1.bf16.xpose.msra.mxu0 %v3467
    %3494 = vmatprep.subr.bf16.mxu0 0
    %3495 = vmatpush2.bf16.xpose.msra.mxu0 0
    %3496 = vmatprep.subr.bf16.mxu0 0
    %3497 = vmatpush2.bf16.xpose.msra.mxu0 0
    %3498 = vmatprep.subr.bf16.mxu0 0
    %3499 = vmatpush2.bf16.xpose.msra.mxu0 0
    %3500 = vmatprep.subr.bf16.mxu0 0
    %3501 = vmatpush2.bf16.xpose.msra.mxu0 0
    %3502 = vmatprep.subr.bf16.mxu0 0
    %3503 = vmatpush2.bf16.xpose.msra.mxu0 0
    %3504 = vmatprep.subr.bf16.mxu0 0
    %3505 = vmatpush2.bf16.xpose.msra.mxu0 0
    %3506 = vmatprep.subr.bf16.mxu0 0
    %3507 = vmatpush2.bf16.xpose.msra.mxu0 0
    %3508 = vmatprep.subr.bf16.mxu0 0
    %3509 = vmatpush2.bf16.xpose.msra.mxu0 0
    %3510 = vmatprep.mubr.bf16.mxu0 0
    %3511 = vmatmul.mubr.bf16.gmra.mxu0 %v3464
    %v3512 = vpop.f32.mrf.mxu0
    %v3513 = vadd.f32 0.0, %v3512
    %v3514 = vpop.f32.mrf.mxu0
    %v3515 = vpop.f32.mrf.mxu0
    %v3516 = vpop.f32.mrf.mxu0
    %3517 = vdwg.mxu0
    %v3518 = vsel %vm639, %v3513, -inf
    %3519 = vmax.xlane.f32.xlu0 %v3518
    %v3520 = vpop.xlane.xlu0 %3519
    %v3521 = vsub.f32 %v3513, %v3520
    %v3522 = vmul.f32 %v3521, 1.442695
    %v3523 = vpow.pop %v3522
    %v3524 = vsel %vm639, %v3523, 0.0
    %3525 = vadd.xlane.f32.xlu0 %v3524
    %v3526 = vpop.xlane.xlu0 %3525
    %v3527 = vrcp.pop %v3526
    %v3528 = vmul.f32 %v3523, %v3527
    %v3529 = vpack.c.bf16 %v3528, %v3528
    %v3530 = vpack.c.bf16 %v3432, %v3429
    %v3531 = vpack.c.bf16 %v3440, %v3437
    %v3532 = vpack.c.bf16 %v3448, %v3445
    %v3533 = vpack.c.bf16 %v3453, %v3453
    %v3535 = vsel %vm639, %v3529, 0
    %v3538 = vand.u32 %v3533, %v661
    %3540 = vmatprep.subr.bf16.mxu0 0
    %3541 = vmatpush1.bf16.msra.mxu0 0
    %3542 = vmatprep.subr.bf16.mxu0 0
    %3543 = vmatpush1.bf16.msra.mxu0 0
    %3544 = vmatprep.subr.bf16.mxu0 0
    %3545 = vmatpush1.bf16.msra.mxu0 0
    %3546 = vmatprep.subr.bf16.mxu0 0
    %3547 = vmatpush1.bf16.msra.mxu0 0
    %3548 = vmatprep.subr.bf16.mxu0 0
    %3549 = vmatpush1.bf16.msra.mxu0 %v3538
    %3550 = vmatprep.subr.bf16.mxu0 0
    %3551 = vmatpush1.bf16.msra.mxu0 %v3532
    %3552 = vmatprep.subr.bf16.mxu0 0
    %3553 = vmatpush1.bf16.msra.mxu0 %v3531
    %3554 = vmatprep.subr.bf16.mxu0 0
    %3555 = vmatpush1.bf16.msra.mxu0 %v3530
    %3556 = vmatprep.subr.bf16.mxu0 0
    %3557 = vmatpush2.bf16.msra.mxu0 0
    %3558 = vmatprep.subr.bf16.mxu0 0
    %3559 = vmatpush2.bf16.msra.mxu0 0
    %3560 = vmatprep.subr.bf16.mxu0 0
    %3561 = vmatpush2.bf16.msra.mxu0 0
    %3562 = vmatprep.subr.bf16.mxu0 0
    %3563 = vmatpush2.bf16.msra.mxu0 0
    %3564 = vmatprep.subr.bf16.mxu0 0
    %3565 = vmatpush2.bf16.msra.mxu0 0
    %3566 = vmatprep.subr.bf16.mxu0 0
    %3567 = vmatpush2.bf16.msra.mxu0 0
    %3568 = vmatprep.subr.bf16.mxu0 0
    %3569 = vmatpush2.bf16.msra.mxu0 0
    %3570 = vmatprep.subr.bf16.mxu0 0
    %3571 = vmatpush2.bf16.msra.mxu0 0
    %3572 = vmatprep.mubr.bf16.mxu0 0
    %3573 = vmatmul.mubr.bf16.gmra.mxu0 %v3535
    %v3574 = vpop.f32.mrf.mxu0
    %v3575 = vadd.f32 0.0, %v3574
    %v3576 = vpop.f32.mrf.mxu0
    %v3577 = vpop.f32.mrf.mxu0
    %v3578 = vpop.f32.mrf.mxu0
    %3579 = vdwg.mxu0
    %v3580 = vpack.c.bf16 %v3575, %v3575
    %v3581 = vld [vmem:[%s8 + $0x30] sm:$0xf]
    %v3582 = vld [vmem:[%s8 + $0x34] sm:$0xf]
    %v3583 = vld [vmem:[%s8 + $0x38] sm:$0xf]
    %v3584 = vld [vmem:[%s8 + $0x3c] sm:$0xf]
    %v3589 = vunpack.c.l.b16 %v3581
    %v3590 = vunpack.c.l.b16 %v3582
    %v3591 = vunpack.c.l.b16 %v3583
    %v3592 = vunpack.c.l.b16 %v3584
    %v3593 = vpack.c.b16 %v3590, %v3589
    %v3594 = vpack.c.b16 %v3592, %v3591
    %v3598 = vsel %vm415, %v3580, 0
    %3600 = vmatprep.subr.bf16.mxu0 0
    %3601 = vmatpush1.bf16.msra.mxu0 0
    %3602 = vmatprep.subr.bf16.mxu0 0
    %3603 = vmatpush1.bf16.msra.mxu0 0
    %3604 = vmatprep.subr.bf16.mxu0 0
    %3605 = vmatpush1.bf16.msra.mxu0 0
    %3606 = vmatprep.subr.bf16.mxu0 0
    %3607 = vmatpush1.bf16.msra.mxu0 0
    %3608 = vmatprep.subr.bf16.mxu0 0
    %3609 = vmatpush1.bf16.msra.mxu0 0
    %3610 = vmatprep.subr.bf16.mxu0 0
    %3611 = vmatpush1.bf16.msra.mxu0 0
    %3612 = vmatprep.subr.bf16.mxu0 0
    %3613 = vmatpush1.bf16.msra.mxu0 %v3594
    %3614 = vmatprep.subr.bf16.mxu0 0
    %3615 = vmatpush1.bf16.msra.mxu0 %v3593
    %3616 = vmatprep.subr.bf16.mxu0 0
    %3617 = vmatpush2.bf16.msra.mxu0 0
    %3618 = vmatprep.subr.bf16.mxu0 0
    %3619 = vmatpush2.bf16.msra.mxu0 0
    %3620 = vmatprep.subr.bf16.mxu0 0
    %3621 = vmatpush2.bf16.msra.mxu0 0
    %3622 = vmatprep.subr.bf16.mxu0 0
    %3623 = vmatpush2.bf16.msra.mxu0 0
    %3624 = vmatprep.subr.bf16.mxu0 0
    %3625 = vmatpush2.bf16.msra.mxu0 0
    %3626 = vmatprep.subr.bf16.mxu0 0
    %3627 = vmatpush2.bf16.msra.mxu0 0
    %3628 = vmatprep.subr.bf16.mxu0 0
    %3629 = vmatpush2.bf16.msra.mxu0 0
    %3630 = vmatprep.subr.bf16.mxu0 0
    %3631 = vmatpush2.bf16.msra.mxu0 0
    %3632 = vmatprep.mubr.bf16.mxu0 0
    %3633 = vmatmul.mubr.bf16.gmra.mxu0 %v3598
    %v3634 = vpop.f32.mrf.mxu0
    %v3635 = vadd.f32 0.0, %v3634
    %v3636 = vpop.f32.mrf.mxu0
    %v3637 = vpop.f32.mrf.mxu0
    %v3638 = vpop.f32.mrf.mxu0
    %3639 = vdwg.mxu0
    %v3640 = vadd.f32 %v3244, %v3635
    %v3641 = vld [vmem:[%s9] sm:$0x1]
    %v3643 = vlaneseq
    %v3644 = vshrl.u32 %v3643, 7
    %v3645 = vsub.s32 0, %v3644
    %v3646 = vrot.slane %v3641, %v3645
    %v3648 = vadd.f32 %v3640, %v3646
    %3649 = vst [vmem:[#allocation4 + $0x8] sm:$0xff] %v3648
    %v3650 = vld [vmem:[%s0] sm:$0xff]
    %v3651 = vld [vmem:[%s0 + $0x8] sm:$0xff]
    %v3652 = vld [vmem:[#allocation4] sm:$0xff]
    %v3653 = vld [vmem:[#allocation4 + $0x8] sm:$0xff]
    %v3654 = vadd.f32 %v3650, %v3652
    %v3655 = vadd.f32 %v3651, %v3653
    %v3656 = vld [vmem:[%s10] sm:$0x1]
    %v3657 = vld [vmem:[%s11] sm:$0x1]
    %3658 = vadd.xlane.f32.xlu0 %v3654
    %v3659 = vpop.xlane.xlu0 %3658
    %3660 = vadd.xlane.f32.xlu0 %v3655
    %v3661 = vpop.xlane.xlu0 %3660
    %v3662 = vrcp.pop 128.0
    %v3663 = vmul.f32 %v3659, %v3662
    %v3664 = vmul.f32 %v3661, %v3662
    %v3665 = vsub.f32 %v3654, %v3663
    %v3666 = vsub.f32 %v3655, %v3664
    %v3667 = vmul.f32 %v3665, %v3665
    %v3668 = vmul.f32 %v3666, %v3666
    %3669 = vadd.xlane.f32.xlu0 %v3667
    %v3670 = vpop.xlane.xlu0 %3669
    %3671 = vadd.xlane.f32.xlu0 %v3668
    %v3672 = vpop.xlane.xlu0 %3671
    %v3673 = vmul.f32 %v3670, %v3662
    %v3674 = vmul.f32 %v3672, %v3662
    %v3675 = vadd.f32 %v3673, 1e-05
    %v3676 = vadd.f32 %v3674, 1e-05
    %v3677 = vrsqrt.pop %v3675
    %v3678 = vrsqrt.pop %v3676
    %v3679 = vmul.f32 %v3665, %v3677
    %v3680 = vmul.f32 %v3666, %v3678
    %v3682 = vlaneseq
    %v3683 = vshrl.u32 %v3682, 7
    %v3684 = vsub.s32 0, %v3683
    %v3685 = vrot.slane %v3656, %v3684
    %v3687 = vmul.f32 %v3679, %v3685
    %v3688 = vmul.f32 %v3680, %v3685
    %v3690 = vlaneseq
    %v3691 = vshrl.u32 %v3690, 7
    %v3692 = vsub.s32 0, %v3691
    %v3693 = vrot.slane %v3657, %v3692
    %v3695 = vadd.f32 %v3687, %v3693
    %v3696 = vadd.f32 %v3688, %v3693
    %s3697 = smul.u32 4, 16
    %s3698 = smul.u32 %s3697, 4
    %s3699 = sshll.u32 %s3698, 4
    %3700 = dma.done [#allocation5], %s3699
    %v3701 = vpack.c.bf16 %v3696, %v3695
    %v3702 = vld [vmem:[#allocation2] sm:$0xff]
    %v3703 = vld [vmem:[#allocation2 + $0x8] sm:$0xff]
    %v3704 = vld [vmem:[#allocation2 + $0x10] sm:$0xff]
    %v3705 = vld [vmem:[#allocation2 + $0x18] sm:$0xff]
    %v3706 = vld [vmem:[#allocation2 + $0x20] sm:$0xff]
    %v3707 = vld [vmem:[#allocation2 + $0x28] sm:$0xff]
    %v3708 = vld [vmem:[#allocation2 + $0x30] sm:$0xff]
    %v3709 = vld [vmem:[#allocation2 + $0x38] sm:$0xff]
    %v3710 = vld [vmem:[#allocation2 + $0x40] sm:$0xff]
    %v3711 = vld [vmem:[#allocation2 + $0x48] sm:$0xff]
    %v3712 = vld [vmem:[#allocation2 + $0x50] sm:$0xff]
    %v3713 = vld [vmem:[#allocation2 + $0x58] sm:$0xff]
    %v3714 = vld [vmem:[#allocation2 + $0x60] sm:$0xff]
    %v3715 = vld [vmem:[#allocation2 + $0x68] sm:$0xff]
    %v3716 = vld [vmem:[#allocation2 + $0x70] sm:$0xff]
    %v3717 = vld [vmem:[#allocation2 + $0x78] sm:$0xff]
    %v3718 = vld [vmem:[#allocation2 + $0x80] sm:$0xff]
    %v3719 = vld [vmem:[#allocation2 + $0x88] sm:$0xff]
    %v3720 = vld [vmem:[#allocation2 + $0x90] sm:$0xff]
    %v3721 = vld [vmem:[#allocation2 + $0x98] sm:$0xff]
    %v3722 = vld [vmem:[#allocation2 + $0xa0] sm:$0xff]
    %v3723 = vld [vmem:[#allocation2 + $0xa8] sm:$0xff]
    %v3724 = vld [vmem:[#allocation2 + $0xb0] sm:$0xff]
    %v3725 = vld [vmem:[#allocation2 + $0xb8] sm:$0xff]
    %v3726 = vld [vmem:[#allocation2 + $0xc0] sm:$0xff]
    %v3727 = vld [vmem:[#allocation2 + $0xc8] sm:$0xff]
    %v3728 = vld [vmem:[#allocation2 + $0xd0] sm:$0xff]
    %v3729 = vld [vmem:[#allocation2 + $0xd8] sm:$0xff]
    %v3730 = vld [vmem:[#allocation2 + $0xe0] sm:$0xff]
    %v3731 = vld [vmem:[#allocation2 + $0xe8] sm:$0xff]
    %v3732 = vld [vmem:[#allocation2 + $0xf0] sm:$0xff]
    %v3733 = vld [vmem:[#allocation2 + $0xf8] sm:$0xff]
    %v3734 = vld [vmem:[%s13] sm:$0xf]
    %v3736 = vlaneseq
    %v3737 = vshrl.u32 %v3736, 7
    %v3738 = vsub.s32 0, %v3737
    %v3739 = vrot.slane %v3734, %v3738
    %v3740 = vlaneseq
    %v3741 = vshrl.u32 %v3740, 7
    %v3742 = vsub.s32 1, %v3741
    %v3743 = vrot.slane %v3734, %v3742
    %v3744 = vlaneseq
    %v3745 = vshrl.u32 %v3744, 7
    %v3746 = vsub.s32 2, %v3745
    %v3747 = vrot.slane %v3734, %v3746
    %v3748 = vlaneseq
    %v3749 = vshrl.u32 %v3748, 7
    %v3750 = vsub.s32 3, %v3749
    %v3751 = vrot.slane %v3734, %v3750
    %v3788 = vunpack.c.l.b16 %v3702
    %v3789 = vunpack.c.h.b16 %v3702
    %v3790 = vunpack.c.l.b16 %v3703
    %v3791 = vunpack.c.h.b16 %v3703
    %v3792 = vunpack.c.l.b16 %v3704
    %v3793 = vunpack.c.h.b16 %v3704
    %v3794 = vunpack.c.l.b16 %v3705
    %v3795 = vunpack.c.h.b16 %v3705
    %v3796 = vunpack.c.l.b16 %v3706
    %v3797 = vunpack.c.h.b16 %v3706
    %v3798 = vunpack.c.l.b16 %v3707
    %v3799 = vunpack.c.h.b16 %v3707
    %v3800 = vunpack.c.l.b16 %v3708
    %v3801 = vunpack.c.h.b16 %v3708
    %v3802 = vunpack.c.l.b16 %v3709
    %v3803 = vunpack.c.h.b16 %v3709
    %v3804 = vunpack.c.l.b16 %v3710
    %v3805 = vunpack.c.h.b16 %v3710
    %v3806 = vunpack.c.l.b16 %v3711
    %v3807 = vunpack.c.h.b16 %v3711
    %v3808 = vunpack.c.l.b16 %v3712
    %v3809 = vunpack.c.h.b16 %v3712
    %v3810 = vunpack.c.l.b16 %v3713
    %v3811 = vunpack.c.h.b16 %v3713
    %v3812 = vunpack.c.l.b16 %v3714
    %v3813 = vunpack.c.h.b16 %v3714
    %v3814 = vunpack.c.l.b16 %v3715
    %v3815 = vunpack.c.h.b16 %v3715
    %v3816 = vunpack.c.l.b16 %v3716
    %v3817 = vunpack.c.h.b16 %v3716
    %v3818 = vunpack.c.l.b16 %v3717
    %v3819 = vunpack.c.h.b16 %v3717
    %v3820 = vunpack.c.l.b16 %v3718
    %v3821 = vunpack.c.h.b16 %v3718
    %v3822 = vunpack.c.l.b16 %v3719
    %v3823 = vunpack.c.h.b16 %v3719
    %v3824 = vunpack.c.l.b16 %v3720
    %v3825 = vunpack.c.h.b16 %v3720
    %v3826 = vunpack.c.l.b16 %v3721
    %v3827 = vunpack.c.h.b16 %v3721
    %v3828 = vunpack.c.l.b16 %v3722
    %v3829 = vunpack.c.h.b16 %v3722
    %v3830 = vunpack.c.l.b16 %v3723
    %v3831 = vunpack.c.h.b16 %v3723
    %v3832 = vunpack.c.l.b16 %v3724
    %v3833 = vunpack.c.h.b16 %v3724
    %v3834 = vunpack.c.l.b16 %v3725
    %v3835 = vunpack.c.h.b16 %v3725
    %v3836 = vunpack.c.l.b16 %v3726
    %v3837 = vunpack.c.h.b16 %v3726
    %v3838 = vunpack.c.l.b16 %v3727
    %v3839 = vunpack.c.h.b16 %v3727
    %v3840 = vunpack.c.l.b16 %v3728
    %v3841 = vunpack.c.h.b16 %v3728
    %v3842 = vunpack.c.l.b16 %v3729
    %v3843 = vunpack.c.h.b16 %v3729
    %v3844 = vunpack.c.l.b16 %v3730
    %v3845 = vunpack.c.h.b16 %v3730
    %v3846 = vunpack.c.l.b16 %v3731
    %v3847 = vunpack.c.h.b16 %v3731
    %v3848 = vunpack.c.l.b16 %v3732
    %v3849 = vunpack.c.h.b16 %v3732
    %v3850 = vunpack.c.l.b16 %v3733
    %v3851 = vunpack.c.h.b16 %v3733
    %v3852 = vpack.c.b16 %v3792, %v3788
    %v3853 = vpack.c.b16 %v3793, %v3789
    %v3854 = vpack.c.b16 %v3794, %v3790
    %v3855 = vpack.c.b16 %v3795, %v3791
    %v3856 = vpack.c.b16 %v3800, %v3796
    %v3857 = vpack.c.b16 %v3801, %v3797
    %v3858 = vpack.c.b16 %v3802, %v3798
    %v3859 = vpack.c.b16 %v3803, %v3799
    %v3860 = vpack.c.b16 %v3808, %v3804
    %v3861 = vpack.c.b16 %v3809, %v3805
    %v3862 = vpack.c.b16 %v3810, %v3806
    %v3863 = vpack.c.b16 %v3811, %v3807
    %v3864 = vpack.c.b16 %v3816, %v3812
    %v3865 = vpack.c.b16 %v3817, %v3813
    %v3866 = vpack.c.b16 %v3818, %v3814
    %v3867 = vpack.c.b16 %v3819, %v3815
    %v3868 = vpack.c.b16 %v3824, %v3820
    %v3869 = vpack.c.b16 %v3825, %v3821
    %v3870 = vpack.c.b16 %v3826, %v3822
    %v3871 = vpack.c.b16 %v3827, %v3823
    %v3872 = vpack.c.b16 %v3832, %v3828
    %v3873 = vpack.c.b16 %v3833, %v3829
    %v3874 = vpack.c.b16 %v3834, %v3830
    %v3875 = vpack.c.b16 %v3835, %v3831
    %v3876 = vpack.c.b16 %v3840, %v3836
    %v3877 = vpack.c.b16 %v3841, %v3837
    %v3878 = vpack.c.b16 %v3842, %v3838
    %v3879 = vpack.c.b16 %v3843, %v3839
    %v3880 = vpack.c.b16 %v3848, %v3844
    %v3881 = vpack.c.b16 %v3849, %v3845
    %v3882 = vpack.c.b16 %v3850, %v3846
    %v3883 = vpack.c.b16 %v3851, %v3847
    %3916 = vmatprep.subr.bf16.mxu0 %v3881
    %3917 = vmatpush1.bf16.msra.mxu0 %v3880
    %3918 = vmatprep.subr.bf16.mxu0 %v3877
    %3919 = vmatpush1.bf16.msra.mxu0 %v3876
    %3920 = vmatprep.subr.bf16.mxu0 %v3873
    %3921 = vmatpush1.bf16.msra.mxu0 %v3872
    %3922 = vmatprep.subr.bf16.mxu0 %v3869
    %3923 = vmatpush1.bf16.msra.mxu0 %v3868
    %3924 = vmatprep.subr.bf16.mxu0 %v3865
    %3925 = vmatpush1.bf16.msra.mxu0 %v3864
    %3926 = vmatprep.subr.bf16.mxu0 %v3861
    %3927 = vmatpush1.bf16.msra.mxu0 %v3860
    %3928 = vmatprep.subr.bf16.mxu0 %v3857
    %3929 = vmatpush1.bf16.msra.mxu0 %v3856
    %3930 = vmatprep.subr.bf16.mxu0 %v3853
    %3931 = vmatpush1.bf16.msra.mxu0 %v3852
    %3932 = vmatprep.subr.bf16.mxu0 0
    %3933 = vmatpush2.bf16.msra.mxu0 0
    %3934 = vmatprep.subr.bf16.mxu0 0
    %3935 = vmatpush2.bf16.msra.mxu0 0
    %3936 = vmatprep.subr.bf16.mxu0 0
    %3937 = vmatpush2.bf16.msra.mxu0 0
    %3938 = vmatprep.subr.bf16.mxu0 0
    %3939 = vmatpush2.bf16.msra.mxu0 0
    %3940 = vmatprep.subr.bf16.mxu0 0
    %3941 = vmatpush2.bf16.msra.mxu0 0
    %3942 = vmatprep.subr.bf16.mxu0 0
    %3943 = vmatpush2.bf16.msra.mxu0 0
    %3944 = vmatprep.subr.bf16.mxu0 0
    %3945 = vmatpush2.bf16.msra.mxu0 0
    %3946 = vmatprep.subr.bf16.mxu0 0
    %3947 = vmatpush2.bf16.msra.mxu0 0
    %3948 = vmatprep.mubr.bf16.mxu0 0
    %3949 = vmatmul.mubr.bf16.gmra.mxu0 %v3701
    %v3950 = vpop.f32.mrf.mxu0
    %v3951 = vadd.f32 %v3739, %v3950
    %v3952 = vpop.f32.mrf.mxu0
    %v3953 = vadd.f32 %v3743, %v3952
    %v3954 = vpop.f32.mrf.mxu0
    %v3955 = vadd.f32 %v3739, %v3954
    %v3956 = vpop.f32.mrf.mxu0
    %v3957 = vadd.f32 %v3743, %v3956
    %3958 = vdwg.mxu0
    %3959 = vmatprep.subr.bf16.mxu0 %v3883
    %3960 = vmatpush1.bf16.msra.mxu0 %v3882
    %3961 = vmatprep.subr.bf16.mxu0 %v3879
    %3962 = vmatpush1.bf16.msra.mxu0 %v3878
    %3963 = vmatprep.subr.bf16.mxu0 %v3875
    %3964 = vmatpush1.bf16.msra.mxu0 %v3874
    %3965 = vmatprep.subr.bf16.mxu0 %v3871
    %3966 = vmatpush1.bf16.msra.mxu0 %v3870
    %3967 = vmatprep.subr.bf16.mxu0 %v3867
    %3968 = vmatpush1.bf16.msra.mxu0 %v3866
    %3969 = vmatprep.subr.bf16.mxu0 %v3863
    %3970 = vmatpush1.bf16.msra.mxu0 %v3862
    %3971 = vmatprep.subr.bf16.mxu0 %v3859
    %3972 = vmatpush1.bf16.msra.mxu0 %v3858
    %3973 = vmatprep.subr.bf16.mxu0 %v3855
    %3974 = vmatpush1.bf16.msra.mxu0 %v3854
    %3975 = vmatprep.subr.bf16.mxu0 0
    %3976 = vmatpush2.bf16.msra.mxu0 0
    %3977 = vmatprep.subr.bf16.mxu0 0
    %3978 = vmatpush2.bf16.msra.mxu0 0
    %3979 = vmatprep.subr.bf16.mxu0 0
    %3980 = vmatpush2.bf16.msra.mxu0 0
    %3981 = vmatprep.subr.bf16.mxu0 0
    %3982 = vmatpush2.bf16.msra.mxu0 0
    %3983 = vmatprep.subr.bf16.mxu0 0
    %3984 = vmatpush2.bf16.msra.mxu0 0
    %3985 = vmatprep.subr.bf16.mxu0 0
    %3986 = vmatpush2.bf16.msra.mxu0 0
    %3987 = vmatprep.subr.bf16.mxu0 0
    %3988 = vmatpush2.bf16.msra.mxu0 0
    %3989 = vmatprep.subr.bf16.mxu0 0
    %3990 = vmatpush2.bf16.msra.mxu0 0
    %3991 = vmatprep.mubr.bf16.mxu0 0
    %3992 = vmatmul.mubr.bf16.gmra.mxu0 %v3701
    %v3993 = vpop.f32.mrf.mxu0
    %v3994 = vadd.f32 %v3747, %v3993
    %v3995 = vpop.f32.mrf.mxu0
    %v3996 = vadd.f32 %v3751, %v3995
    %v3997 = vpop.f32.mrf.mxu0
    %v3998 = vadd.f32 %v3747, %v3997
    %v3999 = vpop.f32.mrf.mxu0
    %v4000 = vadd.f32 %v3751, %v3999
    %4001 = vdwg.mxu0
    %v4002 = vmax.f32 %v3951, 0.0
    %v4003 = vmax.f32 %v3953, 0.0
    %v4004 = vmax.f32 %v3994, 0.0
    %v4005 = vmax.f32 %v3996, 0.0
    %v4006 = vmax.f32 %v3955, 0.0
    %v4007 = vmax.f32 %v3957, 0.0
    %v4008 = vmax.f32 %v3998, 0.0
    %v4009 = vmax.f32 %v4000, 0.0
    %s4010 = smul.u32 4, 64
    %s4011 = smul.u32 %s4010, 1
    %s4012 = sshll.u32 %s4011, 4
    %4013 = dma.done %s162, %s4012
    %v4014 = vpack.c.bf16 %v4006, %v4002
    %v4015 = vpack.c.bf16 %v4007, %v4003
    %v4016 = vpack.c.bf16 %v4008, %v4004
    %v4017 = vpack.c.bf16 %v4009, %v4005
    %v4018 = vld [vmem:[#allocation3] sm:$0xf]
    %v4019 = vld [vmem:[#allocation3 + $0x4] sm:$0xf]
    %v4020 = vld [vmem:[#allocation3 + $0x8] sm:$0xf]
    %v4021 = vld [vmem:[#allocation3 + $0xc] sm:$0xf]
    %v4022 = vld [vmem:[#allocation3 + $0x10] sm:$0xf]
    %v4023 = vld [vmem:[#allocation3 + $0x14] sm:$0xf]
    %v4024 = vld [vmem:[#allocation3 + $0x18] sm:$0xf]
    %v4025 = vld [vmem:[#allocation3 + $0x1c] sm:$0xf]
    %v4026 = vld [vmem:[#allocation3 + $0x20] sm:$0xf]
    %v4027 = vld [vmem:[#allocation3 + $0x24] sm:$0xf]
    %v4028 = vld [vmem:[#allocation3 + $0x28] sm:$0xf]
    %v4029 = vld [vmem:[#allocation3 + $0x2c] sm:$0xf]
    %v4030 = vld [vmem:[#allocation3 + $0x30] sm:$0xf]
    %v4031 = vld [vmem:[#allocation3 + $0x34] sm:$0xf]
    %v4032 = vld [vmem:[#allocation3 + $0x38] sm:$0xf]
    %v4033 = vld [vmem:[#allocation3 + $0x3c] sm:$0xf]
    %v4034 = vld [vmem:[#allocation3 + $0x40] sm:$0xf]
    %v4035 = vld [vmem:[#allocation3 + $0x44] sm:$0xf]
    %v4036 = vld [vmem:[#allocation3 + $0x48] sm:$0xf]
    %v4037 = vld [vmem:[#allocation3 + $0x4c] sm:$0xf]
    %v4038 = vld [vmem:[#allocation3 + $0x50] sm:$0xf]
    %v4039 = vld [vmem:[#allocation3 + $0x54] sm:$0xf]
    %v4040 = vld [vmem:[#allocation3 + $0x58] sm:$0xf]
    %v4041 = vld [vmem:[#allocation3 + $0x5c] sm:$0xf]
    %v4042 = vld [vmem:[#allocation3 + $0x60] sm:$0xf]
    %v4043 = vld [vmem:[#allocation3 + $0x64] sm:$0xf]
    %v4044 = vld [vmem:[#allocation3 + $0x68] sm:$0xf]
    %v4045 = vld [vmem:[#allocation3 + $0x6c] sm:$0xf]
    %v4046 = vld [vmem:[#allocation3 + $0x70] sm:$0xf]
    %v4047 = vld [vmem:[#allocation3 + $0x74] sm:$0xf]
    %v4048 = vld [vmem:[#allocation3 + $0x78] sm:$0xf]
    %v4049 = vld [vmem:[#allocation3 + $0x7c] sm:$0xf]
    %v4050 = vld [vmem:[#allocation3 + $0x80] sm:$0xf]
    %v4051 = vld [vmem:[#allocation3 + $0x84] sm:$0xf]
    %v4052 = vld [vmem:[#allocation3 + $0x88] sm:$0xf]
    %v4053 = vld [vmem:[#allocation3 + $0x8c] sm:$0xf]
    %v4054 = vld [vmem:[#allocation3 + $0x90] sm:$0xf]
    %v4055 = vld [vmem:[#allocation3 + $0x94] sm:$0xf]
    %v4056 = vld [vmem:[#allocation3 + $0x98] sm:$0xf]
    %v4057 = vld [vmem:[#allocation3 + $0x9c] sm:$0xf]
    %v4058 = vld [vmem:[#allocation3 + $0xa0] sm:$0xf]
    %v4059 = vld [vmem:[#allocation3 + $0xa4] sm:$0xf]
    %v4060 = vld [vmem:[#allocation3 + $0xa8] sm:$0xf]
    %v4061 = vld [vmem:[#allocation3 + $0xac] sm:$0xf]
    %v4062 = vld [vmem:[#allocation3 + $0xb0] sm:$0xf]
    %v4063 = vld [vmem:[#allocation3 + $0xb4] sm:$0xf]
    %v4064 = vld [vmem:[#allocation3 + $0xb8] sm:$0xf]
    %v4065 = vld [vmem:[#allocation3 + $0xbc] sm:$0xf]
    %v4066 = vld [vmem:[#allocation3 + $0xc0] sm:$0xf]
    %v4067 = vld [vmem:[#allocation3 + $0xc4] sm:$0xf]
    %v4068 = vld [vmem:[#allocation3 + $0xc8] sm:$0xf]
    %v4069 = vld [vmem:[#allocation3 + $0xcc] sm:$0xf]
    %v4070 = vld [vmem:[#allocation3 + $0xd0] sm:$0xf]
    %v4071 = vld [vmem:[#allocation3 + $0xd4] sm:$0xf]
    %v4072 = vld [vmem:[#allocation3 + $0xd8] sm:$0xf]
    %v4073 = vld [vmem:[#allocation3 + $0xdc] sm:$0xf]
    %v4074 = vld [vmem:[#allocation3 + $0xe0] sm:$0xf]
    %v4075 = vld [vmem:[#allocation3 + $0xe4] sm:$0xf]
    %v4076 = vld [vmem:[#allocation3 + $0xe8] sm:$0xf]
    %v4077 = vld [vmem:[#allocation3 + $0xec] sm:$0xf]
    %v4078 = vld [vmem:[#allocation3 + $0xf0] sm:$0xf]
    %v4079 = vld [vmem:[#allocation3 + $0xf4] sm:$0xf]
    %v4080 = vld [vmem:[#allocation3 + $0xf8] sm:$0xf]
    %v4081 = vld [vmem:[#allocation3 + $0xfc] sm:$0xf]
    %v4146 = vunpack.c.l.b16 %v4018
    %v4147 = vunpack.c.l.b16 %v4019
    %v4148 = vunpack.c.l.b16 %v4020
    %v4149 = vunpack.c.l.b16 %v4021
    %v4150 = vunpack.c.l.b16 %v4022
    %v4151 = vunpack.c.l.b16 %v4023
    %v4152 = vunpack.c.l.b16 %v4024
    %v4153 = vunpack.c.l.b16 %v4025
    %v4154 = vunpack.c.l.b16 %v4026
    %v4155 = vunpack.c.l.b16 %v4027
    %v4156 = vunpack.c.l.b16 %v4028
    %v4157 = vunpack.c.l.b16 %v4029
    %v4158 = vunpack.c.l.b16 %v4030
    %v4159 = vunpack.c.l.b16 %v4031
    %v4160 = vunpack.c.l.b16 %v4032
    %v4161 = vunpack.c.l.b16 %v4033
    %v4162 = vunpack.c.l.b16 %v4034
    %v4163 = vunpack.c.l.b16 %v4035
    %v4164 = vunpack.c.l.b16 %v4036
    %v4165 = vunpack.c.l.b16 %v4037
    %v4166 = vunpack.c.l.b16 %v4038
    %v4167 = vunpack.c.l.b16 %v4039
    %v4168 = vunpack.c.l.b16 %v4040
    %v4169 = vunpack.c.l.b16 %v4041
    %v4170 = vunpack.c.l.b16 %v4042
    %v4171 = vunpack.c.l.b16 %v4043
    %v4172 = vunpack.c.l.b16 %v4044
    %v4173 = vunpack.c.l.b16 %v4045
    %v4174 = vunpack.c.l.b16 %v4046
    %v4175 = vunpack.c.l.b16 %v4047
    %v4176 = vunpack.c.l.b16 %v4048
    %v4177 = vunpack.c.l.b16 %v4049
    %v4178 = vunpack.c.l.b16 %v4050
    %v4179 = vunpack.c.l.b16 %v4051
    %v4180 = vunpack.c.l.b16 %v4052
    %v4181 = vunpack.c.l.b16 %v4053
    %v4182 = vunpack.c.l.b16 %v4054
    %v4183 = vunpack.c.l.b16 %v4055
    %v4184 = vunpack.c.l.b16 %v4056
    %v4185 = vunpack.c.l.b16 %v4057
    %v4186 = vunpack.c.l.b16 %v4058
    %v4187 = vunpack.c.l.b16 %v4059
    %v4188 = vunpack.c.l.b16 %v4060
    %v4189 = vunpack.c.l.b16 %v4061
    %v4190 = vunpack.c.l.b16 %v4062
    %v4191 = vunpack.c.l.b16 %v4063
    %v4192 = vunpack.c.l.b16 %v4064
    %v4193 = vunpack.c.l.b16 %v4065
    %v4194 = vunpack.c.l.b16 %v4066
    %v4195 = vunpack.c.l.b16 %v4067
    %v4196 = vunpack.c.l.b16 %v4068
    %v4197 = vunpack.c.l.b16 %v4069
    %v4198 = vunpack.c.l.b16 %v4070
    %v4199 = vunpack.c.l.b16 %v4071
    %v4200 = vunpack.c.l.b16 %v4072
    %v4201 = vunpack.c.l.b16 %v4073
    %v4202 = vunpack.c.l.b16 %v4074
    %v4203 = vunpack.c.l.b16 %v4075
    %v4204 = vunpack.c.l.b16 %v4076
    %v4205 = vunpack.c.l.b16 %v4077
    %v4206 = vunpack.c.l.b16 %v4078
    %v4207 = vunpack.c.l.b16 %v4079
    %v4208 = vunpack.c.l.b16 %v4080
    %v4209 = vunpack.c.l.b16 %v4081
    %v4210 = vpack.c.b16 %v4147, %v4146
    %v4211 = vpack.c.b16 %v4149, %v4148
    %v4212 = vpack.c.b16 %v4151, %v4150
    %v4213 = vpack.c.b16 %v4153, %v4152
    %v4214 = vpack.c.b16 %v4155, %v4154
    %v4215 = vpack.c.b16 %v4157, %v4156
    %v4216 = vpack.c.b16 %v4159, %v4158
    %v4217 = vpack.c.b16 %v4161, %v4160
    %v4218 = vpack.c.b16 %v4163, %v4162
    %v4219 = vpack.c.b16 %v4165, %v4164
    %v4220 = vpack.c.b16 %v4167, %v4166
    %v4221 = vpack.c.b16 %v4169, %v4168
    %v4222 = vpack.c.b16 %v4171, %v4170
    %v4223 = vpack.c.b16 %v4173, %v4172
    %v4224 = vpack.c.b16 %v4175, %v4174
    %v4225 = vpack.c.b16 %v4177, %v4176
    %v4226 = vpack.c.b16 %v4179, %v4178
    %v4227 = vpack.c.b16 %v4181, %v4180
    %v4228 = vpack.c.b16 %v4183, %v4182
    %v4229 = vpack.c.b16 %v4185, %v4184
    %v4230 = vpack.c.b16 %v4187, %v4186
    %v4231 = vpack.c.b16 %v4189, %v4188
    %v4232 = vpack.c.b16 %v4191, %v4190
    %v4233 = vpack.c.b16 %v4193, %v4192
    %v4234 = vpack.c.b16 %v4195, %v4194
    %v4235 = vpack.c.b16 %v4197, %v4196
    %v4236 = vpack.c.b16 %v4199, %v4198
    %v4237 = vpack.c.b16 %v4201, %v4200
    %v4238 = vpack.c.b16 %v4203, %v4202
    %v4239 = vpack.c.b16 %v4205, %v4204
    %v4240 = vpack.c.b16 %v4207, %v4206
    %v4241 = vpack.c.b16 %v4209, %v4208
    %4274 = vmatprep.subr.bf16.mxu0 0
    %4275 = vmatpush1.bf16.msra.mxu0 %v4217
    %4276 = vmatprep.subr.bf16.mxu0 0
    %4277 = vmatpush1.bf16.msra.mxu0 %v4216
    %4278 = vmatprep.subr.bf16.mxu0 0
    %4279 = vmatpush1.bf16.msra.mxu0 %v4215
    %4280 = vmatprep.subr.bf16.mxu0 0
    %4281 = vmatpush1.bf16.msra.mxu0 %v4214
    %4282 = vmatprep.subr.bf16.mxu0 0
    %4283 = vmatpush1.bf16.msra.mxu0 %v4213
    %4284 = vmatprep.subr.bf16.mxu0 0
    %4285 = vmatpush1.bf16.msra.mxu0 %v4212
    %4286 = vmatprep.subr.bf16.mxu0 0
    %4287 = vmatpush1.bf16.msra.mxu0 %v4211
    %4288 = vmatprep.subr.bf16.mxu0 0
    %4289 = vmatpush1.bf16.msra.mxu0 %v4210
    %4290 = vmatprep.subr.bf16.mxu0 0
    %4291 = vmatpush2.bf16.msra.mxu0 %v4225
    %4292 = vmatprep.subr.bf16.mxu0 0
    %4293 = vmatpush2.bf16.msra.mxu0 %v4224
    %4294 = vmatprep.subr.bf16.mxu0 0
    %4295 = vmatpush2.bf16.msra.mxu0 %v4223
    %4296 = vmatprep.subr.bf16.mxu0 0
    %4297 = vmatpush2.bf16.msra.mxu0 %v4222
    %4298 = vmatprep.subr.bf16.mxu0 0
    %4299 = vmatpush2.bf16.msra.mxu0 %v4221
    %4300 = vmatprep.subr.bf16.mxu0 0
    %4301 = vmatpush2.bf16.msra.mxu0 %v4220
    %4302 = vmatprep.subr.bf16.mxu0 0
    %4303 = vmatpush2.bf16.msra.mxu0 %v4219
    %4304 = vmatprep.subr.bf16.mxu0 0
    %4305 = vmatpush2.bf16.msra.mxu0 %v4218
    %4306 = vmatprep.mubr.bf16.mxu0 %v4015
    %4307 = vmatmul.mubr.bf16.gmra.mxu0 %v4014
    %v4308 = vpop.f32.mrf.mxu0
    %v4309 = vadd.f32 0.0, %v4308
    %v4310 = vpop.f32.mrf.mxu0
    %v4311 = vpop.f32.mrf.mxu0
    %v4312 = vadd.f32 0.0, %v4311
    %v4313 = vpop.f32.mrf.mxu0
    %4314 = vdwg.mxu0
    %4315 = vmatprep.subr.bf16.mxu0 0
    %4316 = vmatpush1.bf16.msra.mxu0 %v4233
    %4317 = vmatprep.subr.bf16.mxu0 0
    %4318 = vmatpush1.bf16.msra.mxu0 %v4232
    %4319 = vmatprep.subr.bf16.mxu0 0
    %4320 = vmatpush1.bf16.msra.mxu0 %v4231
    %4321 = vmatprep.subr.bf16.mxu0 0
    %4322 = vmatpush1.bf16.msra.mxu0 %v4230
    %4323 = vmatprep.subr.bf16.mxu0 0
    %4324 = vmatpush1.bf16.msra.mxu0 %v4229
    %4325 = vmatprep.subr.bf16.mxu0 0
    %4326 = vmatpush1.bf16.msra.mxu0 %v4228
    %4327 = vmatprep.subr.bf16.mxu0 0
    %4328 = vmatpush1.bf16.msra.mxu0 %v4227
    %4329 = vmatprep.subr.bf16.mxu0 0
    %4330 = vmatpush1.bf16.msra.mxu0 %v4226
    %4331 = vmatprep.subr.bf16.mxu0 0
    %4332 = vmatpush2.bf16.msra.mxu0 %v4241
    %4333 = vmatprep.subr.bf16.mxu0 0
    %4334 = vmatpush2.bf16.msra.mxu0 %v4240
    %4335 = vmatprep.subr.bf16.mxu0 0
    %4336 = vmatpush2.bf16.msra.mxu0 %v4239
    %4337 = vmatprep.subr.bf16.mxu0 0
    %4338 = vmatpush2.bf16.msra.mxu0 %v4238
    %4339 = vmatprep.subr.bf16.mxu0 0
    %4340 = vmatpush2.bf16.msra.mxu0 %v4237
    %4341 = vmatprep.subr.bf16.mxu0 0
    %4342 = vmatpush2.bf16.msra.mxu0 %v4236
    %4343 = vmatprep.subr.bf16.mxu0 0
    %4344 = vmatpush2.bf16.msra.mxu0 %v4235
    %4345 = vmatprep.subr.bf16.mxu0 0
    %4346 = vmatpush2.bf16.msra.mxu0 %v4234
    %4347 = vmatprep.mubr.bf16.mxu0 %v4017
    %4348 = vmatmul.mubr.bf16.gmra.mxu0 %v4016
    %v4349 = vpop.f32.mrf.mxu0
    %v4350 = vadd.f32 %v4309, %v4349
    %v4351 = vpop.f32.mrf.mxu0
    %v4352 = vpop.f32.mrf.mxu0
    %v4353 = vadd.f32 %v4312, %v4352
    %v4354 = vpop.f32.mrf.mxu0
    %4355 = vdwg.mxu0
    %v4356 = vadd.f32 %v3695, %v4350
    %v4357 = vadd.f32 %v3696, %v4353
    %v4358 = vld [vmem:[%s15] sm:$0x1]
    %v4360 = vlaneseq
    %v4361 = vshrl.u32 %v4360, 7
    %v4362 = vsub.s32 0, %v4361
    %v4363 = vrot.slane %v4358, %v4362
    %v4365 = vadd.f32 %v4356, %v4363
    %v4366 = vadd.f32 %v4357, %v4363
    %v4367 = vld [vmem:[%s16] sm:$0x1]
    %v4368 = vld [vmem:[%s17] sm:$0x1]
    %4369 = vadd.xlane.f32.xlu0 %v4365
    %v4370 = vpop.xlane.xlu0 %4369
    %4371 = vadd.xlane.f32.xlu0 %v4366
    %v4372 = vpop.xlane.xlu0 %4371
    %v4373 = vmul.f32 %v4370, %v3662
    %v4374 = vmul.f32 %v4372, %v3662
    %v4375 = vsub.f32 %v4365, %v4373
    %v4376 = vsub.f32 %v4366, %v4374
    %v4377 = vmul.f32 %v4375, %v4375
    %v4378 = vmul.f32 %v4376, %v4376
    %4379 = vadd.xlane.f32.xlu0 %v4377
    %v4380 = vpop.xlane.xlu0 %4379
    %4381 = vadd.xlane.f32.xlu0 %v4378
    %v4382 = vpop.xlane.xlu0 %4381
    %v4383 = vmul.f32 %v4380, %v3662
    %v4384 = vmul.f32 %v4382, %v3662
    %v4385 = vadd.f32 %v4383, 1e-05
    %v4386 = vadd.f32 %v4384, 1e-05
    %v4387 = vrsqrt.pop %v4385
    %v4388 = vrsqrt.pop %v4386
    %v4389 = vmul.f32 %v4375, %v4387
    %v4390 = vmul.f32 %v4376, %v4388
    %v4392 = vlaneseq
    %v4393 = vshrl.u32 %v4392, 7
    %v4394 = vsub.s32 0, %v4393
    %v4395 = vrot.slane %v4367, %v4394
    %v4397 = vmul.f32 %v4389, %v4395
    %v4398 = vmul.f32 %v4390, %v4395
    %v4400 = vlaneseq
    %v4401 = vshrl.u32 %v4400, 7
    %v4402 = vsub.s32 0, %v4401
    %v4403 = vrot.slane %v4368, %v4402
    %v4405 = vadd.f32 %v4397, %v4403
    %v4406 = vadd.f32 %v4398, %v4403
    %4407 = vst [vmem:[#allocation6] sm:$0xff] %v4405
    %4408 = vst [vmem:[#allocation6 + $0x8] sm:$0xff] %v4406
    // Predicated region
    $region134: #{prompt_decoder_forward.1} parent=1 // pred_check
      _
    $region135: #{prompt_decoder_forward.1} parent=1 // pred_check_branch
      %4410 = sbr.rel (0) target = $region137
    $region136: #{prompt_decoder_forward.1} parent=1 // pred_region
      %s4412 = ssub.s32 256, 256
      %4413 = vsyncadd [#allocation7], %s4412
      %s4414 = sshll.u32 [#allocation6], 4
      %s4415 = int_to_ptr.vmem [resolvable:$true] %s4414
      %4420 = dma.vmem_to_hbm [thread:$0]  %s4415, 256, %s18, [#allocation7], 128, 128, 8
    $region137: #{prompt_decoder_forward.1} parent=1 // pred_fallthru
      _
    // Predicated region
    $region138: #{prompt_decoder_forward.1} parent=1 // pred_check
      _
    $region139: #{prompt_decoder_forward.1} parent=1 // pred_check_branch
      %4422 = sbr.rel (0) target = $region141
    $region140: #{prompt_decoder_forward.1} parent=1 // pred_region
      %4423 = dma.done [#allocation7], 256
    $region141: #{prompt_decoder_forward.1} parent=1 // pred_fallthru
      _
    %4424 = vsyncpa [#allocation7], 1
  %4425 = vsyncmov [#allocation5]
  %s4426 = vpop.sfrf %4425
  %p4427 = scmp.eq.s32.totalorder %s4426, 0
  %p4428 = pneg %p4427
  %4430 = shalt.err (%p4428)
  %s4431 = scalar_lea.sflag [#allocation5], 1
  %4432 = vsyncmov %s4431
  %s4433 = vpop.sfrf %4432
  %p4434 = scmp.eq.s32.totalorder %s4433, 0
  %p4435 = pneg %p4434
  %4437 = shalt.err (%p4435)

</llo_original>
